<compile_context>
chip_gen: v6e
topology: v6e:2x2x1
jax: 0.10.0
libtpu: 0.0.40
codegen_flags: <defaults>
</compile_context>

<pallas_src>
import jax
import jax.numpy as jnp
from jax.experimental import pallas as pl
from jax.experimental.pallas import tpu as pltpu


# ----------------------------------------------------------------------------
# Fused kernel
# ----------------------------------------------------------------------------

def make_fused_gru_fc_kernel(T, Bp, H, num_layers):
    """Ref order:
       x_sel,
       layer 0:  w_proj, whh, b_pre, b_hn
       layer l>0: w_even, w_odd, whh, b_pre, b_hn
       fc_w1, fc_b1, fc_w2, fc_b2,
       out
    """
    H2 = 2 * H            # per-timestep hidden width (both directions)
    G = 6 * H             # gate lanes, gate-major interleaved [r_f r_b z_f z_b n_f n_b]

    def kernel(*refs):
        idx = 0
        x_ref = refs[idx]; idx += 1
        layer_refs = []
        for l in range(num_layers):
            n = 4 if l == 0 else 5
            layer_refs.append(refs[idx:idx + n]); idx += n
        w1_ref, b1_ref, w2_ref, b2_ref = refs[idx:idx + 4]; idx += 4
        out_ref = refs[idx]

        h_steps_prev = None   # per-step h of previous layer (step-major list)

        for l in range(num_layers):
            if l == 0:
                w_proj_ref, whh_ref, bpre_ref, bhn_ref = layer_refs[0]
                # x_sel rows at step s hold [x(s) | x(T-1-s)]; w_proj has the
                # forward-gate columns in its top half rows and backward-gate
                # columns in its bottom half rows, so ONE matmul directly
                # yields the direction-selected, time-reversed gate projection.
                gi = jnp.dot(x_ref[...], w_proj_ref[...],
                             preferred_element_type=jnp.float32) + bpre_ref[...]
            else:
                we_ref, wo_ref, whh_ref, bpre_ref, bhn_ref = layer_refs[l]
                # Previous layer's per-step h (step-major: [h_f(s) | h_b(T-1-s)]).
                S = jnp.concatenate(h_steps_prev, axis=0)          # (T*Bp, 2H)
                # Complementary-masked projections; U stays at its own step,
                # V belongs to the mirror step (time-reversed), so
                # gi_sel[s] = U[s] + V[T-1-s].  Built once per layer.
                U = jnp.dot(S, we_ref[...], preferred_element_type=jnp.float32)
                V = jnp.dot(S, wo_ref[...], preferred_element_type=jnp.float32)
                V_rev = jnp.concatenate(
                    [V[(T - 1 - s) * Bp:(T - s) * Bp, :] for s in range(T)],
                    axis=0)
                gi = U + V_rev + bpre_ref[...]                     # (T*Bp, 6H)

            whh = whh_ref[...]            # (2H, 6H) block-diagonal
            b_hn = bhn_ref[...]           # (1, 2H)  n-gate hidden bias [n_f | n_b]
            h = jnp.zeros((Bp, H2), jnp.float32)                   # [h_f | h_b]
            h_steps = []

            for s in range(T):            # fully unrolled (T static)
                gi_s = gi[s * Bp:(s + 1) * Bp, :]                  # whole sublane tile
                # Single recurrent matmul for both directions (block-diag W).
                # TODO(synk): hold whh in MXU weight regs across the loop
                # (pltpu.matmul_push_rhs / matmul_acc_lhs / matmul_pop).
                gh = jnp.dot(h, whh, preferred_element_type=jnp.float32)
                # Merged r/z sigmoid over one full 128-lane slab.
                rz = jax.nn.sigmoid(gi_s[:, :2 * H2] + gh[:, :2 * H2])
                r = rz[:, :H2]
                z = rz[:, H2:]
                n = jnp.tanh(gi_s[:, 2 * H2:] + r * (gh[:, 2 * H2:] + b_hn))
                h = n + z * (h - n)       # == (1 - z) * n + z * h
                h_steps.append(h)         # step-major: [h_f(s) | h_b(T-1-s)]

            h_steps_prev = h_steps

        # FC head: Linear(T*2H -> 128) -> ReLU -> Linear(128 -> out_dim).
        # flat is the lane-dense step-major concatenation of whole h vectors;
        # fc_w1's rows were permuted once in prepare_params to match.
        flat = jnp.concatenate(h_steps_prev, axis=1)               # (Bp, T*2H)
        h1 = jnp.dot(flat, w1_ref[...],
                     preferred_element_type=jnp.float32) + b1_ref[...]
        h1 = jnp.maximum(h1, 0.0)
        y = jnp.dot(h1, w2_ref[...],
                    preferred_element_type=jnp.float32) + b2_ref[...]
        out_ref[...] = y.astype(out_ref.dtype)

    return kernel


# ----------------------------------------------------------------------------
# One-time parameter preparation (re-layout done once, outside the kernel)
# ----------------------------------------------------------------------------

def _interleave_gates(a_f, a_b, H):
    """Interleave two [..., 3H] arrays (PyTorch gate order r,z,n) into
    [..., 6H] gate-major layout [r_f r_b z_f z_b n_f n_b]."""
    parts = []
    for g in range(3):
        parts.append(a_f[..., g * H:(g + 1) * H])
        parts.append(a_b[..., g * H:(g + 1) * H])
    return jnp.concatenate(parts, axis=-1)


def prepare_params(params, input_size, hidden_size, num_layers, sequence_length):
    H = hidden_size
    T = sequence_length
    G = 6 * H
    fwd_cols = ((jnp.arange(G) // H) % 2 == 0)[None, :]      # (1, 6H) bool

    prep = {"layers": []}
    for l in range(num_layers):
        p = params["gru"][l]
        # Input->hidden weights, transposed and gate-interleaved: (d_in, 6H)
        wih = _interleave_gates(p["w_ih_f"].T, p["w_ih_b"].T, H).astype(jnp.float32)

        layer = {}
        if l == 0:
            # Rows [0:D] carry x(s) -> forward-gate cols; rows [D:2D] carry
            # x(T-1-s) -> backward-gate cols.
            layer["w_proj"] = jnp.concatenate(
                [jnp.where(fwd_cols, wih, 0.0),
                 jnp.where(fwd_cols, 0.0, wih)], axis=0)     # (2*d_in, 6H)
        else:
            # Step-major previous-layer rows hold [h_f(s) | h_b(T-1-s)]:
            #  even part: own-step contributions; odd part: mirror-step ones.
            row_is_f = (jnp.arange(2 * H) < H)[:, None]
            even_mask = jnp.where(row_is_f, fwd_cols, ~fwd_cols)   # (2H, 6H)
            layer["w_even"] = jnp.where(even_mask, wih, 0.0)
            layer["w_odd"] = jnp.where(even_mask, 0.0, wih)

        # Hidden->hidden: block-diagonal (2H, 6H); rows 0:H act on h_fwd,
        # rows H:2H act on h_bwd.
        whh = jnp.zeros((2 * H, 6 * H), jnp.float32)
        whh_f_t = p["w_hh_f"].T
        whh_b_t = p["w_hh_b"].T
        for g in range(3):
            whh = whh.at[0:H, (2 * g) * H:(2 * g + 1) * H].set(
                whh_f_t[:, g * H:(g + 1) * H])
            whh = whh.at[H:2 * H, (2 * g + 1) * H:(2 * g + 2) * H].set(
                whh_b_t[:, g * H:(g + 1) * H])

        b_ih = _interleave_gates(p["b_ih_f"], p["b_ih_b"], H)       # (6H,)
        b_hh = _interleave_gates(p["b_hh_f"], p["b_hh_b"], H)       # (6H,)
        # Fold b_ih and the r/z parts of b_hh into the hoisted projection.
        b_pre = b_ih + b_hh.at[4 * H:6 * H].set(0.0)
        # Keep only the n-gate part of b_hh (must sit inside r*(...)), 2H wide.
        b_hn = jnp.concatenate([p["b_hh_f"][2 * H:3 * H],
                                p["b_hh_b"][2 * H:3 * H]])          # (2H,)

        layer["whh"] = whh.astype(jnp.float32)
        layer["b_pre"] = b_pre.reshape(1, -1).astype(jnp.float32)
        layer["b_hn"] = b_hn.reshape(1, -1).astype(jnp.float32)
        prep["layers"].append(layer)

    # Permute fc_w1 rows so the kernel's step-major flat layout
    # [h_f(s) | h_b(T-1-s)] per step s matches PyTorch's time-major
    # [h_f(t) | h_b(t)] flattening.
    perm = []
    for s in range(T):
        for j in range(H):
            perm.append(s * 2 * H + j)                     # fwd of step s -> t=s
        for j in range(H):
            perm.append((T - 1 - s) * 2 * H + H + j)       # bwd of step s -> t=T-1-s
    perm = jnp.asarray(perm, dtype=jnp.int32)
    prep["fc_w1"] = params["fc_w1"][perm, :].astype(jnp.float32)
    prep["fc_b1"] = params["fc_b1"].reshape(1, -1).astype(jnp.float32)
    prep["fc_w2"] = params["fc_w2"].astype(jnp.float32)
    prep["fc_b2"] = params["fc_b2"].reshape(1, -1).astype(jnp.float32)
    return prep


# ----------------------------------------------------------------------------
# Wrapper
# ----------------------------------------------------------------------------

def gru_model_forward(x, prep, hidden_size, num_layers):
    """x: (B, T, input_size), batch_first.  Returns (B, input_size)."""
    B, T, D = x.shape
    H = hidden_size
    Bp = max(8, -(-B // 8) * 8)            # pad batch to a whole sublane tile
    out_dim = prep["fc_w2"].shape[1]

    # Time-major, batch padded to 8 rows; each step-s row block carries both
    # x(s) and x(T-1-s) so the kernel's layer-0 projection needs no select.
    x_tm = jnp.transpose(x, (1, 0, 2)).astype(jnp.float32)          # (T, B, D)
    if Bp != B:
        x_tm = jnp.pad(x_tm, ((0, 0), (0, Bp - B), (0, 0)))
    x_sel = jnp.concatenate([x_tm, x_tm[::-1]], axis=-1)            # (T, Bp, 2D)
    x_sel = x_sel.reshape(T * Bp, 2 * D)

    vmem = pl.BlockSpec(memory_space=pltpu.MemorySpace.VMEM)
    args = [x_sel]
    for l, lp in enumerate(prep["layers"]):
        if l == 0:
            args += [lp["w_proj"]]
        else:
            args += [lp["w_even"], lp["w_odd"]]
        args += [lp["whh"], lp["b_pre"], lp["b_hn"]]
    args += [prep["fc_w1"], prep["fc_b1"], prep["fc_w2"], prep["fc_b2"]]

    kernel = make_fused_gru_fc_kernel(T, Bp, H, num_layers)
    out = pl.pallas_call(
        kernel,
        out_shape=jax.ShapeDtypeStruct((Bp, out_dim), jnp.float32),
        in_specs=[vmem] * len(args),
        out_specs=vmem,
    )(*args)
    return out[:B]


# ----------------------------------------------------------------------------
# Pure-JAX reference (PyTorch GRU semantics) for a correctness check
# ----------------------------------------------------------------------------

def gru_reference(x, params, hidden_size, num_layers):
    B, T, _ = x.shape
    H = hidden_size
    h_seq = x
    for l in range(num_layers):
        p = params["gru"][l]
        outs = []
        for direc, rev in (("f", False), ("b", True)):
            w_ih = p[f"w_ih_{direc}"]; w_hh = p[f"w_hh_{direc}"]
            b_ih = p[f"b_ih_{direc}"]; b_hh = p[f"b_hh_{direc}"]
            h = jnp.zeros((B, H), jnp.float32)
            seq = []
            ts = range(T - 1, -1, -1) if rev else range(T)
            for t in ts:
                xt = h_seq[:, t, :]
                gi = xt @ w_ih.T + b_ih
                gh = h @ w_hh.T + b_hh
                r = jax.nn.sigmoid(gi[:, 0:H] + gh[:, 0:H])
                z = jax.nn.sigmoid(gi[:, H:2 * H] + gh[:, H:2 * H])
                n = jnp.tanh(gi[:, 2 * H:3 * H] + r * gh[:, 2 * H:3 * H])
                h = (1.0 - z) * n + z * h
                seq.append(h)
            if rev:
                seq = seq[::-1]
            outs.append(jnp.stack(seq, axis=1))           # (B, T, H)
        h_seq = jnp.concatenate(outs, axis=-1)            # (B, T, 2H)
    flat = h_seq.reshape(B, -1)
    h1 = jnp.maximum(flat @ params["fc_w1"] + params["fc_b1"], 0.0)
    return h1 @ params["fc_w2"] + params["fc_b2"]


# ----------------------------------------------------------------------------
# Deterministic parameter construction (synthetic, PyTorch-shaped)
# ----------------------------------------------------------------------------

def init_params(key, input_size, hidden_size, num_layers, sequence_length):
    H = hidden_size
    scale = 1.0 / jnp.sqrt(jnp.float32(H))
    params = {"gru": []}
    for layer in range(num_layers):
        d_in = input_size if layer == 0 else 2 * H
        layer_p = {}
        for direc in ("f", "b"):
            key, k1, k2, k3, k4 = jax.random.split(key, 5)
            layer_p[f"w_ih_{direc}"] = jax.random.uniform(
                k1, (3 * H, d_in), jnp.float32, -scale, scale)
            layer_p[f"w_hh_{direc}"] = jax.random.uniform(
                k2, (3 * H, H), jnp.float32, -scale, scale)
            layer_p[f"b_ih_{direc}"] = jax.random.uniform(
                k3, (3 * H,), jnp.float32, -scale, scale)
            layer_p[f"b_hh_{direc}"] = jax.random.uniform(
                k4, (3 * H,), jnp.float32, -scale, scale)
        params["gru"].append(layer_p)

    fc_in = 2 * H * sequence_length
    key, k1, k2, k3, k4 = jax.random.split(key, 5)
    s1 = 1.0 / jnp.sqrt(jnp.float32(fc_in))
    s2 = 1.0 / jnp.sqrt(jnp.float32(128))
    params["fc_w1"] = jax.random.uniform(k1, (fc_in, 128), jnp.float32, -s1, s1)
    params["fc_b1"] = jax.random.uniform(k2, (128,), jnp.float32, -s1, s1)
    params["fc_w2"] = jax.random.uniform(k3, (128, input_size), jnp.float32, -s2, s2)
    params["fc_b2"] = jax.random.uniform(k4, (input_size,), jnp.float32, -s2, s2)
    return params


# ----------------------------------------------------------------------------
# Main
# ----------------------------------------------------------------------------

if __name__ == "__main__":
    batch = 2
    input_size = 16
    hidden_size = 32
    num_layers = 2
    sequence_length = 8

    key = jax.random.PRNGKey(0)
    key, xkey, pkey = jax.random.split(key, 3)

    x = jax.random.normal(xkey, (batch, sequence_length, input_size), jnp.float32)
    params = init_params(pkey, input_size, hidden_size, num_layers, sequence_length)
    prepared = prepare_params(params, input_size, hidden_size, num_layers,
                              sequence_length)

    fwd = jax.jit(gru_model_forward, static_argnums=(2, 3))
    out = fwd(x, prepared, hidden_size, num_layers)
    out = jax.block_until_ready(out)

    assert out.shape == (batch, input_size), out.shape
    assert bool(jnp.all(jnp.isfinite(out)))

    ref = jax.block_until_ready(gru_reference(x, params, hidden_size, num_layers))
    assert jnp.allclose(out, ref, rtol=2e-3, atol=2e-3), (
        float(jnp.max(jnp.abs(out - ref))))

    print("KERNEL_OK")
</pallas_src>

<mosaic_0001>
module attributes {stable_mosaic.version = 11 : i64} {
  func.func @kernel(%arg0: memref<64x32xf32, #tpu.memory_space<vmem>>, %arg1: memref<32x192xf32, #tpu.memory_space<vmem>>, %arg2: memref<64x192xf32, #tpu.memory_space<vmem>>, %arg3: memref<1x192xf32, #tpu.memory_space<vmem>>, %arg4: memref<1x64xf32, #tpu.memory_space<vmem>>, %arg5: memref<64x192xf32, #tpu.memory_space<vmem>>, %arg6: memref<64x192xf32, #tpu.memory_space<vmem>>, %arg7: memref<64x192xf32, #tpu.memory_space<vmem>>, %arg8: memref<1x192xf32, #tpu.memory_space<vmem>>, %arg9: memref<1x64xf32, #tpu.memory_space<vmem>>, %arg10: memref<512x128xf32, #tpu.memory_space<vmem>>, %arg11: memref<1x128xf32, #tpu.memory_space<vmem>>, %arg12: memref<128x16xf32, #tpu.memory_space<vmem>>, %arg13: memref<1x16xf32, #tpu.memory_space<vmem>>, %arg14: memref<8x16xf32, #tpu.memory_space<vmem>>) attributes {dimension_semantics = [], scalar_prefetch = 0 : i64, scratch_operands = 0 : i64, tpu.core_type = #tpu.core_type<tc>} {
    %c0 = arith.constant 0 : index
    %c0_0 = arith.constant 0 : index
    %0 = vector.load %arg0[%c0, %c0_0] : memref<64x32xf32, #tpu.memory_space<vmem>>, vector<64x32xf32>
    %c0_1 = arith.constant 0 : index
    %c0_2 = arith.constant 0 : index
    %1 = vector.load %arg1[%c0_1, %c0_2] : memref<32x192xf32, #tpu.memory_space<vmem>>, vector<32x192xf32>
    %cst = arith.constant dense<0.000000e+00> : vector<64x192xf32>
    %2 = tpu.matmul %0, %1, %cst {dimension_numbers = #tpu.dot_dimension_numbers<[1], [0], [0], [1], [0, 0, 1, 1], [], []>} : vector<64x32xf32>, vector<32x192xf32>, vector<64x192xf32> -> vector<64x192xf32>
    %c0_3 = arith.constant 0 : index
    %c0_4 = arith.constant 0 : index
    %3 = vector.load %arg3[%c0_3, %c0_4] : memref<1x192xf32, #tpu.memory_space<vmem>>, vector<1x192xf32>
    %4 = vector.broadcast %3 : vector<1x192xf32> to vector<64x192xf32>
    %5 = arith.addf %2, %4 : vector<64x192xf32>
    %c0_5 = arith.constant 0 : index
    %c0_6 = arith.constant 0 : index
    %6 = vector.load %arg2[%c0_5, %c0_6] : memref<64x192xf32, #tpu.memory_space<vmem>>, vector<64x192xf32>
    %c0_7 = arith.constant 0 : index
    %c0_8 = arith.constant 0 : index
    %7 = vector.load %arg4[%c0_7, %c0_8] : memref<1x64xf32, #tpu.memory_space<vmem>>, vector<1x64xf32>
    %cst_9 = arith.constant 0.000000e+00 : f32
    %8 = vector.broadcast %cst_9 : f32 to vector<8x64xf32>
    %9 = vector.extract_strided_slice %5 {offsets = [0, 0], sizes = [8, 192], strides = [1, 1]} : vector<64x192xf32> to vector<8x192xf32>
    %cst_10 = arith.constant dense<0.000000e+00> : vector<8x192xf32>
    %10 = tpu.matmul %8, %6, %cst_10 {dimension_numbers = #tpu.dot_dimension_numbers<[1], [0], [0], [1], [0, 0, 1, 1], [], []>} : vector<8x64xf32>, vector<64x192xf32>, vector<8x192xf32> -> vector<8x192xf32>
    %11 = vector.extract_strided_slice %9 {offsets = [0, 0], sizes = [8, 128], strides = [1, 1]} : vector<8x192xf32> to vector<8x128xf32>
    %12 = vector.extract_strided_slice %10 {offsets = [0, 0], sizes = [8, 128], strides = [1, 1]} : vector<8x192xf32> to vector<8x128xf32>
    %13 = arith.addf %11, %12 : vector<8x128xf32>
    %14 = arith.negf %13 : vector<8x128xf32>
    %15 = math.exp %14 : vector<8x128xf32>
    %cst_11 = arith.constant 1.000000e+00 : f32
    %16 = vector.broadcast %cst_11 : f32 to vector<8x128xf32>
    %17 = arith.addf %16, %15 : vector<8x128xf32>
    %18 = arith.divf %16, %17 : vector<8x128xf32>
    %19 = vector.extract_strided_slice %18 {offsets = [0, 0], sizes = [8, 64], strides = [1, 1]} : vector<8x128xf32> to vector<8x64xf32>
    %20 = vector.extract_strided_slice %18 {offsets = [0, 64], sizes = [8, 64], strides = [1, 1]} : vector<8x128xf32> to vector<8x64xf32>
    %21 = vector.extract_strided_slice %9 {offsets = [0, 128], sizes = [8, 64], strides = [1, 1]} : vector<8x192xf32> to vector<8x64xf32>
    %22 = vector.extract_strided_slice %10 {offsets = [0, 128], sizes = [8, 64], strides = [1, 1]} : vector<8x192xf32> to vector<8x64xf32>
    %23 = vector.broadcast %7 : vector<1x64xf32> to vector<8x64xf32>
    %24 = arith.addf %22, %23 : vector<8x64xf32>
    %25 = arith.mulf %19, %24 : vector<8x64xf32>
    %26 = arith.addf %21, %25 : vector<8x64xf32>
    %27 = math.tanh %26 : vector<8x64xf32>
    %28 = arith.subf %8, %27 : vector<8x64xf32>
    %29 = arith.mulf %20, %28 : vector<8x64xf32>
    %30 = arith.addf %27, %29 : vector<8x64xf32>
    %31 = vector.extract_strided_slice %5 {offsets = [8, 0], sizes = [8, 192], strides = [1, 1]} : vector<64x192xf32> to vector<8x192xf32>
    %cst_12 = arith.constant dense<0.000000e+00> : vector<8x192xf32>
    %32 = tpu.matmul %30, %6, %cst_12 {dimension_numbers = #tpu.dot_dimension_numbers<[1], [0], [0], [1], [0, 0, 1, 1], [], []>} : vector<8x64xf32>, vector<64x192xf32>, vector<8x192xf32> -> vector<8x192xf32>
    %33 = vector.extract_strided_slice %31 {offsets = [0, 0], sizes = [8, 128], strides = [1, 1]} : vector<8x192xf32> to vector<8x128xf32>
    %34 = vector.extract_strided_slice %32 {offsets = [0, 0], sizes = [8, 128], strides = [1, 1]} : vector<8x192xf32> to vector<8x128xf32>
    %35 = arith.addf %33, %34 : vector<8x128xf32>
    %36 = arith.negf %35 : vector<8x128xf32>
    %37 = math.exp %36 : vector<8x128xf32>
    %cst_13 = arith.constant 1.000000e+00 : f32
    %38 = vector.broadcast %cst_13 : f32 to vector<8x128xf32>
    %39 = arith.addf %38, %37 : vector<8x128xf32>
    %40 = arith.divf %38, %39 : vector<8x128xf32>
    %41 = vector.extract_strided_slice %40 {offsets = [0, 0], sizes = [8, 64], strides = [1, 1]} : vector<8x128xf32> to vector<8x64xf32>
    %42 = vector.extract_strided_slice %40 {offsets = [0, 64], sizes = [8, 64], strides = [1, 1]} : vector<8x128xf32> to vector<8x64xf32>
    %43 = vector.extract_strided_slice %31 {offsets = [0, 128], sizes = [8, 64], strides = [1, 1]} : vector<8x192xf32> to vector<8x64xf32>
    %44 = vector.extract_strided_slice %32 {offsets = [0, 128], sizes = [8, 64], strides = [1, 1]} : vector<8x192xf32> to vector<8x64xf32>
    %45 = vector.broadcast %7 : vector<1x64xf32> to vector<8x64xf32>
    %46 = arith.addf %44, %45 : vector<8x64xf32>
    %47 = arith.mulf %41, %46 : vector<8x64xf32>
    %48 = arith.addf %43, %47 : vector<8x64xf32>
    %49 = math.tanh %48 : vector<8x64xf32>
    %50 = arith.subf %30, %49 : vector<8x64xf32>
    %51 = arith.mulf %42, %50 : vector<8x64xf32>
    %52 = arith.addf %49, %51 : vector<8x64xf32>
    %53 = vector.extract_strided_slice %5 {offsets = [16, 0], sizes = [8, 192], strides = [1, 1]} : vector<64x192xf32> to vector<8x192xf32>
    %cst_14 = arith.constant dense<0.000000e+00> : vector<8x192xf32>
    %54 = tpu.matmul %52, %6, %cst_14 {dimension_numbers = #tpu.dot_dimension_numbers<[1], [0], [0], [1], [0, 0, 1, 1], [], []>} : vector<8x64xf32>, vector<64x192xf32>, vector<8x192xf32> -> vector<8x192xf32>
    %55 = vector.extract_strided_slice %53 {offsets = [0, 0], sizes = [8, 128], strides = [1, 1]} : vector<8x192xf32> to vector<8x128xf32>
    %56 = vector.extract_strided_slice %54 {offsets = [0, 0], sizes = [8, 128], strides = [1, 1]} : vector<8x192xf32> to vector<8x128xf32>
    %57 = arith.addf %55, %56 : vector<8x128xf32>
    %58 = arith.negf %57 : vector<8x128xf32>
    %59 = math.exp %58 : vector<8x128xf32>
    %cst_15 = arith.constant 1.000000e+00 : f32
    %60 = vector.broadcast %cst_15 : f32 to vector<8x128xf32>
    %61 = arith.addf %60, %59 : vector<8x128xf32>
    %62 = arith.divf %60, %61 : vector<8x128xf32>
    %63 = vector.extract_strided_slice %62 {offsets = [0, 0], sizes = [8, 64], strides = [1, 1]} : vector<8x128xf32> to vector<8x64xf32>
    %64 = vector.extract_strided_slice %62 {offsets = [0, 64], sizes = [8, 64], strides = [1, 1]} : vector<8x128xf32> to vector<8x64xf32>
    %65 = vector.extract_strided_slice %53 {offsets = [0, 128], sizes = [8, 64], strides = [1, 1]} : vector<8x192xf32> to vector<8x64xf32>
    %66 = vector.extract_strided_slice %54 {offsets = [0, 128], sizes = [8, 64], strides = [1, 1]} : vector<8x192xf32> to vector<8x64xf32>
    %67 = vector.broadcast %7 : vector<1x64xf32> to vector<8x64xf32>
    %68 = arith.addf %66, %67 : vector<8x64xf32>
    %69 = arith.mulf %63, %68 : vector<8x64xf32>
    %70 = arith.addf %65, %69 : vector<8x64xf32>
    %71 = math.tanh %70 : vector<8x64xf32>
    %72 = arith.subf %52, %71 : vector<8x64xf32>
    %73 = arith.mulf %64, %72 : vector<8x64xf32>
    %74 = arith.addf %71, %73 : vector<8x64xf32>
    %75 = vector.extract_strided_slice %5 {offsets = [24, 0], sizes = [8, 192], strides = [1, 1]} : vector<64x192xf32> to vector<8x192xf32>
    %cst_16 = arith.constant dense<0.000000e+00> : vector<8x192xf32>
    %76 = tpu.matmul %74, %6, %cst_16 {dimension_numbers = #tpu.dot_dimension_numbers<[1], [0], [0], [1], [0, 0, 1, 1], [], []>} : vector<8x64xf32>, vector<64x192xf32>, vector<8x192xf32> -> vector<8x192xf32>
    %77 = vector.extract_strided_slice %75 {offsets = [0, 0], sizes = [8, 128], strides = [1, 1]} : vector<8x192xf32> to vector<8x128xf32>
    %78 = vector.extract_strided_slice %76 {offsets = [0, 0], sizes = [8, 128], strides = [1, 1]} : vector<8x192xf32> to vector<8x128xf32>
    %79 = arith.addf %77, %78 : vector<8x128xf32>
    %80 = arith.negf %79 : vector<8x128xf32>
    %81 = math.exp %80 : vector<8x128xf32>
    %cst_17 = arith.constant 1.000000e+00 : f32
    %82 = vector.broadcast %cst_17 : f32 to vector<8x128xf32>
    %83 = arith.addf %82, %81 : vector<8x128xf32>
    %84 = arith.divf %82, %83 : vector<8x128xf32>
    %85 = vector.extract_strided_slice %84 {offsets = [0, 0], sizes = [8, 64], strides = [1, 1]} : vector<8x128xf32> to vector<8x64xf32>
    %86 = vector.extract_strided_slice %84 {offsets = [0, 64], sizes = [8, 64], strides = [1, 1]} : vector<8x128xf32> to vector<8x64xf32>
    %87 = vector.extract_strided_slice %75 {offsets = [0, 128], sizes = [8, 64], strides = [1, 1]} : vector<8x192xf32> to vector<8x64xf32>
    %88 = vector.extract_strided_slice %76 {offsets = [0, 128], sizes = [8, 64], strides = [1, 1]} : vector<8x192xf32> to vector<8x64xf32>
    %89 = vector.broadcast %7 : vector<1x64xf32> to vector<8x64xf32>
    %90 = arith.addf %88, %89 : vector<8x64xf32>
    %91 = arith.mulf %85, %90 : vector<8x64xf32>
    %92 = arith.addf %87, %91 : vector<8x64xf32>
    %93 = math.tanh %92 : vector<8x64xf32>
    %94 = arith.subf %74, %93 : vector<8x64xf32>
    %95 = arith.mulf %86, %94 : vector<8x64xf32>
    %96 = arith.addf %93, %95 : vector<8x64xf32>
    %97 = vector.extract_strided_slice %5 {offsets = [32, 0], sizes = [8, 192], strides = [1, 1]} : vector<64x192xf32> to vector<8x192xf32>
    %cst_18 = arith.constant dense<0.000000e+00> : vector<8x192xf32>
    %98 = tpu.matmul %96, %6, %cst_18 {dimension_numbers = #tpu.dot_dimension_numbers<[1], [0], [0], [1], [0, 0, 1, 1], [], []>} : vector<8x64xf32>, vector<64x192xf32>, vector<8x192xf32> -> vector<8x192xf32>
    %99 = vector.extract_strided_slice %97 {offsets = [0, 0], sizes = [8, 128], strides = [1, 1]} : vector<8x192xf32> to vector<8x128xf32>
    %100 = vector.extract_strided_slice %98 {offsets = [0, 0], sizes = [8, 128], strides = [1, 1]} : vector<8x192xf32> to vector<8x128xf32>
    %101 = arith.addf %99, %100 : vector<8x128xf32>
    %102 = arith.negf %101 : vector<8x128xf32>
    %103 = math.exp %102 : vector<8x128xf32>
    %cst_19 = arith.constant 1.000000e+00 : f32
    %104 = vector.broadcast %cst_19 : f32 to vector<8x128xf32>
    %105 = arith.addf %104, %103 : vector<8x128xf32>
    %106 = arith.divf %104, %105 : vector<8x128xf32>
    %107 = vector.extract_strided_slice %106 {offsets = [0, 0], sizes = [8, 64], strides = [1, 1]} : vector<8x128xf32> to vector<8x64xf32>
    %108 = vector.extract_strided_slice %106 {offsets = [0, 64], sizes = [8, 64], strides = [1, 1]} : vector<8x128xf32> to vector<8x64xf32>
    %109 = vector.extract_strided_slice %97 {offsets = [0, 128], sizes = [8, 64], strides = [1, 1]} : vector<8x192xf32> to vector<8x64xf32>
    %110 = vector.extract_strided_slice %98 {offsets = [0, 128], sizes = [8, 64], strides = [1, 1]} : vector<8x192xf32> to vector<8x64xf32>
    %111 = vector.broadcast %7 : vector<1x64xf32> to vector<8x64xf32>
    %112 = arith.addf %110, %111 : vector<8x64xf32>
    %113 = arith.mulf %107, %112 : vector<8x64xf32>
    %114 = arith.addf %109, %113 : vector<8x64xf32>
    %115 = math.tanh %114 : vector<8x64xf32>
    %116 = arith.subf %96, %115 : vector<8x64xf32>
    %117 = arith.mulf %108, %116 : vector<8x64xf32>
    %118 = arith.addf %115, %117 : vector<8x64xf32>
    %119 = vector.extract_strided_slice %5 {offsets = [40, 0], sizes = [8, 192], strides = [1, 1]} : vector<64x192xf32> to vector<8x192xf32>
    %cst_20 = arith.constant dense<0.000000e+00> : vector<8x192xf32>
    %120 = tpu.matmul %118, %6, %cst_20 {dimension_numbers = #tpu.dot_dimension_numbers<[1], [0], [0], [1], [0, 0, 1, 1], [], []>} : vector<8x64xf32>, vector<64x192xf32>, vector<8x192xf32> -> vector<8x192xf32>
    %121 = vector.extract_strided_slice %119 {offsets = [0, 0], sizes = [8, 128], strides = [1, 1]} : vector<8x192xf32> to vector<8x128xf32>
    %122 = vector.extract_strided_slice %120 {offsets = [0, 0], sizes = [8, 128], strides = [1, 1]} : vector<8x192xf32> to vector<8x128xf32>
    %123 = arith.addf %121, %122 : vector<8x128xf32>
    %124 = arith.negf %123 : vector<8x128xf32>
    %125 = math.exp %124 : vector<8x128xf32>
    %cst_21 = arith.constant 1.000000e+00 : f32
    %126 = vector.broadcast %cst_21 : f32 to vector<8x128xf32>
    %127 = arith.addf %126, %125 : vector<8x128xf32>
    %128 = arith.divf %126, %127 : vector<8x128xf32>
    %129 = vector.extract_strided_slice %128 {offsets = [0, 0], sizes = [8, 64], strides = [1, 1]} : vector<8x128xf32> to vector<8x64xf32>
    %130 = vector.extract_strided_slice %128 {offsets = [0, 64], sizes = [8, 64], strides = [1, 1]} : vector<8x128xf32> to vector<8x64xf32>
    %131 = vector.extract_strided_slice %119 {offsets = [0, 128], sizes = [8, 64], strides = [1, 1]} : vector<8x192xf32> to vector<8x64xf32>
    %132 = vector.extract_strided_slice %120 {offsets = [0, 128], sizes = [8, 64], strides = [1, 1]} : vector<8x192xf32> to vector<8x64xf32>
    %133 = vector.broadcast %7 : vector<1x64xf32> to vector<8x64xf32>
    %134 = arith.addf %132, %133 : vector<8x64xf32>
    %135 = arith.mulf %129, %134 : vector<8x64xf32>
    %136 = arith.addf %131, %135 : vector<8x64xf32>
    %137 = math.tanh %136 : vector<8x64xf32>
    %138 = arith.subf %118, %137 : vector<8x64xf32>
    %139 = arith.mulf %130, %138 : vector<8x64xf32>
    %140 = arith.addf %137, %139 : vector<8x64xf32>
    %141 = vector.extract_strided_slice %5 {offsets = [48, 0], sizes = [8, 192], strides = [1, 1]} : vector<64x192xf32> to vector<8x192xf32>
    %cst_22 = arith.constant dense<0.000000e+00> : vector<8x192xf32>
    %142 = tpu.matmul %140, %6, %cst_22 {dimension_numbers = #tpu.dot_dimension_numbers<[1], [0], [0], [1], [0, 0, 1, 1], [], []>} : vector<8x64xf32>, vector<64x192xf32>, vector<8x192xf32> -> vector<8x192xf32>
    %143 = vector.extract_strided_slice %141 {offsets = [0, 0], sizes = [8, 128], strides = [1, 1]} : vector<8x192xf32> to vector<8x128xf32>
    %144 = vector.extract_strided_slice %142 {offsets = [0, 0], sizes = [8, 128], strides = [1, 1]} : vector<8x192xf32> to vector<8x128xf32>
    %145 = arith.addf %143, %144 : vector<8x128xf32>
    %146 = arith.negf %145 : vector<8x128xf32>
    %147 = math.exp %146 : vector<8x128xf32>
    %cst_23 = arith.constant 1.000000e+00 : f32
    %148 = vector.broadcast %cst_23 : f32 to vector<8x128xf32>
    %149 = arith.addf %148, %147 : vector<8x128xf32>
    %150 = arith.divf %148, %149 : vector<8x128xf32>
    %151 = vector.extract_strided_slice %150 {offsets = [0, 0], sizes = [8, 64], strides = [1, 1]} : vector<8x128xf32> to vector<8x64xf32>
    %152 = vector.extract_strided_slice %150 {offsets = [0, 64], sizes = [8, 64], strides = [1, 1]} : vector<8x128xf32> to vector<8x64xf32>
    %153 = vector.extract_strided_slice %141 {offsets = [0, 128], sizes = [8, 64], strides = [1, 1]} : vector<8x192xf32> to vector<8x64xf32>
    %154 = vector.extract_strided_slice %142 {offsets = [0, 128], sizes = [8, 64], strides = [1, 1]} : vector<8x192xf32> to vector<8x64xf32>
    %155 = vector.broadcast %7 : vector<1x64xf32> to vector<8x64xf32>
    %156 = arith.addf %154, %155 : vector<8x64xf32>
    %157 = arith.mulf %151, %156 : vector<8x64xf32>
    %158 = arith.addf %153, %157 : vector<8x64xf32>
    %159 = math.tanh %158 : vector<8x64xf32>
    %160 = arith.subf %140, %159 : vector<8x64xf32>
    %161 = arith.mulf %152, %160 : vector<8x64xf32>
    %162 = arith.addf %159, %161 : vector<8x64xf32>
    %163 = vector.extract_strided_slice %5 {offsets = [56, 0], sizes = [8, 192], strides = [1, 1]} : vector<64x192xf32> to vector<8x192xf32>
    %cst_24 = arith.constant dense<0.000000e+00> : vector<8x192xf32>
    %164 = tpu.matmul %162, %6, %cst_24 {dimension_numbers = #tpu.dot_dimension_numbers<[1], [0], [0], [1], [0, 0, 1, 1], [], []>} : vector<8x64xf32>, vector<64x192xf32>, vector<8x192xf32> -> vector<8x192xf32>
    %165 = vector.extract_strided_slice %163 {offsets = [0, 0], sizes = [8, 128], strides = [1, 1]} : vector<8x192xf32> to vector<8x128xf32>
    %166 = vector.extract_strided_slice %164 {offsets = [0, 0], sizes = [8, 128], strides = [1, 1]} : vector<8x192xf32> to vector<8x128xf32>
    %167 = arith.addf %165, %166 : vector<8x128xf32>
    %168 = arith.negf %167 : vector<8x128xf32>
    %169 = math.exp %168 : vector<8x128xf32>
    %cst_25 = arith.constant 1.000000e+00 : f32
    %170 = vector.broadcast %cst_25 : f32 to vector<8x128xf32>
    %171 = arith.addf %170, %169 : vector<8x128xf32>
    %172 = arith.divf %170, %171 : vector<8x128xf32>
    %173 = vector.extract_strided_slice %172 {offsets = [0, 0], sizes = [8, 64], strides = [1, 1]} : vector<8x128xf32> to vector<8x64xf32>
    %174 = vector.extract_strided_slice %172 {offsets = [0, 64], sizes = [8, 64], strides = [1, 1]} : vector<8x128xf32> to vector<8x64xf32>
    %175 = vector.extract_strided_slice %163 {offsets = [0, 128], sizes = [8, 64], strides = [1, 1]} : vector<8x192xf32> to vector<8x64xf32>
    %176 = vector.extract_strided_slice %164 {offsets = [0, 128], sizes = [8, 64], strides = [1, 1]} : vector<8x192xf32> to vector<8x64xf32>
    %177 = vector.broadcast %7 : vector<1x64xf32> to vector<8x64xf32>
    %178 = arith.addf %176, %177 : vector<8x64xf32>
    %179 = arith.mulf %173, %178 : vector<8x64xf32>
    %180 = arith.addf %175, %179 : vector<8x64xf32>
    %181 = math.tanh %180 : vector<8x64xf32>
    %182 = arith.subf %162, %181 : vector<8x64xf32>
    %183 = arith.mulf %174, %182 : vector<8x64xf32>
    %184 = arith.addf %181, %183 : vector<8x64xf32>
    %185 = tpu.concatenate %30, %52, %74, %96, %118, %140, %162, %184 in 0 : vector<8x64xf32>, vector<8x64xf32>, vector<8x64xf32>, vector<8x64xf32>, vector<8x64xf32>, vector<8x64xf32>, vector<8x64xf32>, vector<8x64xf32> -> vector<64x64xf32>
    %c0_26 = arith.constant 0 : index
    %c0_27 = arith.constant 0 : index
    %186 = vector.load %arg5[%c0_26, %c0_27] : memref<64x192xf32, #tpu.memory_space<vmem>>, vector<64x192xf32>
    %cst_28 = arith.constant dense<0.000000e+00> : vector<64x192xf32>
    %187 = tpu.matmul %185, %186, %cst_28 {dimension_numbers = #tpu.dot_dimension_numbers<[1], [0], [0], [1], [0, 0, 1, 1], [], []>} : vector<64x64xf32>, vector<64x192xf32>, vector<64x192xf32> -> vector<64x192xf32>
    %c0_29 = arith.constant 0 : index
    %c0_30 = arith.constant 0 : index
    %188 = vector.load %arg6[%c0_29, %c0_30] : memref<64x192xf32, #tpu.memory_space<vmem>>, vector<64x192xf32>
    %cst_31 = arith.constant dense<0.000000e+00> : vector<64x192xf32>
    %189 = tpu.matmul %185, %188, %cst_31 {dimension_numbers = #tpu.dot_dimension_numbers<[1], [0], [0], [1], [0, 0, 1, 1], [], []>} : vector<64x64xf32>, vector<64x192xf32>, vector<64x192xf32> -> vector<64x192xf32>
    %190 = vector.extract_strided_slice %189 {offsets = [56, 0], sizes = [8, 192], strides = [1, 1]} : vector<64x192xf32> to vector<8x192xf32>
    %191 = vector.extract_strided_slice %189 {offsets = [48, 0], sizes = [8, 192], strides = [1, 1]} : vector<64x192xf32> to vector<8x192xf32>
    %192 = vector.extract_strided_slice %189 {offsets = [40, 0], sizes = [8, 192], strides = [1, 1]} : vector<64x192xf32> to vector<8x192xf32>
    %193 = vector.extract_strided_slice %189 {offsets = [32, 0], sizes = [8, 192], strides = [1, 1]} : vector<64x192xf32> to vector<8x192xf32>
    %194 = vector.extract_strided_slice %189 {offsets = [24, 0], sizes = [8, 192], strides = [1, 1]} : vector<64x192xf32> to vector<8x192xf32>
    %195 = vector.extract_strided_slice %189 {offsets = [16, 0], sizes = [8, 192], strides = [1, 1]} : vector<64x192xf32> to vector<8x192xf32>
    %196 = vector.extract_strided_slice %189 {offsets = [8, 0], sizes = [8, 192], strides = [1, 1]} : vector<64x192xf32> to vector<8x192xf32>
    %197 = vector.extract_strided_slice %189 {offsets = [0, 0], sizes = [8, 192], strides = [1, 1]} : vector<64x192xf32> to vector<8x192xf32>
    %198 = tpu.concatenate %190, %191, %192, %193, %194, %195, %196, %197 in 0 : vector<8x192xf32>, vector<8x192xf32>, vector<8x192xf32>, vector<8x192xf32>, vector<8x192xf32>, vector<8x192xf32>, vector<8x192xf32>, vector<8x192xf32> -> vector<64x192xf32>
    %199 = arith.addf %187, %198 : vector<64x192xf32>
    %c0_32 = arith.constant 0 : index
    %c0_33 = arith.constant 0 : index
    %200 = vector.load %arg8[%c0_32, %c0_33] : memref<1x192xf32, #tpu.memory_space<vmem>>, vector<1x192xf32>
    %201 = vector.broadcast %200 : vector<1x192xf32> to vector<64x192xf32>
    %202 = arith.addf %199, %201 : vector<64x192xf32>
    %c0_34 = arith.constant 0 : index
    %c0_35 = arith.constant 0 : index
    %203 = vector.load %arg7[%c0_34, %c0_35] : memref<64x192xf32, #tpu.memory_space<vmem>>, vector<64x192xf32>
    %c0_36 = arith.constant 0 : index
    %c0_37 = arith.constant 0 : index
    %204 = vector.load %arg9[%c0_36, %c0_37] : memref<1x64xf32, #tpu.memory_space<vmem>>, vector<1x64xf32>
    %cst_38 = arith.constant 0.000000e+00 : f32
    %205 = vector.broadcast %cst_38 : f32 to vector<8x64xf32>
    %206 = vector.extract_strided_slice %202 {offsets = [0, 0], sizes = [8, 192], strides = [1, 1]} : vector<64x192xf32> to vector<8x192xf32>
    %cst_39 = arith.constant dense<0.000000e+00> : vector<8x192xf32>
    %207 = tpu.matmul %205, %203, %cst_39 {dimension_numbers = #tpu.dot_dimension_numbers<[1], [0], [0], [1], [0, 0, 1, 1], [], []>} : vector<8x64xf32>, vector<64x192xf32>, vector<8x192xf32> -> vector<8x192xf32>
    %208 = vector.extract_strided_slice %206 {offsets = [0, 0], sizes = [8, 128], strides = [1, 1]} : vector<8x192xf32> to vector<8x128xf32>
    %209 = vector.extract_strided_slice %207 {offsets = [0, 0], sizes = [8, 128], strides = [1, 1]} : vector<8x192xf32> to vector<8x128xf32>
    %210 = arith.addf %208, %209 : vector<8x128xf32>
    %211 = arith.negf %210 : vector<8x128xf32>
    %212 = math.exp %211 : vector<8x128xf32>
    %cst_40 = arith.constant 1.000000e+00 : f32
    %213 = vector.broadcast %cst_40 : f32 to vector<8x128xf32>
    %214 = arith.addf %213, %212 : vector<8x128xf32>
    %215 = arith.divf %213, %214 : vector<8x128xf32>
    %216 = vector.extract_strided_slice %215 {offsets = [0, 0], sizes = [8, 64], strides = [1, 1]} : vector<8x128xf32> to vector<8x64xf32>
    %217 = vector.extract_strided_slice %215 {offsets = [0, 64], sizes = [8, 64], strides = [1, 1]} : vector<8x128xf32> to vector<8x64xf32>
    %218 = vector.extract_strided_slice %206 {offsets = [0, 128], sizes = [8, 64], strides = [1, 1]} : vector<8x192xf32> to vector<8x64xf32>
    %219 = vector.extract_strided_slice %207 {offsets = [0, 128], sizes = [8, 64], strides = [1, 1]} : vector<8x192xf32> to vector<8x64xf32>
    %220 = vector.broadcast %204 : vector<1x64xf32> to vector<8x64xf32>
    %221 = arith.addf %219, %220 : vector<8x64xf32>
    %222 = arith.mulf %216, %221 : vector<8x64xf32>
    %223 = arith.addf %218, %222 : vector<8x64xf32>
    %224 = math.tanh %223 : vector<8x64xf32>
    %225 = arith.subf %205, %224 : vector<8x64xf32>
    %226 = arith.mulf %217, %225 : vector<8x64xf32>
    %227 = arith.addf %224, %226 : vector<8x64xf32>
    %228 = vector.extract_strided_slice %202 {offsets = [8, 0], sizes = [8, 192], strides = [1, 1]} : vector<64x192xf32> to vector<8x192xf32>
    %cst_41 = arith.constant dense<0.000000e+00> : vector<8x192xf32>
    %229 = tpu.matmul %227, %203, %cst_41 {dimension_numbers = #tpu.dot_dimension_numbers<[1], [0], [0], [1], [0, 0, 1, 1], [], []>} : vector<8x64xf32>, vector<64x192xf32>, vector<8x192xf32> -> vector<8x192xf32>
    %230 = vector.extract_strided_slice %228 {offsets = [0, 0], sizes = [8, 128], strides = [1, 1]} : vector<8x192xf32> to vector<8x128xf32>
    %231 = vector.extract_strided_slice %229 {offsets = [0, 0], sizes = [8, 128], strides = [1, 1]} : vector<8x192xf32> to vector<8x128xf32>
    %232 = arith.addf %230, %231 : vector<8x128xf32>
    %233 = arith.negf %232 : vector<8x128xf32>
    %234 = math.exp %233 : vector<8x128xf32>
    %cst_42 = arith.constant 1.000000e+00 : f32
    %235 = vector.broadcast %cst_42 : f32 to vector<8x128xf32>
    %236 = arith.addf %235, %234 : vector<8x128xf32>
    %237 = arith.divf %235, %236 : vector<8x128xf32>
    %238 = vector.extract_strided_slice %237 {offsets = [0, 0], sizes = [8, 64], strides = [1, 1]} : vector<8x128xf32> to vector<8x64xf32>
    %239 = vector.extract_strided_slice %237 {offsets = [0, 64], sizes = [8, 64], strides = [1, 1]} : vector<8x128xf32> to vector<8x64xf32>
    %240 = vector.extract_strided_slice %228 {offsets = [0, 128], sizes = [8, 64], strides = [1, 1]} : vector<8x192xf32> to vector<8x64xf32>
    %241 = vector.extract_strided_slice %229 {offsets = [0, 128], sizes = [8, 64], strides = [1, 1]} : vector<8x192xf32> to vector<8x64xf32>
    %242 = vector.broadcast %204 : vector<1x64xf32> to vector<8x64xf32>
    %243 = arith.addf %241, %242 : vector<8x64xf32>
    %244 = arith.mulf %238, %243 : vector<8x64xf32>
    %245 = arith.addf %240, %244 : vector<8x64xf32>
    %246 = math.tanh %245 : vector<8x64xf32>
    %247 = arith.subf %227, %246 : vector<8x64xf32>
    %248 = arith.mulf %239, %247 : vector<8x64xf32>
    %249 = arith.addf %246, %248 : vector<8x64xf32>
    %250 = vector.extract_strided_slice %202 {offsets = [16, 0], sizes = [8, 192], strides = [1, 1]} : vector<64x192xf32> to vector<8x192xf32>
    %cst_43 = arith.constant dense<0.000000e+00> : vector<8x192xf32>
    %251 = tpu.matmul %249, %203, %cst_43 {dimension_numbers = #tpu.dot_dimension_numbers<[1], [0], [0], [1], [0, 0, 1, 1], [], []>} : vector<8x64xf32>, vector<64x192xf32>, vector<8x192xf32> -> vector<8x192xf32>
    %252 = vector.extract_strided_slice %250 {offsets = [0, 0], sizes = [8, 128], strides = [1, 1]} : vector<8x192xf32> to vector<8x128xf32>
    %253 = vector.extract_strided_slice %251 {offsets = [0, 0], sizes = [8, 128], strides = [1, 1]} : vector<8x192xf32> to vector<8x128xf32>
    %254 = arith.addf %252, %253 : vector<8x128xf32>
    %255 = arith.negf %254 : vector<8x128xf32>
    %256 = math.exp %255 : vector<8x128xf32>
    %cst_44 = arith.constant 1.000000e+00 : f32
    %257 = vector.broadcast %cst_44 : f32 to vector<8x128xf32>
    %258 = arith.addf %257, %256 : vector<8x128xf32>
    %259 = arith.divf %257, %258 : vector<8x128xf32>
    %260 = vector.extract_strided_slice %259 {offsets = [0, 0], sizes = [8, 64], strides = [1, 1]} : vector<8x128xf32> to vector<8x64xf32>
    %261 = vector.extract_strided_slice %259 {offsets = [0, 64], sizes = [8, 64], strides = [1, 1]} : vector<8x128xf32> to vector<8x64xf32>
    %262 = vector.extract_strided_slice %250 {offsets = [0, 128], sizes = [8, 64], strides = [1, 1]} : vector<8x192xf32> to vector<8x64xf32>
    %263 = vector.extract_strided_slice %251 {offsets = [0, 128], sizes = [8, 64], strides = [1, 1]} : vector<8x192xf32> to vector<8x64xf32>
    %264 = vector.broadcast %204 : vector<1x64xf32> to vector<8x64xf32>
    %265 = arith.addf %263, %264 : vector<8x64xf32>
    %266 = arith.mulf %260, %265 : vector<8x64xf32>
    %267 = arith.addf %262, %266 : vector<8x64xf32>
    %268 = math.tanh %267 : vector<8x64xf32>
    %269 = arith.subf %249, %268 : vector<8x64xf32>
    %270 = arith.mulf %261, %269 : vector<8x64xf32>
    %271 = arith.addf %268, %270 : vector<8x64xf32>
    %272 = vector.extract_strided_slice %202 {offsets = [24, 0], sizes = [8, 192], strides = [1, 1]} : vector<64x192xf32> to vector<8x192xf32>
    %cst_45 = arith.constant dense<0.000000e+00> : vector<8x192xf32>
    %273 = tpu.matmul %271, %203, %cst_45 {dimension_numbers = #tpu.dot_dimension_numbers<[1], [0], [0], [1], [0, 0, 1, 1], [], []>} : vector<8x64xf32>, vector<64x192xf32>, vector<8x192xf32> -> vector<8x192xf32>
    %274 = vector.extract_strided_slice %272 {offsets = [0, 0], sizes = [8, 128], strides = [1, 1]} : vector<8x192xf32> to vector<8x128xf32>
    %275 = vector.extract_strided_slice %273 {offsets = [0, 0], sizes = [8, 128], strides = [1, 1]} : vector<8x192xf32> to vector<8x128xf32>
    %276 = arith.addf %274, %275 : vector<8x128xf32>
    %277 = arith.negf %276 : vector<8x128xf32>
    %278 = math.exp %277 : vector<8x128xf32>
    %cst_46 = arith.constant 1.000000e+00 : f32
    %279 = vector.broadcast %cst_46 : f32 to vector<8x128xf32>
    %280 = arith.addf %279, %278 : vector<8x128xf32>
    %281 = arith.divf %279, %280 : vector<8x128xf32>
    %282 = vector.extract_strided_slice %281 {offsets = [0, 0], sizes = [8, 64], strides = [1, 1]} : vector<8x128xf32> to vector<8x64xf32>
    %283 = vector.extract_strided_slice %281 {offsets = [0, 64], sizes = [8, 64], strides = [1, 1]} : vector<8x128xf32> to vector<8x64xf32>
    %284 = vector.extract_strided_slice %272 {offsets = [0, 128], sizes = [8, 64], strides = [1, 1]} : vector<8x192xf32> to vector<8x64xf32>
    %285 = vector.extract_strided_slice %273 {offsets = [0, 128], sizes = [8, 64], strides = [1, 1]} : vector<8x192xf32> to vector<8x64xf32>
    %286 = vector.broadcast %204 : vector<1x64xf32> to vector<8x64xf32>
    %287 = arith.addf %285, %286 : vector<8x64xf32>
    %288 = arith.mulf %282, %287 : vector<8x64xf32>
    %289 = arith.addf %284, %288 : vector<8x64xf32>
    %290 = math.tanh %289 : vector<8x64xf32>
    %291 = arith.subf %271, %290 : vector<8x64xf32>
    %292 = arith.mulf %283, %291 : vector<8x64xf32>
    %293 = arith.addf %290, %292 : vector<8x64xf32>
    %294 = vector.extract_strided_slice %202 {offsets = [32, 0], sizes = [8, 192], strides = [1, 1]} : vector<64x192xf32> to vector<8x192xf32>
    %cst_47 = arith.constant dense<0.000000e+00> : vector<8x192xf32>
    %295 = tpu.matmul %293, %203, %cst_47 {dimension_numbers = #tpu.dot_dimension_numbers<[1], [0], [0], [1], [0, 0, 1, 1], [], []>} : vector<8x64xf32>, vector<64x192xf32>, vector<8x192xf32> -> vector<8x192xf32>
    %296 = vector.extract_strided_slice %294 {offsets = [0, 0], sizes = [8, 128], strides = [1, 1]} : vector<8x192xf32> to vector<8x128xf32>
    %297 = vector.extract_strided_slice %295 {offsets = [0, 0], sizes = [8, 128], strides = [1, 1]} : vector<8x192xf32> to vector<8x128xf32>
    %298 = arith.addf %296, %297 : vector<8x128xf32>
    %299 = arith.negf %298 : vector<8x128xf32>
    %300 = math.exp %299 : vector<8x128xf32>
    %cst_48 = arith.constant 1.000000e+00 : f32
    %301 = vector.broadcast %cst_48 : f32 to vector<8x128xf32>
    %302 = arith.addf %301, %300 : vector<8x128xf32>
    %303 = arith.divf %301, %302 : vector<8x128xf32>
    %304 = vector.extract_strided_slice %303 {offsets = [0, 0], sizes = [8, 64], strides = [1, 1]} : vector<8x128xf32> to vector<8x64xf32>
    %305 = vector.extract_strided_slice %303 {offsets = [0, 64], sizes = [8, 64], strides = [1, 1]} : vector<8x128xf32> to vector<8x64xf32>
    %306 = vector.extract_strided_slice %294 {offsets = [0, 128], sizes = [8, 64], strides = [1, 1]} : vector<8x192xf32> to vector<8x64xf32>
    %307 = vector.extract_strided_slice %295 {offsets = [0, 128], sizes = [8, 64], strides = [1, 1]} : vector<8x192xf32> to vector<8x64xf32>
    %308 = vector.broadcast %204 : vector<1x64xf32> to vector<8x64xf32>
    %309 = arith.addf %307, %308 : vector<8x64xf32>
    %310 = arith.mulf %304, %309 : vector<8x64xf32>
    %311 = arith.addf %306, %310 : vector<8x64xf32>
    %312 = math.tanh %311 : vector<8x64xf32>
    %313 = arith.subf %293, %312 : vector<8x64xf32>
    %314 = arith.mulf %305, %313 : vector<8x64xf32>
    %315 = arith.addf %312, %314 : vector<8x64xf32>
    %316 = vector.extract_strided_slice %202 {offsets = [40, 0], sizes = [8, 192], strides = [1, 1]} : vector<64x192xf32> to vector<8x192xf32>
    %cst_49 = arith.constant dense<0.000000e+00> : vector<8x192xf32>
    %317 = tpu.matmul %315, %203, %cst_49 {dimension_numbers = #tpu.dot_dimension_numbers<[1], [0], [0], [1], [0, 0, 1, 1], [], []>} : vector<8x64xf32>, vector<64x192xf32>, vector<8x192xf32> -> vector<8x192xf32>
    %318 = vector.extract_strided_slice %316 {offsets = [0, 0], sizes = [8, 128], strides = [1, 1]} : vector<8x192xf32> to vector<8x128xf32>
    %319 = vector.extract_strided_slice %317 {offsets = [0, 0], sizes = [8, 128], strides = [1, 1]} : vector<8x192xf32> to vector<8x128xf32>
    %320 = arith.addf %318, %319 : vector<8x128xf32>
    %321 = arith.negf %320 : vector<8x128xf32>
    %322 = math.exp %321 : vector<8x128xf32>
    %cst_50 = arith.constant 1.000000e+00 : f32
    %323 = vector.broadcast %cst_50 : f32 to vector<8x128xf32>
    %324 = arith.addf %323, %322 : vector<8x128xf32>
    %325 = arith.divf %323, %324 : vector<8x128xf32>
    %326 = vector.extract_strided_slice %325 {offsets = [0, 0], sizes = [8, 64], strides = [1, 1]} : vector<8x128xf32> to vector<8x64xf32>
    %327 = vector.extract_strided_slice %325 {offsets = [0, 64], sizes = [8, 64], strides = [1, 1]} : vector<8x128xf32> to vector<8x64xf32>
    %328 = vector.extract_strided_slice %316 {offsets = [0, 128], sizes = [8, 64], strides = [1, 1]} : vector<8x192xf32> to vector<8x64xf32>
    %329 = vector.extract_strided_slice %317 {offsets = [0, 128], sizes = [8, 64], strides = [1, 1]} : vector<8x192xf32> to vector<8x64xf32>
    %330 = vector.broadcast %204 : vector<1x64xf32> to vector<8x64xf32>
    %331 = arith.addf %329, %330 : vector<8x64xf32>
    %332 = arith.mulf %326, %331 : vector<8x64xf32>
    %333 = arith.addf %328, %332 : vector<8x64xf32>
    %334 = math.tanh %333 : vector<8x64xf32>
    %335 = arith.subf %315, %334 : vector<8x64xf32>
    %336 = arith.mulf %327, %335 : vector<8x64xf32>
    %337 = arith.addf %334, %336 : vector<8x64xf32>
    %338 = vector.extract_strided_slice %202 {offsets = [48, 0], sizes = [8, 192], strides = [1, 1]} : vector<64x192xf32> to vector<8x192xf32>
    %cst_51 = arith.constant dense<0.000000e+00> : vector<8x192xf32>
    %339 = tpu.matmul %337, %203, %cst_51 {dimension_numbers = #tpu.dot_dimension_numbers<[1], [0], [0], [1], [0, 0, 1, 1], [], []>} : vector<8x64xf32>, vector<64x192xf32>, vector<8x192xf32> -> vector<8x192xf32>
    %340 = vector.extract_strided_slice %338 {offsets = [0, 0], sizes = [8, 128], strides = [1, 1]} : vector<8x192xf32> to vector<8x128xf32>
    %341 = vector.extract_strided_slice %339 {offsets = [0, 0], sizes = [8, 128], strides = [1, 1]} : vector<8x192xf32> to vector<8x128xf32>
    %342 = arith.addf %340, %341 : vector<8x128xf32>
    %343 = arith.negf %342 : vector<8x128xf32>
    %344 = math.exp %343 : vector<8x128xf32>
    %cst_52 = arith.constant 1.000000e+00 : f32
    %345 = vector.broadcast %cst_52 : f32 to vector<8x128xf32>
    %346 = arith.addf %345, %344 : vector<8x128xf32>
    %347 = arith.divf %345, %346 : vector<8x128xf32>
    %348 = vector.extract_strided_slice %347 {offsets = [0, 0], sizes = [8, 64], strides = [1, 1]} : vector<8x128xf32> to vector<8x64xf32>
    %349 = vector.extract_strided_slice %347 {offsets = [0, 64], sizes = [8, 64], strides = [1, 1]} : vector<8x128xf32> to vector<8x64xf32>
    %350 = vector.extract_strided_slice %338 {offsets = [0, 128], sizes = [8, 64], strides = [1, 1]} : vector<8x192xf32> to vector<8x64xf32>
    %351 = vector.extract_strided_slice %339 {offsets = [0, 128], sizes = [8, 64], strides = [1, 1]} : vector<8x192xf32> to vector<8x64xf32>
    %352 = vector.broadcast %204 : vector<1x64xf32> to vector<8x64xf32>
    %353 = arith.addf %351, %352 : vector<8x64xf32>
    %354 = arith.mulf %348, %353 : vector<8x64xf32>
    %355 = arith.addf %350, %354 : vector<8x64xf32>
    %356 = math.tanh %355 : vector<8x64xf32>
    %357 = arith.subf %337, %356 : vector<8x64xf32>
    %358 = arith.mulf %349, %357 : vector<8x64xf32>
    %359 = arith.addf %356, %358 : vector<8x64xf32>
    %360 = vector.extract_strided_slice %202 {offsets = [56, 0], sizes = [8, 192], strides = [1, 1]} : vector<64x192xf32> to vector<8x192xf32>
    %cst_53 = arith.constant dense<0.000000e+00> : vector<8x192xf32>
    %361 = tpu.matmul %359, %203, %cst_53 {dimension_numbers = #tpu.dot_dimension_numbers<[1], [0], [0], [1], [0, 0, 1, 1], [], []>} : vector<8x64xf32>, vector<64x192xf32>, vector<8x192xf32> -> vector<8x192xf32>
    %362 = vector.extract_strided_slice %360 {offsets = [0, 0], sizes = [8, 128], strides = [1, 1]} : vector<8x192xf32> to vector<8x128xf32>
    %363 = vector.extract_strided_slice %361 {offsets = [0, 0], sizes = [8, 128], strides = [1, 1]} : vector<8x192xf32> to vector<8x128xf32>
    %364 = arith.addf %362, %363 : vector<8x128xf32>
    %365 = arith.negf %364 : vector<8x128xf32>
    %366 = math.exp %365 : vector<8x128xf32>
    %cst_54 = arith.constant 1.000000e+00 : f32
    %367 = vector.broadcast %cst_54 : f32 to vector<8x128xf32>
    %368 = arith.addf %367, %366 : vector<8x128xf32>
    %369 = arith.divf %367, %368 : vector<8x128xf32>
    %370 = vector.extract_strided_slice %369 {offsets = [0, 0], sizes = [8, 64], strides = [1, 1]} : vector<8x128xf32> to vector<8x64xf32>
    %371 = vector.extract_strided_slice %369 {offsets = [0, 64], sizes = [8, 64], strides = [1, 1]} : vector<8x128xf32> to vector<8x64xf32>
    %372 = vector.extract_strided_slice %360 {offsets = [0, 128], sizes = [8, 64], strides = [1, 1]} : vector<8x192xf32> to vector<8x64xf32>
    %373 = vector.extract_strided_slice %361 {offsets = [0, 128], sizes = [8, 64], strides = [1, 1]} : vector<8x192xf32> to vector<8x64xf32>
    %374 = vector.broadcast %204 : vector<1x64xf32> to vector<8x64xf32>
    %375 = arith.addf %373, %374 : vector<8x64xf32>
    %376 = arith.mulf %370, %375 : vector<8x64xf32>
    %377 = arith.addf %372, %376 : vector<8x64xf32>
    %378 = math.tanh %377 : vector<8x64xf32>
    %379 = arith.subf %359, %378 : vector<8x64xf32>
    %380 = arith.mulf %371, %379 : vector<8x64xf32>
    %381 = arith.addf %378, %380 : vector<8x64xf32>
    %382 = tpu.concatenate %227, %249, %271, %293, %315, %337, %359, %381 in 1 : vector<8x64xf32>, vector<8x64xf32>, vector<8x64xf32>, vector<8x64xf32>, vector<8x64xf32>, vector<8x64xf32>, vector<8x64xf32>, vector<8x64xf32> -> vector<8x512xf32>
    %c0_55 = arith.constant 0 : index
    %c0_56 = arith.constant 0 : index
    %383 = vector.load %arg10[%c0_55, %c0_56] : memref<512x128xf32, #tpu.memory_space<vmem>>, vector<512x128xf32>
    %cst_57 = arith.constant dense<0.000000e+00> : vector<8x128xf32>
    %384 = tpu.matmul %382, %383, %cst_57 {dimension_numbers = #tpu.dot_dimension_numbers<[1], [0], [0], [1], [0, 0, 1, 1], [], []>} : vector<8x512xf32>, vector<512x128xf32>, vector<8x128xf32> -> vector<8x128xf32>
    %c0_58 = arith.constant 0 : index
    %c0_59 = arith.constant 0 : index
    %385 = vector.load %arg11[%c0_58, %c0_59] : memref<1x128xf32, #tpu.memory_space<vmem>>, vector<1x128xf32>
    %386 = vector.broadcast %385 : vector<1x128xf32> to vector<8x128xf32>
    %387 = arith.addf %384, %386 : vector<8x128xf32>
    %cst_60 = arith.constant 0.000000e+00 : f32
    %388 = vector.broadcast %cst_60 : f32 to vector<8x128xf32>
    %389 = arith.maximumf %387, %388 : vector<8x128xf32>
    %c0_61 = arith.constant 0 : index
    %c0_62 = arith.constant 0 : index
    %390 = vector.load %arg12[%c0_61, %c0_62] : memref<128x16xf32, #tpu.memory_space<vmem>>, vector<128x16xf32>
    %cst_63 = arith.constant dense<0.000000e+00> : vector<8x16xf32>
    %391 = tpu.matmul %389, %390, %cst_63 {dimension_numbers = #tpu.dot_dimension_numbers<[1], [0], [0], [1], [0, 0, 1, 1], [], []>} : vector<8x128xf32>, vector<128x16xf32>, vector<8x16xf32> -> vector<8x16xf32>
    %c0_64 = arith.constant 0 : index
    %c0_65 = arith.constant 0 : index
    %392 = vector.load %arg13[%c0_64, %c0_65] : memref<1x16xf32, #tpu.memory_space<vmem>>, vector<1x16xf32>
    %393 = vector.broadcast %392 : vector<1x16xf32> to vector<8x16xf32>
    %394 = arith.addf %391, %393 : vector<8x16xf32>
    %c0_66 = arith.constant 0 : index
    %c0_67 = arith.constant 0 : index
    %395 = vector.load %arg14[%c0_66, %c0_67] : memref<8x16xf32, #tpu.memory_space<vmem>>, vector<8x16xf32>
    tpu.vector_store %arg14[%c0_66, %c0_67], %394 {strides = array<i32>} : memref<8x16xf32, #tpu.memory_space<vmem>>, vector<8x16xf32>,
    return
  }
}

</mosaic_0001>

<llo_original>
// kernel: gru_model_forward.1
$region0: #{gru_model_forward.1}
  #allocation0 [shape = 'u32[]', space=smem, size = 0x4, offset = 0x4, fixed_abs, tag = 'smem constant byte address 0x4 - core index']
  #allocation1 [shape = 'u32[144,128]{1,0:T(1,128)}', space=vmem, size = 0x12000, scoped, tag = 'internal scratch']
  %s0 = inlined_call_operand.vmem [shape: f32[64,32], index: 0, kind: input, shape index: {}]
  %s1 = inlined_call_operand.hbm [shape: f32[32,192], index: 1, kind: input, shape index: {}]
  %s2 = inlined_call_operand.vmem [shape: f32[64,192], index: 2, kind: input, shape index: {}]
  %s3 = inlined_call_operand.vmem [shape: f32[1,192], index: 3, kind: input, shape index: {}]
  %s4 = inlined_call_operand.vmem [shape: f32[1,64], index: 4, kind: input, shape index: {}]
  %s5 = inlined_call_operand.hbm [shape: f32[64,192], index: 5, kind: input, shape index: {}]
  %s6 = inlined_call_operand.hbm [shape: f32[64,192], index: 6, kind: input, shape index: {}]
  %s7 = inlined_call_operand.hbm [shape: f32[64,192], index: 7, kind: input, shape index: {}]
  %s8 = inlined_call_operand.vmem [shape: f32[1,192], index: 8, kind: input, shape index: {}]
  %s9 = inlined_call_operand.vmem [shape: f32[1,64], index: 9, kind: input, shape index: {}]
  %s10 = inlined_call_operand.vmem [shape: f32[512,128], index: 10, kind: input, shape index: {}]
  %s11 = inlined_call_operand.vmem [shape: f32[1,128], index: 11, kind: input, shape index: {}]
  %s12 = inlined_call_operand.vmem [shape: f32[128,16], index: 12, kind: input, shape index: {}]
  %s13 = inlined_call_operand.vmem [shape: f32[1,16], index: 13, kind: input, shape index: {}]
  %s14 = inlined_call_operand.vmem [shape: f32[8,16], index: 14, kind: output, shape index: {}]
  %s15 = sld [smem:[#allocation0]]
  $region82: #{gru_model_forward.1} parent=0
    _
  %s17 = ssub.s32 1, %s15
  %s18 = scalar_select 0, %s17, %s15
  $region1: #{gru_model_forward.1} parent=0
    #allocation2 [shape = 'u8[32768]{0}', space=vmem, size = 0x8000, scoped, tag = 'input window, operand 1, single buffered']
    #allocation3 [shape = 's32[1]{0}', space=sflag, size = 0x4, scoped, tag = 'scoped memory for gru_model_forward.1']
    #allocation4 [shape = 'u8[65536]{0}', space=vmem, size = 0x10000, scoped, tag = 'input window, operand 5, single buffered']
    #allocation5 [shape = 's32[1]{0}', space=sflag, size = 0x4, scoped, tag = 'scoped memory for gru_model_forward.1']
    #allocation6 [shape = 'u8[65536]{0}', space=vmem, size = 0x10000, scoped, tag = 'input window, operand 6, single buffered']
    #allocation7 [shape = 'u8[65536]{0}', space=vmem, size = 0x10000, scoped, tag = 'input window, operand 7, single buffered']
    #allocation8 [shape = 's32[1]{0}', space=sflag, size = 0x4, scoped, tag = 'scoped memory for gru_model_forward.1']
    %19 = vsyncpa [#allocation3], 0
    %20 = vsyncpa [#allocation5], 0
    %21 = vsyncpa [#allocation8], 0
    // Predicated region
    $region2: #{gru_model_forward.1} parent=1 // pred_check
      _
    $region3: #{gru_model_forward.1} parent=1 // pred_check_branch
      %23 = sbr.rel (0) target = $region5
    $region4: #{gru_model_forward.1} parent=1 // pred_region
      _
    $region5: #{gru_model_forward.1} parent=1 // pred_fallthru
      _
    // Predicated region
    $region6: #{gru_model_forward.1} parent=1 // pred_check
      _
    $region7: #{gru_model_forward.1} parent=1 // pred_check_branch
      %25 = sbr.rel (0) target = $region9
    $region8: #{gru_model_forward.1} parent=1 // pred_region
      %s27 = ssub.s32 1024, 1024
      %28 = vsyncadd [#allocation3], %s27
      %s29 = sshll.u32 [#allocation2], 4
      %s30 = int_to_ptr.vmem [resolvable:$true] %s29
      %35 = dma.hbm_to_vmem [thread:$0]  %s1, 1024, %s30, [#allocation3], 256, 256, 16
    $region9: #{gru_model_forward.1} parent=1 // pred_fallthru
      _
    // Predicated region
    $region10: #{gru_model_forward.1} parent=1 // pred_check
      _
    $region11: #{gru_model_forward.1} parent=1 // pred_check_branch
      %37 = sbr.rel (0) target = $region13
    $region12: #{gru_model_forward.1} parent=1 // pred_region
      _
    $region13: #{gru_model_forward.1} parent=1 // pred_fallthru
      _
    // Predicated region
    $region14: #{gru_model_forward.1} parent=1 // pred_check
      _
    $region15: #{gru_model_forward.1} parent=1 // pred_check_branch
      %39 = sbr.rel (0) target = $region17
    $region16: #{gru_model_forward.1} parent=1 // pred_region
      _
    $region17: #{gru_model_forward.1} parent=1 // pred_fallthru
      _
    // Predicated region
    $region18: #{gru_model_forward.1} parent=1 // pred_check
      _
    $region19: #{gru_model_forward.1} parent=1 // pred_check_branch
      %41 = sbr.rel (0) target = $region21
    $region20: #{gru_model_forward.1} parent=1 // pred_region
      _
    $region21: #{gru_model_forward.1} parent=1 // pred_fallthru
      _
    // Predicated region
    $region22: #{gru_model_forward.1} parent=1 // pred_check
      _
    $region23: #{gru_model_forward.1} parent=1 // pred_check_branch
      %43 = sbr.rel (0) target = $region25
    $region24: #{gru_model_forward.1} parent=1 // pred_region
      %s45 = ssub.s32 2048, 2048
      %46 = vsyncadd [#allocation5], %s45
      %s47 = sshll.u32 [#allocation4], 4
      %s48 = int_to_ptr.vmem [resolvable:$true] %s47
      %53 = dma.hbm_to_vmem [thread:$0]  %s5, 2048, %s48, [#allocation5], 256, 256, 16
    $region25: #{gru_model_forward.1} parent=1 // pred_fallthru
      _
    // Predicated region
    $region26: #{gru_model_forward.1} parent=1 // pred_check
      _
    $region27: #{gru_model_forward.1} parent=1 // pred_check_branch
      %55 = sbr.rel (0) target = $region29
    $region28: #{gru_model_forward.1} parent=1 // pred_region
      %s57 = ssub.s32 2048, 2048
      %58 = vsyncadd [#allocation5], %s57
      %s59 = sshll.u32 [#allocation6], 4
      %s60 = int_to_ptr.vmem [resolvable:$true] %s59
      %65 = dma.hbm_to_vmem [thread:$0]  %s6, 2048, %s60, [#allocation5], 256, 256, 16
    $region29: #{gru_model_forward.1} parent=1 // pred_fallthru
      _
    // Predicated region
    $region30: #{gru_model_forward.1} parent=1 // pred_check
      _
    $region31: #{gru_model_forward.1} parent=1 // pred_check_branch
      %67 = sbr.rel (0) target = $region33
    $region32: #{gru_model_forward.1} parent=1 // pred_region
      %s69 = ssub.s32 2048, 2048
      %70 = vsyncadd [#allocation8], %s69
      %s71 = sshll.u32 [#allocation7], 4
      %s72 = int_to_ptr.vmem [resolvable:$true] %s71
      %77 = dma.hbm_to_vmem [thread:$0]  %s7, 2048, %s72, [#allocation8], 256, 256, 16
    $region33: #{gru_model_forward.1} parent=1 // pred_fallthru
      _
    // Predicated region
    $region34: #{gru_model_forward.1} parent=1 // pred_check
      _
    $region35: #{gru_model_forward.1} parent=1 // pred_check_branch
      %79 = sbr.rel (0) target = $region37
    $region36: #{gru_model_forward.1} parent=1 // pred_region
      _
    $region37: #{gru_model_forward.1} parent=1 // pred_fallthru
      _
    // Predicated region
    $region38: #{gru_model_forward.1} parent=1 // pred_check
      _
    $region39: #{gru_model_forward.1} parent=1 // pred_check_branch
      %81 = sbr.rel (0) target = $region41
    $region40: #{gru_model_forward.1} parent=1 // pred_region
      _
    $region41: #{gru_model_forward.1} parent=1 // pred_fallthru
      _
    // Predicated region
    $region42: #{gru_model_forward.1} parent=1 // pred_check
      _
    $region43: #{gru_model_forward.1} parent=1 // pred_check_branch
      %83 = sbr.rel (0) target = $region45
    $region44: #{gru_model_forward.1} parent=1 // pred_region
      _
    $region45: #{gru_model_forward.1} parent=1 // pred_fallthru
      _
    // Predicated region
    $region46: #{gru_model_forward.1} parent=1 // pred_check
      _
    $region47: #{gru_model_forward.1} parent=1 // pred_check_branch
      %85 = sbr.rel (0) target = $region49
    $region48: #{gru_model_forward.1} parent=1 // pred_region
      _
    $region49: #{gru_model_forward.1} parent=1 // pred_fallthru
      _
    // Predicated region
    $region50: #{gru_model_forward.1} parent=1 // pred_check
      _
    $region51: #{gru_model_forward.1} parent=1 // pred_check_branch
      %87 = sbr.rel (0) target = $region53
    $region52: #{gru_model_forward.1} parent=1 // pred_region
      _
    $region53: #{gru_model_forward.1} parent=1 // pred_fallthru
      _
    // Predicated region
    $region54: #{gru_model_forward.1} parent=1 // pred_check
      _
    $region55: #{gru_model_forward.1} parent=1 // pred_check_branch
      %89 = sbr.rel (0) target = $region57
    $region56: #{gru_model_forward.1} parent=1 // pred_region
      _
    $region57: #{gru_model_forward.1} parent=1 // pred_fallthru
      _
    // Predicated region
    $region58: #{gru_model_forward.1} parent=1 // pred_check
      _
    $region59: #{gru_model_forward.1} parent=1 // pred_check_branch
      %91 = sbr.rel (0) target = $region61
    $region60: #{gru_model_forward.1} parent=1 // pred_region
      %92 = dma.done [#allocation3], 1024
    $region61: #{gru_model_forward.1} parent=1 // pred_fallthru
      _
    // Predicated region
    $region62: #{gru_model_forward.1} parent=1 // pred_check
      _
    $region63: #{gru_model_forward.1} parent=1 // pred_check_branch
      %94 = sbr.rel (0) target = $region65
    $region64: #{gru_model_forward.1} parent=1 // pred_region
      %95 = dma.done [#allocation5], 2048
    $region65: #{gru_model_forward.1} parent=1 // pred_fallthru
      _
    // Predicated region
    $region66: #{gru_model_forward.1} parent=1 // pred_check
      _
    $region67: #{gru_model_forward.1} parent=1 // pred_check_branch
      %97 = sbr.rel (0) target = $region69
    $region68: #{gru_model_forward.1} parent=1 // pred_region
      %98 = dma.done [#allocation5], 2048
    $region69: #{gru_model_forward.1} parent=1 // pred_fallthru
      _
    // Predicated region
    $region70: #{gru_model_forward.1} parent=1 // pred_check
      _
    $region71: #{gru_model_forward.1} parent=1 // pred_check_branch
      %100 = sbr.rel (0) target = $region73
    $region72: #{gru_model_forward.1} parent=1 // pred_region
      %101 = dma.done [#allocation8], 2048
    $region73: #{gru_model_forward.1} parent=1 // pred_fallthru
      _
    %v102 = vld [vmem:[%s0] sm:$0xff]
    %v103 = vld [vmem:[%s0 + $0x8] sm:$0xff]
    %v104 = vld [vmem:[%s0 + $0x10] sm:$0xff]
    %v105 = vld [vmem:[%s0 + $0x18] sm:$0xff]
    %v106 = vld [vmem:[%s0 + $0x20] sm:$0xff]
    %v107 = vld [vmem:[%s0 + $0x28] sm:$0xff]
    %v108 = vld [vmem:[%s0 + $0x30] sm:$0xff]
    %v109 = vld [vmem:[%s0 + $0x38] sm:$0xff]
    %v110 = vld [vmem:[#allocation2] sm:$0xff]
    %v111 = vld [vmem:[#allocation2 + $0x8] sm:$0xff]
    %v112 = vld [vmem:[#allocation2 + $0x10] sm:$0xff]
    %v113 = vld [vmem:[#allocation2 + $0x18] sm:$0xff]
    %v114 = vld [vmem:[#allocation2 + $0x20] sm:$0xff]
    %v115 = vld [vmem:[#allocation2 + $0x28] sm:$0xff]
    %v116 = vld [vmem:[#allocation2 + $0x30] sm:$0xff]
    %v117 = vld [vmem:[#allocation2 + $0x38] sm:$0xff]
    %v118 = vld [vmem:[%s3] sm:$0x3]
    %v120 = vlaneseq
    %v121 = vshrl.u32 %v120, 7
    %v122 = vsub.s32 0, %v121
    %v123 = vrot.slane %v118, %v122
    %v124 = vlaneseq
    %v125 = vshrl.u32 %v124, 7
    %v126 = vsub.s32 1, %v125
    %v127 = vrot.slane %v118, %v126
    %vm130 = vcmask 261120
    %v132 = vsel %vm130, %v102, 0
    %v135 = vsel %vm130, %v103, 0
    %v138 = vsel %vm130, %v104, 0
    %v141 = vsel %vm130, %v105, 0
    %v144 = vsel %vm130, %v106, 0
    %v147 = vsel %vm130, %v107, 0
    %v150 = vsel %vm130, %v108, 0
    %v153 = vsel %vm130, %v109, 0
    %155 = vmatprep.subr.mxu0 0.0
    %156 = vmatpush1.msra.mxu0 0.0
    %157 = vmatprep.subr.mxu0 0.0
    %158 = vmatpush1.msra.mxu0 0.0
    %159 = vmatprep.subr.mxu0 0.0
    %160 = vmatpush1.msra.mxu0 0.0
    %161 = vmatprep.subr.mxu0 0.0
    %162 = vmatpush1.msra.mxu0 0.0
    %163 = vmatprep.subr.mxu0 0.0
    %164 = vmatpush1.msra.mxu0 0.0
    %165 = vmatprep.subr.mxu0 0.0
    %166 = vmatpush1.msra.mxu0 0.0
    %167 = vmatprep.subr.mxu0 0.0
    %168 = vmatpush1.msra.mxu0 0.0
    %169 = vmatprep.subr.mxu0 0.0
    %170 = vmatpush1.msra.mxu0 0.0
    %171 = vmatprep.subr.mxu0 0.0
    %172 = vmatpush1.msra.mxu0 0.0
    %173 = vmatprep.subr.mxu0 0.0
    %174 = vmatpush1.msra.mxu0 0.0
    %175 = vmatprep.subr.mxu0 0.0
    %176 = vmatpush1.msra.mxu0 0.0
    %177 = vmatprep.subr.mxu0 0.0
    %178 = vmatpush1.msra.mxu0 0.0
    %179 = vmatprep.subr.mxu0 %v117
    %180 = vmatpush1.msra.mxu0 %v116
    %181 = vmatprep.subr.mxu0 %v115
    %182 = vmatpush1.msra.mxu0 %v114
    %183 = vmatprep.subr.mxu0 %v113
    %184 = vmatpush1.msra.mxu0 %v112
    %185 = vmatprep.subr.mxu0 %v111
    %186 = vmatpush1.msra.mxu0 %v110
    %187 = vmatprep.subr.mxu0 0.0
    %188 = vmatpush2.msra.mxu0 0.0
    %189 = vmatprep.subr.mxu0 0.0
    %190 = vmatpush2.msra.mxu0 0.0
    %191 = vmatprep.subr.mxu0 0.0
    %192 = vmatpush2.msra.mxu0 0.0
    %193 = vmatprep.subr.mxu0 0.0
    %194 = vmatpush2.msra.mxu0 0.0
    %195 = vmatprep.subr.mxu0 0.0
    %196 = vmatpush2.msra.mxu0 0.0
    %197 = vmatprep.subr.mxu0 0.0
    %198 = vmatpush2.msra.mxu0 0.0
    %199 = vmatprep.subr.mxu0 0.0
    %200 = vmatpush2.msra.mxu0 0.0
    %201 = vmatprep.subr.mxu0 0.0
    %202 = vmatpush2.msra.mxu0 0.0
    %203 = vmatprep.subr.mxu0 0.0
    %204 = vmatpush2.msra.mxu0 0.0
    %205 = vmatprep.subr.mxu0 0.0
    %206 = vmatpush2.msra.mxu0 0.0
    %207 = vmatprep.subr.mxu0 0.0
    %208 = vmatpush2.msra.mxu0 0.0
    %209 = vmatprep.subr.mxu0 0.0
    %210 = vmatpush2.msra.mxu0 0.0
    %211 = vmatprep.subr.mxu0 0.0
    %212 = vmatpush2.msra.mxu0 0.0
    %213 = vmatprep.subr.mxu0 0.0
    %214 = vmatpush2.msra.mxu0 0.0
    %215 = vmatprep.subr.mxu0 0.0
    %216 = vmatpush2.msra.mxu0 0.0
    %217 = vmatprep.subr.mxu0 0.0
    %218 = vmatpush2.msra.mxu0 0.0
    %219 = vmatprep.mubr.f32.mxu0 0.0
    %220 = vmatmul.mubr.f32.gmra.mxu0 %v132
    %v221 = vpop.f32.mrf.mxu0
    %v222 = vadd.f32 %v123, %v221
    %v223 = vpop.f32.mrf.mxu0
    %v224 = vadd.f32 %v127, %v223
    %225 = vmatprep.mubr.f32.mxu0 0.0
    %226 = vmatmul.mubr.f32.gmra.mxu0 %v135
    %v227 = vpop.f32.mrf.mxu0
    %v228 = vadd.f32 %v123, %v227
    %v229 = vpop.f32.mrf.mxu0
    %v230 = vadd.f32 %v127, %v229
    %231 = vmatprep.mubr.f32.mxu0 0.0
    %232 = vmatmul.mubr.f32.gmra.mxu0 %v138
    %v233 = vpop.f32.mrf.mxu0
    %v234 = vadd.f32 %v123, %v233
    %v235 = vpop.f32.mrf.mxu0
    %v236 = vadd.f32 %v127, %v235
    %237 = vmatprep.mubr.f32.mxu0 0.0
    %238 = vmatmul.mubr.f32.gmra.mxu0 %v141
    %v239 = vpop.f32.mrf.mxu0
    %v240 = vadd.f32 %v123, %v239
    %v241 = vpop.f32.mrf.mxu0
    %v242 = vadd.f32 %v127, %v241
    %243 = vmatprep.mubr.f32.mxu0 0.0
    %244 = vmatmul.mubr.f32.gmra.mxu0 %v144
    %v245 = vpop.f32.mrf.mxu0
    %v246 = vadd.f32 %v123, %v245
    %v247 = vpop.f32.mrf.mxu0
    %v248 = vadd.f32 %v127, %v247
    %249 = vmatprep.mubr.f32.mxu0 0.0
    %250 = vmatmul.mubr.f32.gmra.mxu0 %v147
    %v251 = vpop.f32.mrf.mxu0
    %v252 = vadd.f32 %v123, %v251
    %v253 = vpop.f32.mrf.mxu0
    %v254 = vadd.f32 %v127, %v253
    %255 = vmatprep.mubr.f32.mxu0 0.0
    %256 = vmatmul.mubr.f32.gmra.mxu0 %v150
    %v257 = vpop.f32.mrf.mxu0
    %v258 = vadd.f32 %v123, %v257
    %v259 = vpop.f32.mrf.mxu0
    %v260 = vadd.f32 %v127, %v259
    %261 = vmatprep.mubr.f32.mxu0 0.0
    %262 = vmatmul.mubr.f32.gmra.mxu0 %v153
    %v263 = vpop.f32.mrf.mxu0
    %v264 = vadd.f32 %v123, %v263
    %v265 = vpop.f32.mrf.mxu0
    %v266 = vadd.f32 %v127, %v265
    %267 = vdwg.mxu0
    %v268 = vld [vmem:[%s2] sm:$0xff]
    %v269 = vld [vmem:[%s2 + $0x8] sm:$0xff]
    %v270 = vld [vmem:[%s2 + $0x10] sm:$0xff]
    %v271 = vld [vmem:[%s2 + $0x18] sm:$0xff]
    %v272 = vld [vmem:[%s2 + $0x20] sm:$0xff]
    %v273 = vld [vmem:[%s2 + $0x28] sm:$0xff]
    %v274 = vld [vmem:[%s2 + $0x30] sm:$0xff]
    %v275 = vld [vmem:[%s2 + $0x38] sm:$0xff]
    %v276 = vld [vmem:[%s2 + $0x40] sm:$0xff]
    %v277 = vld [vmem:[%s2 + $0x48] sm:$0xff]
    %v278 = vld [vmem:[%s2 + $0x50] sm:$0xff]
    %v279 = vld [vmem:[%s2 + $0x58] sm:$0xff]
    %v280 = vld [vmem:[%s2 + $0x60] sm:$0xff]
    %v281 = vld [vmem:[%s2 + $0x68] sm:$0xff]
    %v282 = vld [vmem:[%s2 + $0x70] sm:$0xff]
    %v283 = vld [vmem:[%s2 + $0x78] sm:$0xff]
    %v284 = vld [vmem:[%s4] sm:$0x1]
    %vm285 = vcmask 523264
    %v287 = vsel %vm285, 0.0, 0
    %289 = vmatprep.subr.mxu0 0.0
    %290 = vmatpush1.msra.mxu0 0.0
    %291 = vmatprep.subr.mxu0 0.0
    %292 = vmatpush1.msra.mxu0 0.0
    %293 = vmatprep.subr.mxu0 0.0
    %294 = vmatpush1.msra.mxu0 0.0
    %295 = vmatprep.subr.mxu0 0.0
    %296 = vmatpush1.msra.mxu0 0.0
    %297 = vmatprep.subr.mxu0 0.0
    %298 = vmatpush1.msra.mxu0 0.0
    %299 = vmatprep.subr.mxu0 0.0
    %300 = vmatpush1.msra.mxu0 0.0
    %301 = vmatprep.subr.mxu0 0.0
    %302 = vmatpush1.msra.mxu0 0.0
    %303 = vmatprep.subr.mxu0 0.0
    %304 = vmatpush1.msra.mxu0 0.0
    %305 = vmatprep.subr.mxu0 %v283
    %306 = vmatpush1.msra.mxu0 %v282
    %307 = vmatprep.subr.mxu0 %v281
    %308 = vmatpush1.msra.mxu0 %v280
    %309 = vmatprep.subr.mxu0 %v279
    %310 = vmatpush1.msra.mxu0 %v278
    %311 = vmatprep.subr.mxu0 %v277
    %312 = vmatpush1.msra.mxu0 %v276
    %313 = vmatprep.subr.mxu0 %v275
    %314 = vmatpush1.msra.mxu0 %v274
    %315 = vmatprep.subr.mxu0 %v273
    %316 = vmatpush1.msra.mxu0 %v272
    %317 = vmatprep.subr.mxu0 %v271
    %318 = vmatpush1.msra.mxu0 %v270
    %319 = vmatprep.subr.mxu0 %v269
    %320 = vmatpush1.msra.mxu0 %v268
    %321 = vmatprep.subr.mxu0 0.0
    %322 = vmatpush2.msra.mxu0 0.0
    %323 = vmatprep.subr.mxu0 0.0
    %324 = vmatpush2.msra.mxu0 0.0
    %325 = vmatprep.subr.mxu0 0.0
    %326 = vmatpush2.msra.mxu0 0.0
    %327 = vmatprep.subr.mxu0 0.0
    %328 = vmatpush2.msra.mxu0 0.0
    %329 = vmatprep.subr.mxu0 0.0
    %330 = vmatpush2.msra.mxu0 0.0
    %331 = vmatprep.subr.mxu0 0.0
    %332 = vmatpush2.msra.mxu0 0.0
    %333 = vmatprep.subr.mxu0 0.0
    %334 = vmatpush2.msra.mxu0 0.0
    %335 = vmatprep.subr.mxu0 0.0
    %336 = vmatpush2.msra.mxu0 0.0
    %337 = vmatprep.subr.mxu0 0.0
    %338 = vmatpush2.msra.mxu0 0.0
    %339 = vmatprep.subr.mxu0 0.0
    %340 = vmatpush2.msra.mxu0 0.0
    %341 = vmatprep.subr.mxu0 0.0
    %342 = vmatpush2.msra.mxu0 0.0
    %343 = vmatprep.subr.mxu0 0.0
    %344 = vmatpush2.msra.mxu0 0.0
    %345 = vmatprep.subr.mxu0 0.0
    %346 = vmatpush2.msra.mxu0 0.0
    %347 = vmatprep.subr.mxu0 0.0
    %348 = vmatpush2.msra.mxu0 0.0
    %349 = vmatprep.subr.mxu0 0.0
    %350 = vmatpush2.msra.mxu0 0.0
    %351 = vmatprep.subr.mxu0 0.0
    %352 = vmatpush2.msra.mxu0 0.0
    %353 = vmatprep.mubr.f32.mxu0 0.0
    %354 = vmatmul.mubr.f32.gmra.mxu0 %v287
    %v355 = vpop.f32.mrf.mxu0
    %v356 = vadd.f32 0.0, %v355
    %v357 = vpop.f32.mrf.mxu0
    %v358 = vadd.f32 0.0, %v357
    %359 = vdwg.mxu0
    %v360 = vadd.f32 %v222, %v356
    %v361 = vxor.u32 %v360, 2147483648
    %v362 = vmul.f32 %v361, 1.442695
    %v363 = vpow.pop %v362
    %v364 = vadd.f32 %v363, 1.0
    %v365 = vrcp.pop %v364
    %v366 = vmul.f32 1.0, %v365
    %v368 = vlaneseq
    %v369 = vshrl.u32 %v368, 7
    %v370 = vsub.s32 0, %v369
    %v371 = vrot.slane %v284, %v370
    %v373 = vadd.f32 %v358, %v371
    %v374 = vmul.f32 %v366, %v373
    %v375 = vadd.f32 %v224, %v374
    %v376 = vtanh.pop %v375
    %v377 = vsub.f32 0.0, %v376
    %379 = vrot.lane.b32.xlu0 %v377, 64
    %v380 = vpop.permute.xlu0 %379
    %v382 = vmul.f32 %v366, %v380
    %384 = vrot.lane.b32.xlu0 %v382, 64
    %v385 = vpop.permute.xlu0 %384
    %v387 = vadd.f32 %v376, %v385
    %v389 = vsel %vm285, %v387, 0
    %391 = vmatprep.subr.mxu0 0.0
    %392 = vmatpush1.msra.mxu0 0.0
    %393 = vmatprep.subr.mxu0 0.0
    %394 = vmatpush1.msra.mxu0 0.0
    %395 = vmatprep.subr.mxu0 0.0
    %396 = vmatpush1.msra.mxu0 0.0
    %397 = vmatprep.subr.mxu0 0.0
    %398 = vmatpush1.msra.mxu0 0.0
    %399 = vmatprep.subr.mxu0 0.0
    %400 = vmatpush1.msra.mxu0 0.0
    %401 = vmatprep.subr.mxu0 0.0
    %402 = vmatpush1.msra.mxu0 0.0
    %403 = vmatprep.subr.mxu0 0.0
    %404 = vmatpush1.msra.mxu0 0.0
    %405 = vmatprep.subr.mxu0 0.0
    %406 = vmatpush1.msra.mxu0 0.0
    %407 = vmatprep.subr.mxu0 %v283
    %408 = vmatpush1.msra.mxu0 %v282
    %409 = vmatprep.subr.mxu0 %v281
    %410 = vmatpush1.msra.mxu0 %v280
    %411 = vmatprep.subr.mxu0 %v279
    %412 = vmatpush1.msra.mxu0 %v278
    %413 = vmatprep.subr.mxu0 %v277
    %414 = vmatpush1.msra.mxu0 %v276
    %415 = vmatprep.subr.mxu0 %v275
    %416 = vmatpush1.msra.mxu0 %v274
    %417 = vmatprep.subr.mxu0 %v273
    %418 = vmatpush1.msra.mxu0 %v272
    %419 = vmatprep.subr.mxu0 %v271
    %420 = vmatpush1.msra.mxu0 %v270
    %421 = vmatprep.subr.mxu0 %v269
    %422 = vmatpush1.msra.mxu0 %v268
    %423 = vmatprep.subr.mxu0 0.0
    %424 = vmatpush2.msra.mxu0 0.0
    %425 = vmatprep.subr.mxu0 0.0
    %426 = vmatpush2.msra.mxu0 0.0
    %427 = vmatprep.subr.mxu0 0.0
    %428 = vmatpush2.msra.mxu0 0.0
    %429 = vmatprep.subr.mxu0 0.0
    %430 = vmatpush2.msra.mxu0 0.0
    %431 = vmatprep.subr.mxu0 0.0
    %432 = vmatpush2.msra.mxu0 0.0
    %433 = vmatprep.subr.mxu0 0.0
    %434 = vmatpush2.msra.mxu0 0.0
    %435 = vmatprep.subr.mxu0 0.0
    %436 = vmatpush2.msra.mxu0 0.0
    %437 = vmatprep.subr.mxu0 0.0
    %438 = vmatpush2.msra.mxu0 0.0
    %439 = vmatprep.subr.mxu0 0.0
    %440 = vmatpush2.msra.mxu0 0.0
    %441 = vmatprep.subr.mxu0 0.0
    %442 = vmatpush2.msra.mxu0 0.0
    %443 = vmatprep.subr.mxu0 0.0
    %444 = vmatpush2.msra.mxu0 0.0
    %445 = vmatprep.subr.mxu0 0.0
    %446 = vmatpush2.msra.mxu0 0.0
    %447 = vmatprep.subr.mxu0 0.0
    %448 = vmatpush2.msra.mxu0 0.0
    %449 = vmatprep.subr.mxu0 0.0
    %450 = vmatpush2.msra.mxu0 0.0
    %451 = vmatprep.subr.mxu0 0.0
    %452 = vmatpush2.msra.mxu0 0.0
    %453 = vmatprep.subr.mxu0 0.0
    %454 = vmatpush2.msra.mxu0 0.0
    %455 = vmatprep.mubr.f32.mxu0 0.0
    %456 = vmatmul.mubr.f32.gmra.mxu0 %v389
    %v457 = vpop.f32.mrf.mxu0
    %v458 = vadd.f32 0.0, %v457
    %v459 = vpop.f32.mrf.mxu0
    %v460 = vadd.f32 0.0, %v459
    %461 = vdwg.mxu0
    %v462 = vadd.f32 %v228, %v458
    %v463 = vxor.u32 %v462, 2147483648
    %v464 = vmul.f32 %v463, 1.442695
    %v465 = vpow.pop %v464
    %v466 = vadd.f32 %v465, 1.0
    %v467 = vrcp.pop %v466
    %v468 = vmul.f32 1.0, %v467
    %v469 = vadd.f32 %v460, %v371
    %v470 = vmul.f32 %v468, %v469
    %v471 = vadd.f32 %v230, %v470
    %v472 = vtanh.pop %v471
    %v473 = vsub.f32 %v387, %v472
    %475 = vrot.lane.b32.xlu0 %v473, 64
    %v476 = vpop.permute.xlu0 %475
    %v478 = vmul.f32 %v468, %v476
    %480 = vrot.lane.b32.xlu0 %v478, 64
    %v481 = vpop.permute.xlu0 %480
    %v483 = vadd.f32 %v472, %v481
    %v485 = vsel %vm285, %v483, 0
    %487 = vmatprep.subr.mxu0 0.0
    %488 = vmatpush1.msra.mxu0 0.0
    %489 = vmatprep.subr.mxu0 0.0
    %490 = vmatpush1.msra.mxu0 0.0
    %491 = vmatprep.subr.mxu0 0.0
    %492 = vmatpush1.msra.mxu0 0.0
    %493 = vmatprep.subr.mxu0 0.0
    %494 = vmatpush1.msra.mxu0 0.0
    %495 = vmatprep.subr.mxu0 0.0
    %496 = vmatpush1.msra.mxu0 0.0
    %497 = vmatprep.subr.mxu0 0.0
    %498 = vmatpush1.msra.mxu0 0.0
    %499 = vmatprep.subr.mxu0 0.0
    %500 = vmatpush1.msra.mxu0 0.0
    %501 = vmatprep.subr.mxu0 0.0
    %502 = vmatpush1.msra.mxu0 0.0
    %503 = vmatprep.subr.mxu0 %v283
    %504 = vmatpush1.msra.mxu0 %v282
    %505 = vmatprep.subr.mxu0 %v281
    %506 = vmatpush1.msra.mxu0 %v280
    %507 = vmatprep.subr.mxu0 %v279
    %508 = vmatpush1.msra.mxu0 %v278
    %509 = vmatprep.subr.mxu0 %v277
    %510 = vmatpush1.msra.mxu0 %v276
    %511 = vmatprep.subr.mxu0 %v275
    %512 = vmatpush1.msra.mxu0 %v274
    %513 = vmatprep.subr.mxu0 %v273
    %514 = vmatpush1.msra.mxu0 %v272
    %515 = vmatprep.subr.mxu0 %v271
    %516 = vmatpush1.msra.mxu0 %v270
    %517 = vmatprep.subr.mxu0 %v269
    %518 = vmatpush1.msra.mxu0 %v268
    %519 = vmatprep.subr.mxu0 0.0
    %520 = vmatpush2.msra.mxu0 0.0
    %521 = vmatprep.subr.mxu0 0.0
    %522 = vmatpush2.msra.mxu0 0.0
    %523 = vmatprep.subr.mxu0 0.0
    %524 = vmatpush2.msra.mxu0 0.0
    %525 = vmatprep.subr.mxu0 0.0
    %526 = vmatpush2.msra.mxu0 0.0
    %527 = vmatprep.subr.mxu0 0.0
    %528 = vmatpush2.msra.mxu0 0.0
    %529 = vmatprep.subr.mxu0 0.0
    %530 = vmatpush2.msra.mxu0 0.0
    %531 = vmatprep.subr.mxu0 0.0
    %532 = vmatpush2.msra.mxu0 0.0
    %533 = vmatprep.subr.mxu0 0.0
    %534 = vmatpush2.msra.mxu0 0.0
    %535 = vmatprep.subr.mxu0 0.0
    %536 = vmatpush2.msra.mxu0 0.0
    %537 = vmatprep.subr.mxu0 0.0
    %538 = vmatpush2.msra.mxu0 0.0
    %539 = vmatprep.subr.mxu0 0.0
    %540 = vmatpush2.msra.mxu0 0.0
    %541 = vmatprep.subr.mxu0 0.0
    %542 = vmatpush2.msra.mxu0 0.0
    %543 = vmatprep.subr.mxu0 0.0
    %544 = vmatpush2.msra.mxu0 0.0
    %545 = vmatprep.subr.mxu0 0.0
    %546 = vmatpush2.msra.mxu0 0.0
    %547 = vmatprep.subr.mxu0 0.0
    %548 = vmatpush2.msra.mxu0 0.0
    %549 = vmatprep.subr.mxu0 0.0
    %550 = vmatpush2.msra.mxu0 0.0
    %551 = vmatprep.mubr.f32.mxu0 0.0
    %552 = vmatmul.mubr.f32.gmra.mxu0 %v485
    %v553 = vpop.f32.mrf.mxu0
    %v554 = vadd.f32 0.0, %v553
    %v555 = vpop.f32.mrf.mxu0
    %v556 = vadd.f32 0.0, %v555
    %557 = vdwg.mxu0
    %v558 = vadd.f32 %v234, %v554
    %v559 = vxor.u32 %v558, 2147483648
    %v560 = vmul.f32 %v559, 1.442695
    %v561 = vpow.pop %v560
    %v562 = vadd.f32 %v561, 1.0
    %v563 = vrcp.pop %v562
    %v564 = vmul.f32 1.0, %v563
    %v565 = vadd.f32 %v556, %v371
    %v566 = vmul.f32 %v564, %v565
    %v567 = vadd.f32 %v236, %v566
    %v568 = vtanh.pop %v567
    %v569 = vsub.f32 %v483, %v568
    %571 = vrot.lane.b32.xlu0 %v569, 64
    %v572 = vpop.permute.xlu0 %571
    %v574 = vmul.f32 %v564, %v572
    %576 = vrot.lane.b32.xlu0 %v574, 64
    %v577 = vpop.permute.xlu0 %576
    %v579 = vadd.f32 %v568, %v577
    %v581 = vsel %vm285, %v579, 0
    %583 = vmatprep.subr.mxu0 0.0
    %584 = vmatpush1.msra.mxu0 0.0
    %585 = vmatprep.subr.mxu0 0.0
    %586 = vmatpush1.msra.mxu0 0.0
    %587 = vmatprep.subr.mxu0 0.0
    %588 = vmatpush1.msra.mxu0 0.0
    %589 = vmatprep.subr.mxu0 0.0
    %590 = vmatpush1.msra.mxu0 0.0
    %591 = vmatprep.subr.mxu0 0.0
    %592 = vmatpush1.msra.mxu0 0.0
    %593 = vmatprep.subr.mxu0 0.0
    %594 = vmatpush1.msra.mxu0 0.0
    %595 = vmatprep.subr.mxu0 0.0
    %596 = vmatpush1.msra.mxu0 0.0
    %597 = vmatprep.subr.mxu0 0.0
    %598 = vmatpush1.msra.mxu0 0.0
    %599 = vmatprep.subr.mxu0 %v283
    %600 = vmatpush1.msra.mxu0 %v282
    %601 = vmatprep.subr.mxu0 %v281
    %602 = vmatpush1.msra.mxu0 %v280
    %603 = vmatprep.subr.mxu0 %v279
    %604 = vmatpush1.msra.mxu0 %v278
    %605 = vmatprep.subr.mxu0 %v277
    %606 = vmatpush1.msra.mxu0 %v276
    %607 = vmatprep.subr.mxu0 %v275
    %608 = vmatpush1.msra.mxu0 %v274
    %609 = vmatprep.subr.mxu0 %v273
    %610 = vmatpush1.msra.mxu0 %v272
    %611 = vmatprep.subr.mxu0 %v271
    %612 = vmatpush1.msra.mxu0 %v270
    %613 = vmatprep.subr.mxu0 %v269
    %614 = vmatpush1.msra.mxu0 %v268
    %615 = vmatprep.subr.mxu0 0.0
    %616 = vmatpush2.msra.mxu0 0.0
    %617 = vmatprep.subr.mxu0 0.0
    %618 = vmatpush2.msra.mxu0 0.0
    %619 = vmatprep.subr.mxu0 0.0
    %620 = vmatpush2.msra.mxu0 0.0
    %621 = vmatprep.subr.mxu0 0.0
    %622 = vmatpush2.msra.mxu0 0.0
    %623 = vmatprep.subr.mxu0 0.0
    %624 = vmatpush2.msra.mxu0 0.0
    %625 = vmatprep.subr.mxu0 0.0
    %626 = vmatpush2.msra.mxu0 0.0
    %627 = vmatprep.subr.mxu0 0.0
    %628 = vmatpush2.msra.mxu0 0.0
    %629 = vmatprep.subr.mxu0 0.0
    %630 = vmatpush2.msra.mxu0 0.0
    %631 = vmatprep.subr.mxu0 0.0
    %632 = vmatpush2.msra.mxu0 0.0
    %633 = vmatprep.subr.mxu0 0.0
    %634 = vmatpush2.msra.mxu0 0.0
    %635 = vmatprep.subr.mxu0 0.0
    %636 = vmatpush2.msra.mxu0 0.0
    %637 = vmatprep.subr.mxu0 0.0
    %638 = vmatpush2.msra.mxu0 0.0
    %639 = vmatprep.subr.mxu0 0.0
    %640 = vmatpush2.msra.mxu0 0.0
    %641 = vmatprep.subr.mxu0 0.0
    %642 = vmatpush2.msra.mxu0 0.0
    %643 = vmatprep.subr.mxu0 0.0
    %644 = vmatpush2.msra.mxu0 0.0
    %645 = vmatprep.subr.mxu0 0.0
    %646 = vmatpush2.msra.mxu0 0.0
    %647 = vmatprep.mubr.f32.mxu0 0.0
    %648 = vmatmul.mubr.f32.gmra.mxu0 %v581
    %v649 = vpop.f32.mrf.mxu0
    %v650 = vadd.f32 0.0, %v649
    %v651 = vpop.f32.mrf.mxu0
    %v652 = vadd.f32 0.0, %v651
    %653 = vdwg.mxu0
    %v654 = vadd.f32 %v240, %v650
    %v655 = vxor.u32 %v654, 2147483648
    %v656 = vmul.f32 %v655, 1.442695
    %v657 = vpow.pop %v656
    %v658 = vadd.f32 %v657, 1.0
    %v659 = vrcp.pop %v658
    %v660 = vmul.f32 1.0, %v659
    %v661 = vadd.f32 %v652, %v371
    %v662 = vmul.f32 %v660, %v661
    %v663 = vadd.f32 %v242, %v662
    %v664 = vtanh.pop %v663
    %v665 = vsub.f32 %v579, %v664
    %667 = vrot.lane.b32.xlu0 %v665, 64
    %v668 = vpop.permute.xlu0 %667
    %v670 = vmul.f32 %v660, %v668
    %672 = vrot.lane.b32.xlu0 %v670, 64
    %v673 = vpop.permute.xlu0 %672
    %v675 = vadd.f32 %v664, %v673
    %v677 = vsel %vm285, %v675, 0
    %679 = vmatprep.subr.mxu0 0.0
    %680 = vmatpush1.msra.mxu0 0.0
    %681 = vmatprep.subr.mxu0 0.0
    %682 = vmatpush1.msra.mxu0 0.0
    %683 = vmatprep.subr.mxu0 0.0
    %684 = vmatpush1.msra.mxu0 0.0
    %685 = vmatprep.subr.mxu0 0.0
    %686 = vmatpush1.msra.mxu0 0.0
    %687 = vmatprep.subr.mxu0 0.0
    %688 = vmatpush1.msra.mxu0 0.0
    %689 = vmatprep.subr.mxu0 0.0
    %690 = vmatpush1.msra.mxu0 0.0
    %691 = vmatprep.subr.mxu0 0.0
    %692 = vmatpush1.msra.mxu0 0.0
    %693 = vmatprep.subr.mxu0 0.0
    %694 = vmatpush1.msra.mxu0 0.0
    %695 = vmatprep.subr.mxu0 %v283
    %696 = vmatpush1.msra.mxu0 %v282
    %697 = vmatprep.subr.mxu0 %v281
    %698 = vmatpush1.msra.mxu0 %v280
    %699 = vmatprep.subr.mxu0 %v279
    %700 = vmatpush1.msra.mxu0 %v278
    %701 = vmatprep.subr.mxu0 %v277
    %702 = vmatpush1.msra.mxu0 %v276
    %703 = vmatprep.subr.mxu0 %v275
    %704 = vmatpush1.msra.mxu0 %v274
    %705 = vmatprep.subr.mxu0 %v273
    %706 = vmatpush1.msra.mxu0 %v272
    %707 = vmatprep.subr.mxu0 %v271
    %708 = vmatpush1.msra.mxu0 %v270
    %709 = vmatprep.subr.mxu0 %v269
    %710 = vmatpush1.msra.mxu0 %v268
    %711 = vmatprep.subr.mxu0 0.0
    %712 = vmatpush2.msra.mxu0 0.0
    %713 = vmatprep.subr.mxu0 0.0
    %714 = vmatpush2.msra.mxu0 0.0
    %715 = vmatprep.subr.mxu0 0.0
    %716 = vmatpush2.msra.mxu0 0.0
    %717 = vmatprep.subr.mxu0 0.0
    %718 = vmatpush2.msra.mxu0 0.0
    %719 = vmatprep.subr.mxu0 0.0
    %720 = vmatpush2.msra.mxu0 0.0
    %721 = vmatprep.subr.mxu0 0.0
    %722 = vmatpush2.msra.mxu0 0.0
    %723 = vmatprep.subr.mxu0 0.0
    %724 = vmatpush2.msra.mxu0 0.0
    %725 = vmatprep.subr.mxu0 0.0
    %726 = vmatpush2.msra.mxu0 0.0
    %727 = vmatprep.subr.mxu0 0.0
    %728 = vmatpush2.msra.mxu0 0.0
    %729 = vmatprep.subr.mxu0 0.0
    %730 = vmatpush2.msra.mxu0 0.0
    %731 = vmatprep.subr.mxu0 0.0
    %732 = vmatpush2.msra.mxu0 0.0
    %733 = vmatprep.subr.mxu0 0.0
    %734 = vmatpush2.msra.mxu0 0.0
    %735 = vmatprep.subr.mxu0 0.0
    %736 = vmatpush2.msra.mxu0 0.0
    %737 = vmatprep.subr.mxu0 0.0
    %738 = vmatpush2.msra.mxu0 0.0
    %739 = vmatprep.subr.mxu0 0.0
    %740 = vmatpush2.msra.mxu0 0.0
    %741 = vmatprep.subr.mxu0 0.0
    %742 = vmatpush2.msra.mxu0 0.0
    %743 = vmatprep.mubr.f32.mxu0 0.0
    %744 = vmatmul.mubr.f32.gmra.mxu0 %v677
    %v745 = vpop.f32.mrf.mxu0
    %v746 = vadd.f32 0.0, %v745
    %v747 = vpop.f32.mrf.mxu0
    %v748 = vadd.f32 0.0, %v747
    %749 = vdwg.mxu0
    %v750 = vadd.f32 %v246, %v746
    %v751 = vxor.u32 %v750, 2147483648
    %v752 = vmul.f32 %v751, 1.442695
    %v753 = vpow.pop %v752
    %v754 = vadd.f32 %v753, 1.0
    %v755 = vrcp.pop %v754
    %v756 = vmul.f32 1.0, %v755
    %v757 = vadd.f32 %v748, %v371
    %v758 = vmul.f32 %v756, %v757
    %v759 = vadd.f32 %v248, %v758
    %v760 = vtanh.pop %v759
    %v761 = vsub.f32 %v675, %v760
    %763 = vrot.lane.b32.xlu0 %v761, 64
    %v764 = vpop.permute.xlu0 %763
    %v766 = vmul.f32 %v756, %v764
    %768 = vrot.lane.b32.xlu0 %v766, 64
    %v769 = vpop.permute.xlu0 %768
    %v771 = vadd.f32 %v760, %v769
    %v773 = vsel %vm285, %v771, 0
    %775 = vmatprep.subr.mxu0 0.0
    %776 = vmatpush1.msra.mxu0 0.0
    %777 = vmatprep.subr.mxu0 0.0
    %778 = vmatpush1.msra.mxu0 0.0
    %779 = vmatprep.subr.mxu0 0.0
    %780 = vmatpush1.msra.mxu0 0.0
    %781 = vmatprep.subr.mxu0 0.0
    %782 = vmatpush1.msra.mxu0 0.0
    %783 = vmatprep.subr.mxu0 0.0
    %784 = vmatpush1.msra.mxu0 0.0
    %785 = vmatprep.subr.mxu0 0.0
    %786 = vmatpush1.msra.mxu0 0.0
    %787 = vmatprep.subr.mxu0 0.0
    %788 = vmatpush1.msra.mxu0 0.0
    %789 = vmatprep.subr.mxu0 0.0
    %790 = vmatpush1.msra.mxu0 0.0
    %791 = vmatprep.subr.mxu0 %v283
    %792 = vmatpush1.msra.mxu0 %v282
    %793 = vmatprep.subr.mxu0 %v281
    %794 = vmatpush1.msra.mxu0 %v280
    %795 = vmatprep.subr.mxu0 %v279
    %796 = vmatpush1.msra.mxu0 %v278
    %797 = vmatprep.subr.mxu0 %v277
    %798 = vmatpush1.msra.mxu0 %v276
    %799 = vmatprep.subr.mxu0 %v275
    %800 = vmatpush1.msra.mxu0 %v274
    %801 = vmatprep.subr.mxu0 %v273
    %802 = vmatpush1.msra.mxu0 %v272
    %803 = vmatprep.subr.mxu0 %v271
    %804 = vmatpush1.msra.mxu0 %v270
    %805 = vmatprep.subr.mxu0 %v269
    %806 = vmatpush1.msra.mxu0 %v268
    %807 = vmatprep.subr.mxu0 0.0
    %808 = vmatpush2.msra.mxu0 0.0
    %809 = vmatprep.subr.mxu0 0.0
    %810 = vmatpush2.msra.mxu0 0.0
    %811 = vmatprep.subr.mxu0 0.0
    %812 = vmatpush2.msra.mxu0 0.0
    %813 = vmatprep.subr.mxu0 0.0
    %814 = vmatpush2.msra.mxu0 0.0
    %815 = vmatprep.subr.mxu0 0.0
    %816 = vmatpush2.msra.mxu0 0.0
    %817 = vmatprep.subr.mxu0 0.0
    %818 = vmatpush2.msra.mxu0 0.0
    %819 = vmatprep.subr.mxu0 0.0
    %820 = vmatpush2.msra.mxu0 0.0
    %821 = vmatprep.subr.mxu0 0.0
    %822 = vmatpush2.msra.mxu0 0.0
    %823 = vmatprep.subr.mxu0 0.0
    %824 = vmatpush2.msra.mxu0 0.0
    %825 = vmatprep.subr.mxu0 0.0
    %826 = vmatpush2.msra.mxu0 0.0
    %827 = vmatprep.subr.mxu0 0.0
    %828 = vmatpush2.msra.mxu0 0.0
    %829 = vmatprep.subr.mxu0 0.0
    %830 = vmatpush2.msra.mxu0 0.0
    %831 = vmatprep.subr.mxu0 0.0
    %832 = vmatpush2.msra.mxu0 0.0
    %833 = vmatprep.subr.mxu0 0.0
    %834 = vmatpush2.msra.mxu0 0.0
    %835 = vmatprep.subr.mxu0 0.0
    %836 = vmatpush2.msra.mxu0 0.0
    %837 = vmatprep.subr.mxu0 0.0
    %838 = vmatpush2.msra.mxu0 0.0
    %839 = vmatprep.mubr.f32.mxu0 0.0
    %840 = vmatmul.mubr.f32.gmra.mxu0 %v773
    %v841 = vpop.f32.mrf.mxu0
    %v842 = vadd.f32 0.0, %v841
    %v843 = vpop.f32.mrf.mxu0
    %v844 = vadd.f32 0.0, %v843
    %845 = vdwg.mxu0
    %v846 = vadd.f32 %v252, %v842
    %v847 = vxor.u32 %v846, 2147483648
    %v848 = vmul.f32 %v847, 1.442695
    %v849 = vpow.pop %v848
    %v850 = vadd.f32 %v849, 1.0
    %v851 = vrcp.pop %v850
    %v852 = vmul.f32 1.0, %v851
    %v853 = vadd.f32 %v844, %v371
    %v854 = vmul.f32 %v852, %v853
    %v855 = vadd.f32 %v254, %v854
    %v856 = vtanh.pop %v855
    %v857 = vsub.f32 %v771, %v856
    %859 = vrot.lane.b32.xlu0 %v857, 64
    %v860 = vpop.permute.xlu0 %859
    %v862 = vmul.f32 %v852, %v860
    %864 = vrot.lane.b32.xlu0 %v862, 64
    %v865 = vpop.permute.xlu0 %864
    %v867 = vadd.f32 %v856, %v865
    %v869 = vsel %vm285, %v867, 0
    %871 = vmatprep.subr.mxu0 0.0
    %872 = vmatpush1.msra.mxu0 0.0
    %873 = vmatprep.subr.mxu0 0.0
    %874 = vmatpush1.msra.mxu0 0.0
    %875 = vmatprep.subr.mxu0 0.0
    %876 = vmatpush1.msra.mxu0 0.0
    %877 = vmatprep.subr.mxu0 0.0
    %878 = vmatpush1.msra.mxu0 0.0
    %879 = vmatprep.subr.mxu0 0.0
    %880 = vmatpush1.msra.mxu0 0.0
    %881 = vmatprep.subr.mxu0 0.0
    %882 = vmatpush1.msra.mxu0 0.0
    %883 = vmatprep.subr.mxu0 0.0
    %884 = vmatpush1.msra.mxu0 0.0
    %885 = vmatprep.subr.mxu0 0.0
    %886 = vmatpush1.msra.mxu0 0.0
    %887 = vmatprep.subr.mxu0 %v283
    %888 = vmatpush1.msra.mxu0 %v282
    %889 = vmatprep.subr.mxu0 %v281
    %890 = vmatpush1.msra.mxu0 %v280
    %891 = vmatprep.subr.mxu0 %v279
    %892 = vmatpush1.msra.mxu0 %v278
    %893 = vmatprep.subr.mxu0 %v277
    %894 = vmatpush1.msra.mxu0 %v276
    %895 = vmatprep.subr.mxu0 %v275
    %896 = vmatpush1.msra.mxu0 %v274
    %897 = vmatprep.subr.mxu0 %v273
    %898 = vmatpush1.msra.mxu0 %v272
    %899 = vmatprep.subr.mxu0 %v271
    %900 = vmatpush1.msra.mxu0 %v270
    %901 = vmatprep.subr.mxu0 %v269
    %902 = vmatpush1.msra.mxu0 %v268
    %903 = vmatprep.subr.mxu0 0.0
    %904 = vmatpush2.msra.mxu0 0.0
    %905 = vmatprep.subr.mxu0 0.0
    %906 = vmatpush2.msra.mxu0 0.0
    %907 = vmatprep.subr.mxu0 0.0
    %908 = vmatpush2.msra.mxu0 0.0
    %909 = vmatprep.subr.mxu0 0.0
    %910 = vmatpush2.msra.mxu0 0.0
    %911 = vmatprep.subr.mxu0 0.0
    %912 = vmatpush2.msra.mxu0 0.0
    %913 = vmatprep.subr.mxu0 0.0
    %914 = vmatpush2.msra.mxu0 0.0
    %915 = vmatprep.subr.mxu0 0.0
    %916 = vmatpush2.msra.mxu0 0.0
    %917 = vmatprep.subr.mxu0 0.0
    %918 = vmatpush2.msra.mxu0 0.0
    %919 = vmatprep.subr.mxu0 0.0
    %920 = vmatpush2.msra.mxu0 0.0
    %921 = vmatprep.subr.mxu0 0.0
    %922 = vmatpush2.msra.mxu0 0.0
    %923 = vmatprep.subr.mxu0 0.0
    %924 = vmatpush2.msra.mxu0 0.0
    %925 = vmatprep.subr.mxu0 0.0
    %926 = vmatpush2.msra.mxu0 0.0
    %927 = vmatprep.subr.mxu0 0.0
    %928 = vmatpush2.msra.mxu0 0.0
    %929 = vmatprep.subr.mxu0 0.0
    %930 = vmatpush2.msra.mxu0 0.0
    %931 = vmatprep.subr.mxu0 0.0
    %932 = vmatpush2.msra.mxu0 0.0
    %933 = vmatprep.subr.mxu0 0.0
    %934 = vmatpush2.msra.mxu0 0.0
    %935 = vmatprep.mubr.f32.mxu0 0.0
    %936 = vmatmul.mubr.f32.gmra.mxu0 %v869
    %v937 = vpop.f32.mrf.mxu0
    %v938 = vadd.f32 0.0, %v937
    %v939 = vpop.f32.mrf.mxu0
    %v940 = vadd.f32 0.0, %v939
    %941 = vdwg.mxu0
    %v942 = vadd.f32 %v258, %v938
    %v943 = vxor.u32 %v942, 2147483648
    %v944 = vmul.f32 %v943, 1.442695
    %v945 = vpow.pop %v944
    %v946 = vadd.f32 %v945, 1.0
    %v947 = vrcp.pop %v946
    %v948 = vmul.f32 1.0, %v947
    %v949 = vadd.f32 %v940, %v371
    %v950 = vmul.f32 %v948, %v949
    %v951 = vadd.f32 %v260, %v950
    %v952 = vtanh.pop %v951
    %v953 = vsub.f32 %v867, %v952
    %955 = vrot.lane.b32.xlu0 %v953, 64
    %v956 = vpop.permute.xlu0 %955
    %v958 = vmul.f32 %v948, %v956
    %960 = vrot.lane.b32.xlu0 %v958, 64
    %v961 = vpop.permute.xlu0 %960
    %v963 = vadd.f32 %v952, %v961
    %v965 = vsel %vm285, %v963, 0
    %967 = vmatprep.subr.mxu0 0.0
    %968 = vmatpush1.msra.mxu0 0.0
    %969 = vmatprep.subr.mxu0 0.0
    %970 = vmatpush1.msra.mxu0 0.0
    %971 = vmatprep.subr.mxu0 0.0
    %972 = vmatpush1.msra.mxu0 0.0
    %973 = vmatprep.subr.mxu0 0.0
    %974 = vmatpush1.msra.mxu0 0.0
    %975 = vmatprep.subr.mxu0 0.0
    %976 = vmatpush1.msra.mxu0 0.0
    %977 = vmatprep.subr.mxu0 0.0
    %978 = vmatpush1.msra.mxu0 0.0
    %979 = vmatprep.subr.mxu0 0.0
    %980 = vmatpush1.msra.mxu0 0.0
    %981 = vmatprep.subr.mxu0 0.0
    %982 = vmatpush1.msra.mxu0 0.0
    %983 = vmatprep.subr.mxu0 %v283
    %984 = vmatpush1.msra.mxu0 %v282
    %985 = vmatprep.subr.mxu0 %v281
    %986 = vmatpush1.msra.mxu0 %v280
    %987 = vmatprep.subr.mxu0 %v279
    %988 = vmatpush1.msra.mxu0 %v278
    %989 = vmatprep.subr.mxu0 %v277
    %990 = vmatpush1.msra.mxu0 %v276
    %991 = vmatprep.subr.mxu0 %v275
    %992 = vmatpush1.msra.mxu0 %v274
    %993 = vmatprep.subr.mxu0 %v273
    %994 = vmatpush1.msra.mxu0 %v272
    %995 = vmatprep.subr.mxu0 %v271
    %996 = vmatpush1.msra.mxu0 %v270
    %997 = vmatprep.subr.mxu0 %v269
    %998 = vmatpush1.msra.mxu0 %v268
    %999 = vmatprep.subr.mxu0 0.0
    %1000 = vmatpush2.msra.mxu0 0.0
    %1001 = vmatprep.subr.mxu0 0.0
    %1002 = vmatpush2.msra.mxu0 0.0
    %1003 = vmatprep.subr.mxu0 0.0
    %1004 = vmatpush2.msra.mxu0 0.0
    %1005 = vmatprep.subr.mxu0 0.0
    %1006 = vmatpush2.msra.mxu0 0.0
    %1007 = vmatprep.subr.mxu0 0.0
    %1008 = vmatpush2.msra.mxu0 0.0
    %1009 = vmatprep.subr.mxu0 0.0
    %1010 = vmatpush2.msra.mxu0 0.0
    %1011 = vmatprep.subr.mxu0 0.0
    %1012 = vmatpush2.msra.mxu0 0.0
    %1013 = vmatprep.subr.mxu0 0.0
    %1014 = vmatpush2.msra.mxu0 0.0
    %1015 = vmatprep.subr.mxu0 0.0
    %1016 = vmatpush2.msra.mxu0 0.0
    %1017 = vmatprep.subr.mxu0 0.0
    %1018 = vmatpush2.msra.mxu0 0.0
    %1019 = vmatprep.subr.mxu0 0.0
    %1020 = vmatpush2.msra.mxu0 0.0
    %1021 = vmatprep.subr.mxu0 0.0
    %1022 = vmatpush2.msra.mxu0 0.0
    %1023 = vmatprep.subr.mxu0 0.0
    %1024 = vmatpush2.msra.mxu0 0.0
    %1025 = vmatprep.subr.mxu0 0.0
    %1026 = vmatpush2.msra.mxu0 0.0
    %1027 = vmatprep.subr.mxu0 0.0
    %1028 = vmatpush2.msra.mxu0 0.0
    %1029 = vmatprep.subr.mxu0 0.0
    %1030 = vmatpush2.msra.mxu0 0.0
    %1031 = vmatprep.mubr.f32.mxu0 0.0
    %1032 = vmatmul.mubr.f32.gmra.mxu0 %v965
    %v1033 = vpop.f32.mrf.mxu0
    %v1034 = vadd.f32 0.0, %v1033
    %v1035 = vpop.f32.mrf.mxu0
    %v1036 = vadd.f32 0.0, %v1035
    %1037 = vdwg.mxu0
    %v1038 = vadd.f32 %v264, %v1034
    %v1039 = vxor.u32 %v1038, 2147483648
    %v1040 = vmul.f32 %v1039, 1.442695
    %v1041 = vpow.pop %v1040
    %v1042 = vadd.f32 %v1041, 1.0
    %v1043 = vrcp.pop %v1042
    %v1044 = vmul.f32 1.0, %v1043
    %v1045 = vadd.f32 %v1036, %v371
    %v1046 = vmul.f32 %v1044, %v1045
    %v1047 = vadd.f32 %v266, %v1046
    %v1048 = vtanh.pop %v1047
    %v1049 = vsub.f32 %v963, %v1048
    %1051 = vrot.lane.b32.xlu0 %v1049, 64
    %v1052 = vpop.permute.xlu0 %1051
    %v1054 = vmul.f32 %v1044, %v1052
    %1056 = vrot.lane.b32.xlu0 %v1054, 64
    %v1057 = vpop.permute.xlu0 %1056
    %v1059 = vadd.f32 %v1048, %v1057
    %v1060 = vld [vmem:[#allocation4] sm:$0xff]
    %v1061 = vld [vmem:[#allocation4 + $0x8] sm:$0xff]
    %v1062 = vld [vmem:[#allocation4 + $0x10] sm:$0xff]
    %v1063 = vld [vmem:[#allocation4 + $0x18] sm:$0xff]
    %v1064 = vld [vmem:[#allocation4 + $0x20] sm:$0xff]
    %v1065 = vld [vmem:[#allocation4 + $0x28] sm:$0xff]
    %v1066 = vld [vmem:[#allocation4 + $0x30] sm:$0xff]
    %v1067 = vld [vmem:[#allocation4 + $0x38] sm:$0xff]
    %v1068 = vld [vmem:[#allocation4 + $0x40] sm:$0xff]
    %v1069 = vld [vmem:[#allocation4 + $0x48] sm:$0xff]
    %v1070 = vld [vmem:[#allocation4 + $0x50] sm:$0xff]
    %v1071 = vld [vmem:[#allocation4 + $0x58] sm:$0xff]
    %v1072 = vld [vmem:[#allocation4 + $0x60] sm:$0xff]
    %v1073 = vld [vmem:[#allocation4 + $0x68] sm:$0xff]
    %v1074 = vld [vmem:[#allocation4 + $0x70] sm:$0xff]
    %v1075 = vld [vmem:[#allocation4 + $0x78] sm:$0xff]
    %v1076 = vld [vmem:[#allocation6] sm:$0xff]
    %v1077 = vld [vmem:[#allocation6 + $0x8] sm:$0xff]
    %v1078 = vld [vmem:[#allocation6 + $0x10] sm:$0xff]
    %v1079 = vld [vmem:[#allocation6 + $0x18] sm:$0xff]
    %v1080 = vld [vmem:[#allocation6 + $0x20] sm:$0xff]
    %v1081 = vld [vmem:[#allocation6 + $0x28] sm:$0xff]
    %v1082 = vld [vmem:[#allocation6 + $0x30] sm:$0xff]
    %v1083 = vld [vmem:[#allocation6 + $0x38] sm:$0xff]
    %v1084 = vld [vmem:[#allocation6 + $0x40] sm:$0xff]
    %v1085 = vld [vmem:[#allocation6 + $0x48] sm:$0xff]
    %v1086 = vld [vmem:[#allocation6 + $0x50] sm:$0xff]
    %v1087 = vld [vmem:[#allocation6 + $0x58] sm:$0xff]
    %v1088 = vld [vmem:[#allocation6 + $0x60] sm:$0xff]
    %v1089 = vld [vmem:[#allocation6 + $0x68] sm:$0xff]
    %v1090 = vld [vmem:[#allocation6 + $0x70] sm:$0xff]
    %v1091 = vld [vmem:[#allocation6 + $0x78] sm:$0xff]
    %v1093 = vsel %vm285, %v1059, 0
    %1095 = vmatprep.subr.mxu0 0.0
    %1096 = vmatpush1.msra.mxu0 0.0
    %1097 = vmatprep.subr.mxu0 0.0
    %1098 = vmatpush1.msra.mxu0 0.0
    %1099 = vmatprep.subr.mxu0 0.0
    %1100 = vmatpush1.msra.mxu0 0.0
    %1101 = vmatprep.subr.mxu0 0.0
    %1102 = vmatpush1.msra.mxu0 0.0
    %1103 = vmatprep.subr.mxu0 0.0
    %1104 = vmatpush1.msra.mxu0 0.0
    %1105 = vmatprep.subr.mxu0 0.0
    %1106 = vmatpush1.msra.mxu0 0.0
    %1107 = vmatprep.subr.mxu0 0.0
    %1108 = vmatpush1.msra.mxu0 0.0
    %1109 = vmatprep.subr.mxu0 0.0
    %1110 = vmatpush1.msra.mxu0 0.0
    %1111 = vmatprep.subr.mxu0 %v1091
    %1112 = vmatpush1.msra.mxu0 %v1090
    %1113 = vmatprep.subr.mxu0 %v1089
    %1114 = vmatpush1.msra.mxu0 %v1088
    %1115 = vmatprep.subr.mxu0 %v1087
    %1116 = vmatpush1.msra.mxu0 %v1086
    %1117 = vmatprep.subr.mxu0 %v1085
    %1118 = vmatpush1.msra.mxu0 %v1084
    %1119 = vmatprep.subr.mxu0 %v1083
    %1120 = vmatpush1.msra.mxu0 %v1082
    %1121 = vmatprep.subr.mxu0 %v1081
    %1122 = vmatpush1.msra.mxu0 %v1080
    %1123 = vmatprep.subr.mxu0 %v1079
    %1124 = vmatpush1.msra.mxu0 %v1078
    %1125 = vmatprep.subr.mxu0 %v1077
    %1126 = vmatpush1.msra.mxu0 %v1076
    %1127 = vmatprep.subr.mxu0 0.0
    %1128 = vmatpush2.msra.mxu0 0.0
    %1129 = vmatprep.subr.mxu0 0.0
    %1130 = vmatpush2.msra.mxu0 0.0
    %1131 = vmatprep.subr.mxu0 0.0
    %1132 = vmatpush2.msra.mxu0 0.0
    %1133 = vmatprep.subr.mxu0 0.0
    %1134 = vmatpush2.msra.mxu0 0.0
    %1135 = vmatprep.subr.mxu0 0.0
    %1136 = vmatpush2.msra.mxu0 0.0
    %1137 = vmatprep.subr.mxu0 0.0
    %1138 = vmatpush2.msra.mxu0 0.0
    %1139 = vmatprep.subr.mxu0 0.0
    %1140 = vmatpush2.msra.mxu0 0.0
    %1141 = vmatprep.subr.mxu0 0.0
    %1142 = vmatpush2.msra.mxu0 0.0
    %1143 = vmatprep.subr.mxu0 0.0
    %1144 = vmatpush2.msra.mxu0 0.0
    %1145 = vmatprep.subr.mxu0 0.0
    %1146 = vmatpush2.msra.mxu0 0.0
    %1147 = vmatprep.subr.mxu0 0.0
    %1148 = vmatpush2.msra.mxu0 0.0
    %1149 = vmatprep.subr.mxu0 0.0
    %1150 = vmatpush2.msra.mxu0 0.0
    %1151 = vmatprep.subr.mxu0 0.0
    %1152 = vmatpush2.msra.mxu0 0.0
    %1153 = vmatprep.subr.mxu0 0.0
    %1154 = vmatpush2.msra.mxu0 0.0
    %1155 = vmatprep.subr.mxu0 0.0
    %1156 = vmatpush2.msra.mxu0 0.0
    %1157 = vmatprep.subr.mxu0 0.0
    %1158 = vmatpush2.msra.mxu0 0.0
    %1159 = vmatprep.mubr.f32.mxu0 0.0
    %1160 = vmatmul.mubr.f32.gmra.mxu0 %v389
    %v1161 = vpop.f32.mrf.mxu0
    %v1162 = vadd.f32 0.0, %v1161
    %v1163 = vpop.f32.mrf.mxu0
    %v1164 = vadd.f32 0.0, %v1163
    %1165 = vmatprep.mubr.f32.mxu0 0.0
    %1166 = vmatmul.mubr.f32.gmra.mxu0 %v485
    %v1167 = vpop.f32.mrf.mxu0
    %v1168 = vadd.f32 0.0, %v1167
    %v1169 = vpop.f32.mrf.mxu0
    %v1170 = vadd.f32 0.0, %v1169
    %1171 = vmatprep.mubr.f32.mxu0 0.0
    %1172 = vmatmul.mubr.f32.gmra.mxu0 %v581
    %v1173 = vpop.f32.mrf.mxu0
    %v1174 = vadd.f32 0.0, %v1173
    %v1175 = vpop.f32.mrf.mxu0
    %v1176 = vadd.f32 0.0, %v1175
    %1177 = vmatprep.mubr.f32.mxu0 0.0
    %1178 = vmatmul.mubr.f32.gmra.mxu0 %v677
    %v1179 = vpop.f32.mrf.mxu0
    %v1180 = vadd.f32 0.0, %v1179
    %v1181 = vpop.f32.mrf.mxu0
    %v1182 = vadd.f32 0.0, %v1181
    %1183 = vmatprep.mubr.f32.mxu0 0.0
    %1184 = vmatmul.mubr.f32.gmra.mxu0 %v773
    %v1185 = vpop.f32.mrf.mxu0
    %v1186 = vadd.f32 0.0, %v1185
    %v1187 = vpop.f32.mrf.mxu0
    %v1188 = vadd.f32 0.0, %v1187
    %1189 = vmatprep.mubr.f32.mxu0 0.0
    %1190 = vmatmul.mubr.f32.gmra.mxu0 %v869
    %v1191 = vpop.f32.mrf.mxu0
    %v1192 = vadd.f32 0.0, %v1191
    %v1193 = vpop.f32.mrf.mxu0
    %v1194 = vadd.f32 0.0, %v1193
    %1195 = vmatprep.mubr.f32.mxu0 0.0
    %1196 = vmatmul.mubr.f32.gmra.mxu0 %v965
    %v1197 = vpop.f32.mrf.mxu0
    %v1198 = vadd.f32 0.0, %v1197
    %v1199 = vpop.f32.mrf.mxu0
    %v1200 = vadd.f32 0.0, %v1199
    %1201 = vmatprep.mubr.f32.mxu0 0.0
    %1202 = vmatmul.mubr.f32.gmra.mxu0 %v1093
    %v1203 = vpop.f32.mrf.mxu0
    %v1204 = vadd.f32 0.0, %v1203
    %v1205 = vpop.f32.mrf.mxu0
    %v1206 = vadd.f32 0.0, %v1205
    %1207 = vdwg.mxu0
    %1208 = vmatprep.subr.mxu0 0.0
    %1209 = vmatpush1.msra.mxu0 0.0
    %1210 = vmatprep.subr.mxu0 0.0
    %1211 = vmatpush1.msra.mxu0 0.0
    %1212 = vmatprep.subr.mxu0 0.0
    %1213 = vmatpush1.msra.mxu0 0.0
    %1214 = vmatprep.subr.mxu0 0.0
    %1215 = vmatpush1.msra.mxu0 0.0
    %1216 = vmatprep.subr.mxu0 0.0
    %1217 = vmatpush1.msra.mxu0 0.0
    %1218 = vmatprep.subr.mxu0 0.0
    %1219 = vmatpush1.msra.mxu0 0.0
    %1220 = vmatprep.subr.mxu0 0.0
    %1221 = vmatpush1.msra.mxu0 0.0
    %1222 = vmatprep.subr.mxu0 0.0
    %1223 = vmatpush1.msra.mxu0 0.0
    %1224 = vmatprep.subr.mxu0 %v1075
    %1225 = vmatpush1.msra.mxu0 %v1074
    %1226 = vmatprep.subr.mxu0 %v1073
    %1227 = vmatpush1.msra.mxu0 %v1072
    %1228 = vmatprep.subr.mxu0 %v1071
    %1229 = vmatpush1.msra.mxu0 %v1070
    %1230 = vmatprep.subr.mxu0 %v1069
    %1231 = vmatpush1.msra.mxu0 %v1068
    %1232 = vmatprep.subr.mxu0 %v1067
    %1233 = vmatpush1.msra.mxu0 %v1066
    %1234 = vmatprep.subr.mxu0 %v1065
    %1235 = vmatpush1.msra.mxu0 %v1064
    %1236 = vmatprep.subr.mxu0 %v1063
    %1237 = vmatpush1.msra.mxu0 %v1062
    %1238 = vmatprep.subr.mxu0 %v1061
    %1239 = vmatpush1.msra.mxu0 %v1060
    %1240 = vmatprep.subr.mxu0 0.0
    %1241 = vmatpush2.msra.mxu0 0.0
    %1242 = vmatprep.subr.mxu0 0.0
    %1243 = vmatpush2.msra.mxu0 0.0
    %1244 = vmatprep.subr.mxu0 0.0
    %1245 = vmatpush2.msra.mxu0 0.0
    %1246 = vmatprep.subr.mxu0 0.0
    %1247 = vmatpush2.msra.mxu0 0.0
    %1248 = vmatprep.subr.mxu0 0.0
    %1249 = vmatpush2.msra.mxu0 0.0
    %1250 = vmatprep.subr.mxu0 0.0
    %1251 = vmatpush2.msra.mxu0 0.0
    %1252 = vmatprep.subr.mxu0 0.0
    %1253 = vmatpush2.msra.mxu0 0.0
    %1254 = vmatprep.subr.mxu0 0.0
    %1255 = vmatpush2.msra.mxu0 0.0
    %1256 = vmatprep.subr.mxu0 0.0
    %1257 = vmatpush2.msra.mxu0 0.0
    %1258 = vmatprep.subr.mxu0 0.0
    %1259 = vmatpush2.msra.mxu0 0.0
    %1260 = vmatprep.subr.mxu0 0.0
    %1261 = vmatpush2.msra.mxu0 0.0
    %1262 = vmatprep.subr.mxu0 0.0
    %1263 = vmatpush2.msra.mxu0 0.0
    %1264 = vmatprep.subr.mxu0 0.0
    %1265 = vmatpush2.msra.mxu0 0.0
    %1266 = vmatprep.subr.mxu0 0.0
    %1267 = vmatpush2.msra.mxu0 0.0
    %1268 = vmatprep.subr.mxu0 0.0
    %1269 = vmatpush2.msra.mxu0 0.0
    %1270 = vmatprep.subr.mxu0 0.0
    %1271 = vmatpush2.msra.mxu0 0.0
    %1272 = vmatprep.mubr.f32.mxu0 0.0
    %1273 = vmatmul.mubr.f32.gmra.mxu0 %v389
    %v1274 = vpop.f32.mrf.mxu0
    %v1275 = vadd.f32 %v1204, %v1274
    %v1276 = vpop.f32.mrf.mxu0
    %v1277 = vadd.f32 %v1206, %v1276
    %1278 = vmatprep.mubr.f32.mxu0 0.0
    %1279 = vmatmul.mubr.f32.gmra.mxu0 %v485
    %v1280 = vpop.f32.mrf.mxu0
    %v1281 = vadd.f32 %v1198, %v1280
    %v1282 = vpop.f32.mrf.mxu0
    %v1283 = vadd.f32 %v1200, %v1282
    %1284 = vmatprep.mubr.f32.mxu0 0.0
    %1285 = vmatmul.mubr.f32.gmra.mxu0 %v581
    %v1286 = vpop.f32.mrf.mxu0
    %v1287 = vadd.f32 %v1192, %v1286
    %v1288 = vpop.f32.mrf.mxu0
    %v1289 = vadd.f32 %v1194, %v1288
    %1290 = vmatprep.mubr.f32.mxu0 0.0
    %1291 = vmatmul.mubr.f32.gmra.mxu0 %v677
    %v1292 = vpop.f32.mrf.mxu0
    %v1293 = vadd.f32 %v1186, %v1292
    %v1294 = vpop.f32.mrf.mxu0
    %v1295 = vadd.f32 %v1188, %v1294
    %1296 = vmatprep.mubr.f32.mxu0 0.0
    %1297 = vmatmul.mubr.f32.gmra.mxu0 %v773
    %v1298 = vpop.f32.mrf.mxu0
    %v1299 = vadd.f32 %v1180, %v1298
    %v1300 = vpop.f32.mrf.mxu0
    %v1301 = vadd.f32 %v1182, %v1300
    %1302 = vmatprep.mubr.f32.mxu0 0.0
    %1303 = vmatmul.mubr.f32.gmra.mxu0 %v869
    %v1304 = vpop.f32.mrf.mxu0
    %v1305 = vadd.f32 %v1174, %v1304
    %v1306 = vpop.f32.mrf.mxu0
    %v1307 = vadd.f32 %v1176, %v1306
    %1308 = vmatprep.mubr.f32.mxu0 0.0
    %1309 = vmatmul.mubr.f32.gmra.mxu0 %v965
    %v1310 = vpop.f32.mrf.mxu0
    %v1311 = vadd.f32 %v1168, %v1310
    %v1312 = vpop.f32.mrf.mxu0
    %v1313 = vadd.f32 %v1170, %v1312
    %1314 = vmatprep.mubr.f32.mxu0 0.0
    %1315 = vmatmul.mubr.f32.gmra.mxu0 %v1093
    %v1316 = vpop.f32.mrf.mxu0
    %v1317 = vadd.f32 %v1162, %v1316
    %v1318 = vpop.f32.mrf.mxu0
    %v1319 = vadd.f32 %v1164, %v1318
    %1320 = vdwg.mxu0
    %v1321 = vld [vmem:[%s8] sm:$0x3]
    %v1323 = vlaneseq
    %v1324 = vshrl.u32 %v1323, 7
    %v1325 = vsub.s32 0, %v1324
    %v1326 = vrot.slane %v1321, %v1325
    %v1327 = vlaneseq
    %v1328 = vshrl.u32 %v1327, 7
    %v1329 = vsub.s32 1, %v1328
    %v1330 = vrot.slane %v1321, %v1329
    %v1333 = vadd.f32 %v1275, %v1326
    %v1334 = vadd.f32 %v1277, %v1330
    %v1335 = vadd.f32 %v1281, %v1326
    %v1336 = vadd.f32 %v1283, %v1330
    %v1337 = vadd.f32 %v1287, %v1326
    %v1338 = vadd.f32 %v1289, %v1330
    %v1339 = vadd.f32 %v1293, %v1326
    %v1340 = vadd.f32 %v1295, %v1330
    %v1341 = vadd.f32 %v1299, %v1326
    %v1342 = vadd.f32 %v1301, %v1330
    %v1343 = vadd.f32 %v1305, %v1326
    %v1344 = vadd.f32 %v1307, %v1330
    %v1345 = vadd.f32 %v1311, %v1326
    %v1346 = vadd.f32 %v1313, %v1330
    %v1347 = vadd.f32 %v1317, %v1326
    %v1348 = vadd.f32 %v1319, %v1330
    %v1349 = vld [vmem:[#allocation7] sm:$0xff]
    %v1350 = vld [vmem:[#allocation7 + $0x8] sm:$0xff]
    %v1351 = vld [vmem:[#allocation7 + $0x10] sm:$0xff]
    %v1352 = vld [vmem:[#allocation7 + $0x18] sm:$0xff]
    %v1353 = vld [vmem:[#allocation7 + $0x20] sm:$0xff]
    %v1354 = vld [vmem:[#allocation7 + $0x28] sm:$0xff]
    %v1355 = vld [vmem:[#allocation7 + $0x30] sm:$0xff]
    %v1356 = vld [vmem:[#allocation7 + $0x38] sm:$0xff]
    %v1357 = vld [vmem:[#allocation7 + $0x40] sm:$0xff]
    %v1358 = vld [vmem:[#allocation7 + $0x48] sm:$0xff]
    %v1359 = vld [vmem:[#allocation7 + $0x50] sm:$0xff]
    %v1360 = vld [vmem:[#allocation7 + $0x58] sm:$0xff]
    %v1361 = vld [vmem:[#allocation7 + $0x60] sm:$0xff]
    %v1362 = vld [vmem:[#allocation7 + $0x68] sm:$0xff]
    %v1363 = vld [vmem:[#allocation7 + $0x70] sm:$0xff]
    %v1364 = vld [vmem:[#allocation7 + $0x78] sm:$0xff]
    %v1365 = vld [vmem:[%s9] sm:$0x1]
    %1366 = vmatprep.subr.mxu0 0.0
    %1367 = vmatpush1.msra.mxu0 0.0
    %1368 = vmatprep.subr.mxu0 0.0
    %1369 = vmatpush1.msra.mxu0 0.0
    %1370 = vmatprep.subr.mxu0 0.0
    %1371 = vmatpush1.msra.mxu0 0.0
    %1372 = vmatprep.subr.mxu0 0.0
    %1373 = vmatpush1.msra.mxu0 0.0
    %1374 = vmatprep.subr.mxu0 0.0
    %1375 = vmatpush1.msra.mxu0 0.0
    %1376 = vmatprep.subr.mxu0 0.0
    %1377 = vmatpush1.msra.mxu0 0.0
    %1378 = vmatprep.subr.mxu0 0.0
    %1379 = vmatpush1.msra.mxu0 0.0
    %1380 = vmatprep.subr.mxu0 0.0
    %1381 = vmatpush1.msra.mxu0 0.0
    %1382 = vmatprep.subr.mxu0 %v1364
    %1383 = vmatpush1.msra.mxu0 %v1363
    %1384 = vmatprep.subr.mxu0 %v1362
    %1385 = vmatpush1.msra.mxu0 %v1361
    %1386 = vmatprep.subr.mxu0 %v1360
    %1387 = vmatpush1.msra.mxu0 %v1359
    %1388 = vmatprep.subr.mxu0 %v1358
    %1389 = vmatpush1.msra.mxu0 %v1357
    %1390 = vmatprep.subr.mxu0 %v1356
    %1391 = vmatpush1.msra.mxu0 %v1355
    %1392 = vmatprep.subr.mxu0 %v1354
    %1393 = vmatpush1.msra.mxu0 %v1353
    %1394 = vmatprep.subr.mxu0 %v1352
    %1395 = vmatpush1.msra.mxu0 %v1351
    %1396 = vmatprep.subr.mxu0 %v1350
    %1397 = vmatpush1.msra.mxu0 %v1349
    %1398 = vmatprep.subr.mxu0 0.0
    %1399 = vmatpush2.msra.mxu0 0.0
    %1400 = vmatprep.subr.mxu0 0.0
    %1401 = vmatpush2.msra.mxu0 0.0
    %1402 = vmatprep.subr.mxu0 0.0
    %1403 = vmatpush2.msra.mxu0 0.0
    %1404 = vmatprep.subr.mxu0 0.0
    %1405 = vmatpush2.msra.mxu0 0.0
    %1406 = vmatprep.subr.mxu0 0.0
    %1407 = vmatpush2.msra.mxu0 0.0
    %1408 = vmatprep.subr.mxu0 0.0
    %1409 = vmatpush2.msra.mxu0 0.0
    %1410 = vmatprep.subr.mxu0 0.0
    %1411 = vmatpush2.msra.mxu0 0.0
    %1412 = vmatprep.subr.mxu0 0.0
    %1413 = vmatpush2.msra.mxu0 0.0
    %1414 = vmatprep.subr.mxu0 0.0
    %1415 = vmatpush2.msra.mxu0 0.0
    %1416 = vmatprep.subr.mxu0 0.0
    %1417 = vmatpush2.msra.mxu0 0.0
    %1418 = vmatprep.subr.mxu0 0.0
    %1419 = vmatpush2.msra.mxu0 0.0
    %1420 = vmatprep.subr.mxu0 0.0
    %1421 = vmatpush2.msra.mxu0 0.0
    %1422 = vmatprep.subr.mxu0 0.0
    %1423 = vmatpush2.msra.mxu0 0.0
    %1424 = vmatprep.subr.mxu0 0.0
    %1425 = vmatpush2.msra.mxu0 0.0
    %1426 = vmatprep.subr.mxu0 0.0
    %1427 = vmatpush2.msra.mxu0 0.0
    %1428 = vmatprep.subr.mxu0 0.0
    %1429 = vmatpush2.msra.mxu0 0.0
    %1430 = vmatprep.mubr.f32.mxu0 0.0
    %1431 = vmatmul.mubr.f32.gmra.mxu0 %v287
    %v1432 = vpop.f32.mrf.mxu0
    %v1433 = vadd.f32 0.0, %v1432
    %v1434 = vpop.f32.mrf.mxu0
    %v1435 = vadd.f32 0.0, %v1434
    %1436 = vdwg.mxu0
    %v1437 = vadd.f32 %v1333, %v1433
    %v1438 = vxor.u32 %v1437, 2147483648
    %v1439 = vmul.f32 %v1438, 1.442695
    %v1440 = vpow.pop %v1439
    %v1441 = vadd.f32 %v1440, 1.0
    %v1442 = vrcp.pop %v1441
    %v1443 = vmul.f32 1.0, %v1442
    %v1445 = vlaneseq
    %v1446 = vshrl.u32 %v1445, 7
    %v1447 = vsub.s32 0, %v1446
    %v1448 = vrot.slane %v1365, %v1447
    %v1450 = vadd.f32 %v1435, %v1448
    %v1451 = vmul.f32 %v1443, %v1450
    %v1452 = vadd.f32 %v1334, %v1451
    %v1453 = vtanh.pop %v1452
    %v1454 = vsub.f32 0.0, %v1453
    %1456 = vrot.lane.b32.xlu0 %v1454, 64
    %v1457 = vpop.permute.xlu0 %1456
    %v1459 = vmul.f32 %v1443, %v1457
    %1461 = vrot.lane.b32.xlu0 %v1459, 64
    %v1462 = vpop.permute.xlu0 %1461
    %v1464 = vadd.f32 %v1453, %v1462
    %v1466 = vsel %vm285, %v1464, 0
    %1468 = vmatprep.subr.mxu0 0.0
    %1469 = vmatpush1.msra.mxu0 0.0
    %1470 = vmatprep.subr.mxu0 0.0
    %1471 = vmatpush1.msra.mxu0 0.0
    %1472 = vmatprep.subr.mxu0 0.0
    %1473 = vmatpush1.msra.mxu0 0.0
    %1474 = vmatprep.subr.mxu0 0.0
    %1475 = vmatpush1.msra.mxu0 0.0
    %1476 = vmatprep.subr.mxu0 0.0
    %1477 = vmatpush1.msra.mxu0 0.0
    %1478 = vmatprep.subr.mxu0 0.0
    %1479 = vmatpush1.msra.mxu0 0.0
    %1480 = vmatprep.subr.mxu0 0.0
    %1481 = vmatpush1.msra.mxu0 0.0
    %1482 = vmatprep.subr.mxu0 0.0
    %1483 = vmatpush1.msra.mxu0 0.0
    %1484 = vmatprep.subr.mxu0 %v1364
    %1485 = vmatpush1.msra.mxu0 %v1363
    %1486 = vmatprep.subr.mxu0 %v1362
    %1487 = vmatpush1.msra.mxu0 %v1361
    %1488 = vmatprep.subr.mxu0 %v1360
    %1489 = vmatpush1.msra.mxu0 %v1359
    %1490 = vmatprep.subr.mxu0 %v1358
    %1491 = vmatpush1.msra.mxu0 %v1357
    %1492 = vmatprep.subr.mxu0 %v1356
    %1493 = vmatpush1.msra.mxu0 %v1355
    %1494 = vmatprep.subr.mxu0 %v1354
    %1495 = vmatpush1.msra.mxu0 %v1353
    %1496 = vmatprep.subr.mxu0 %v1352
    %1497 = vmatpush1.msra.mxu0 %v1351
    %1498 = vmatprep.subr.mxu0 %v1350
    %1499 = vmatpush1.msra.mxu0 %v1349
    %1500 = vmatprep.subr.mxu0 0.0
    %1501 = vmatpush2.msra.mxu0 0.0
    %1502 = vmatprep.subr.mxu0 0.0
    %1503 = vmatpush2.msra.mxu0 0.0
    %1504 = vmatprep.subr.mxu0 0.0
    %1505 = vmatpush2.msra.mxu0 0.0
    %1506 = vmatprep.subr.mxu0 0.0
    %1507 = vmatpush2.msra.mxu0 0.0
    %1508 = vmatprep.subr.mxu0 0.0
    %1509 = vmatpush2.msra.mxu0 0.0
    %1510 = vmatprep.subr.mxu0 0.0
    %1511 = vmatpush2.msra.mxu0 0.0
    %1512 = vmatprep.subr.mxu0 0.0
    %1513 = vmatpush2.msra.mxu0 0.0
    %1514 = vmatprep.subr.mxu0 0.0
    %1515 = vmatpush2.msra.mxu0 0.0
    %1516 = vmatprep.subr.mxu0 0.0
    %1517 = vmatpush2.msra.mxu0 0.0
    %1518 = vmatprep.subr.mxu0 0.0
    %1519 = vmatpush2.msra.mxu0 0.0
    %1520 = vmatprep.subr.mxu0 0.0
    %1521 = vmatpush2.msra.mxu0 0.0
    %1522 = vmatprep.subr.mxu0 0.0
    %1523 = vmatpush2.msra.mxu0 0.0
    %1524 = vmatprep.subr.mxu0 0.0
    %1525 = vmatpush2.msra.mxu0 0.0
    %1526 = vmatprep.subr.mxu0 0.0
    %1527 = vmatpush2.msra.mxu0 0.0
    %1528 = vmatprep.subr.mxu0 0.0
    %1529 = vmatpush2.msra.mxu0 0.0
    %1530 = vmatprep.subr.mxu0 0.0
    %1531 = vmatpush2.msra.mxu0 0.0
    %1532 = vmatprep.mubr.f32.mxu0 0.0
    %1533 = vmatmul.mubr.f32.gmra.mxu0 %v1466
    %v1534 = vpop.f32.mrf.mxu0
    %v1535 = vadd.f32 0.0, %v1534
    %v1536 = vpop.f32.mrf.mxu0
    %v1537 = vadd.f32 0.0, %v1536
    %1538 = vdwg.mxu0
    %v1539 = vadd.f32 %v1335, %v1535
    %v1540 = vxor.u32 %v1539, 2147483648
    %v1541 = vmul.f32 %v1540, 1.442695
    %v1542 = vpow.pop %v1541
    %v1543 = vadd.f32 %v1542, 1.0
    %v1544 = vrcp.pop %v1543
    %v1545 = vmul.f32 1.0, %v1544
    %v1546 = vadd.f32 %v1537, %v1448
    %v1547 = vmul.f32 %v1545, %v1546
    %v1548 = vadd.f32 %v1336, %v1547
    %v1549 = vtanh.pop %v1548
    %v1550 = vsub.f32 %v1464, %v1549
    %1552 = vrot.lane.b32.xlu0 %v1550, 64
    %v1553 = vpop.permute.xlu0 %1552
    %v1555 = vmul.f32 %v1545, %v1553
    %1557 = vrot.lane.b32.xlu0 %v1555, 64
    %v1558 = vpop.permute.xlu0 %1557
    %v1560 = vadd.f32 %v1549, %v1558
    %v1562 = vsel %vm285, %v1560, 0
    %1564 = vmatprep.subr.mxu0 0.0
    %1565 = vmatpush1.msra.mxu0 0.0
    %1566 = vmatprep.subr.mxu0 0.0
    %1567 = vmatpush1.msra.mxu0 0.0
    %1568 = vmatprep.subr.mxu0 0.0
    %1569 = vmatpush1.msra.mxu0 0.0
    %1570 = vmatprep.subr.mxu0 0.0
    %1571 = vmatpush1.msra.mxu0 0.0
    %1572 = vmatprep.subr.mxu0 0.0
    %1573 = vmatpush1.msra.mxu0 0.0
    %1574 = vmatprep.subr.mxu0 0.0
    %1575 = vmatpush1.msra.mxu0 0.0
    %1576 = vmatprep.subr.mxu0 0.0
    %1577 = vmatpush1.msra.mxu0 0.0
    %1578 = vmatprep.subr.mxu0 0.0
    %1579 = vmatpush1.msra.mxu0 0.0
    %1580 = vmatprep.subr.mxu0 %v1364
    %1581 = vmatpush1.msra.mxu0 %v1363
    %1582 = vmatprep.subr.mxu0 %v1362
    %1583 = vmatpush1.msra.mxu0 %v1361
    %1584 = vmatprep.subr.mxu0 %v1360
    %1585 = vmatpush1.msra.mxu0 %v1359
    %1586 = vmatprep.subr.mxu0 %v1358
    %1587 = vmatpush1.msra.mxu0 %v1357
    %1588 = vmatprep.subr.mxu0 %v1356
    %1589 = vmatpush1.msra.mxu0 %v1355
    %1590 = vmatprep.subr.mxu0 %v1354
    %1591 = vmatpush1.msra.mxu0 %v1353
    %1592 = vmatprep.subr.mxu0 %v1352
    %1593 = vmatpush1.msra.mxu0 %v1351
    %1594 = vmatprep.subr.mxu0 %v1350
    %1595 = vmatpush1.msra.mxu0 %v1349
    %1596 = vmatprep.subr.mxu0 0.0
    %1597 = vmatpush2.msra.mxu0 0.0
    %1598 = vmatprep.subr.mxu0 0.0
    %1599 = vmatpush2.msra.mxu0 0.0
    %1600 = vmatprep.subr.mxu0 0.0
    %1601 = vmatpush2.msra.mxu0 0.0
    %1602 = vmatprep.subr.mxu0 0.0
    %1603 = vmatpush2.msra.mxu0 0.0
    %1604 = vmatprep.subr.mxu0 0.0
    %1605 = vmatpush2.msra.mxu0 0.0
    %1606 = vmatprep.subr.mxu0 0.0
    %1607 = vmatpush2.msra.mxu0 0.0
    %1608 = vmatprep.subr.mxu0 0.0
    %1609 = vmatpush2.msra.mxu0 0.0
    %1610 = vmatprep.subr.mxu0 0.0
    %1611 = vmatpush2.msra.mxu0 0.0
    %1612 = vmatprep.subr.mxu0 0.0
    %1613 = vmatpush2.msra.mxu0 0.0
    %1614 = vmatprep.subr.mxu0 0.0
    %1615 = vmatpush2.msra.mxu0 0.0
    %1616 = vmatprep.subr.mxu0 0.0
    %1617 = vmatpush2.msra.mxu0 0.0
    %1618 = vmatprep.subr.mxu0 0.0
    %1619 = vmatpush2.msra.mxu0 0.0
    %1620 = vmatprep.subr.mxu0 0.0
    %1621 = vmatpush2.msra.mxu0 0.0
    %1622 = vmatprep.subr.mxu0 0.0
    %1623 = vmatpush2.msra.mxu0 0.0
    %1624 = vmatprep.subr.mxu0 0.0
    %1625 = vmatpush2.msra.mxu0 0.0
    %1626 = vmatprep.subr.mxu0 0.0
    %1627 = vmatpush2.msra.mxu0 0.0
    %1628 = vmatprep.mubr.f32.mxu0 0.0
    %1629 = vmatmul.mubr.f32.gmra.mxu0 %v1562
    %v1630 = vpop.f32.mrf.mxu0
    %v1631 = vadd.f32 0.0, %v1630
    %v1632 = vpop.f32.mrf.mxu0
    %v1633 = vadd.f32 0.0, %v1632
    %1634 = vdwg.mxu0
    %v1635 = vadd.f32 %v1337, %v1631
    %v1636 = vxor.u32 %v1635, 2147483648
    %v1637 = vmul.f32 %v1636, 1.442695
    %v1638 = vpow.pop %v1637
    %v1639 = vadd.f32 %v1638, 1.0
    %v1640 = vrcp.pop %v1639
    %v1641 = vmul.f32 1.0, %v1640
    %v1642 = vadd.f32 %v1633, %v1448
    %v1643 = vmul.f32 %v1641, %v1642
    %v1644 = vadd.f32 %v1338, %v1643
    %v1645 = vtanh.pop %v1644
    %v1646 = vsub.f32 %v1560, %v1645
    %1648 = vrot.lane.b32.xlu0 %v1646, 64
    %v1649 = vpop.permute.xlu0 %1648
    %v1651 = vmul.f32 %v1641, %v1649
    %1653 = vrot.lane.b32.xlu0 %v1651, 64
    %v1654 = vpop.permute.xlu0 %1653
    %v1656 = vadd.f32 %v1645, %v1654
    %v1658 = vsel %vm285, %v1656, 0
    %1660 = vmatprep.subr.mxu0 0.0
    %1661 = vmatpush1.msra.mxu0 0.0
    %1662 = vmatprep.subr.mxu0 0.0
    %1663 = vmatpush1.msra.mxu0 0.0
    %1664 = vmatprep.subr.mxu0 0.0
    %1665 = vmatpush1.msra.mxu0 0.0
    %1666 = vmatprep.subr.mxu0 0.0
    %1667 = vmatpush1.msra.mxu0 0.0
    %1668 = vmatprep.subr.mxu0 0.0
    %1669 = vmatpush1.msra.mxu0 0.0
    %1670 = vmatprep.subr.mxu0 0.0
    %1671 = vmatpush1.msra.mxu0 0.0
    %1672 = vmatprep.subr.mxu0 0.0
    %1673 = vmatpush1.msra.mxu0 0.0
    %1674 = vmatprep.subr.mxu0 0.0
    %1675 = vmatpush1.msra.mxu0 0.0
    %1676 = vmatprep.subr.mxu0 %v1364
    %1677 = vmatpush1.msra.mxu0 %v1363
    %1678 = vmatprep.subr.mxu0 %v1362
    %1679 = vmatpush1.msra.mxu0 %v1361
    %1680 = vmatprep.subr.mxu0 %v1360
    %1681 = vmatpush1.msra.mxu0 %v1359
    %1682 = vmatprep.subr.mxu0 %v1358
    %1683 = vmatpush1.msra.mxu0 %v1357
    %1684 = vmatprep.subr.mxu0 %v1356
    %1685 = vmatpush1.msra.mxu0 %v1355
    %1686 = vmatprep.subr.mxu0 %v1354
    %1687 = vmatpush1.msra.mxu0 %v1353
    %1688 = vmatprep.subr.mxu0 %v1352
    %1689 = vmatpush1.msra.mxu0 %v1351
    %1690 = vmatprep.subr.mxu0 %v1350
    %1691 = vmatpush1.msra.mxu0 %v1349
    %1692 = vmatprep.subr.mxu0 0.0
    %1693 = vmatpush2.msra.mxu0 0.0
    %1694 = vmatprep.subr.mxu0 0.0
    %1695 = vmatpush2.msra.mxu0 0.0
    %1696 = vmatprep.subr.mxu0 0.0
    %1697 = vmatpush2.msra.mxu0 0.0
    %1698 = vmatprep.subr.mxu0 0.0
    %1699 = vmatpush2.msra.mxu0 0.0
    %1700 = vmatprep.subr.mxu0 0.0
    %1701 = vmatpush2.msra.mxu0 0.0
    %1702 = vmatprep.subr.mxu0 0.0
    %1703 = vmatpush2.msra.mxu0 0.0
    %1704 = vmatprep.subr.mxu0 0.0
    %1705 = vmatpush2.msra.mxu0 0.0
    %1706 = vmatprep.subr.mxu0 0.0
    %1707 = vmatpush2.msra.mxu0 0.0
    %1708 = vmatprep.subr.mxu0 0.0
    %1709 = vmatpush2.msra.mxu0 0.0
    %1710 = vmatprep.subr.mxu0 0.0
    %1711 = vmatpush2.msra.mxu0 0.0
    %1712 = vmatprep.subr.mxu0 0.0
    %1713 = vmatpush2.msra.mxu0 0.0
    %1714 = vmatprep.subr.mxu0 0.0
    %1715 = vmatpush2.msra.mxu0 0.0
    %1716 = vmatprep.subr.mxu0 0.0
    %1717 = vmatpush2.msra.mxu0 0.0
    %1718 = vmatprep.subr.mxu0 0.0
    %1719 = vmatpush2.msra.mxu0 0.0
    %1720 = vmatprep.subr.mxu0 0.0
    %1721 = vmatpush2.msra.mxu0 0.0
    %1722 = vmatprep.subr.mxu0 0.0
    %1723 = vmatpush2.msra.mxu0 0.0
    %1724 = vmatprep.mubr.f32.mxu0 0.0
    %1725 = vmatmul.mubr.f32.gmra.mxu0 %v1658
    %v1726 = vpop.f32.mrf.mxu0
    %v1727 = vadd.f32 0.0, %v1726
    %v1728 = vpop.f32.mrf.mxu0
    %v1729 = vadd.f32 0.0, %v1728
    %1730 = vdwg.mxu0
    %v1731 = vadd.f32 %v1339, %v1727
    %v1732 = vxor.u32 %v1731, 2147483648
    %v1733 = vmul.f32 %v1732, 1.442695
    %v1734 = vpow.pop %v1733
    %v1735 = vadd.f32 %v1734, 1.0
    %v1736 = vrcp.pop %v1735
    %v1737 = vmul.f32 1.0, %v1736
    %v1738 = vadd.f32 %v1729, %v1448
    %v1739 = vmul.f32 %v1737, %v1738
    %v1740 = vadd.f32 %v1340, %v1739
    %v1741 = vtanh.pop %v1740
    %v1742 = vsub.f32 %v1656, %v1741
    %1744 = vrot.lane.b32.xlu0 %v1742, 64
    %v1745 = vpop.permute.xlu0 %1744
    %v1747 = vmul.f32 %v1737, %v1745
    %1749 = vrot.lane.b32.xlu0 %v1747, 64
    %v1750 = vpop.permute.xlu0 %1749
    %v1752 = vadd.f32 %v1741, %v1750
    %v1754 = vsel %vm285, %v1752, 0
    %1756 = vmatprep.subr.mxu0 0.0
    %1757 = vmatpush1.msra.mxu0 0.0
    %1758 = vmatprep.subr.mxu0 0.0
    %1759 = vmatpush1.msra.mxu0 0.0
    %1760 = vmatprep.subr.mxu0 0.0
    %1761 = vmatpush1.msra.mxu0 0.0
    %1762 = vmatprep.subr.mxu0 0.0
    %1763 = vmatpush1.msra.mxu0 0.0
    %1764 = vmatprep.subr.mxu0 0.0
    %1765 = vmatpush1.msra.mxu0 0.0
    %1766 = vmatprep.subr.mxu0 0.0
    %1767 = vmatpush1.msra.mxu0 0.0
    %1768 = vmatprep.subr.mxu0 0.0
    %1769 = vmatpush1.msra.mxu0 0.0
    %1770 = vmatprep.subr.mxu0 0.0
    %1771 = vmatpush1.msra.mxu0 0.0
    %1772 = vmatprep.subr.mxu0 %v1364
    %1773 = vmatpush1.msra.mxu0 %v1363
    %1774 = vmatprep.subr.mxu0 %v1362
    %1775 = vmatpush1.msra.mxu0 %v1361
    %1776 = vmatprep.subr.mxu0 %v1360
    %1777 = vmatpush1.msra.mxu0 %v1359
    %1778 = vmatprep.subr.mxu0 %v1358
    %1779 = vmatpush1.msra.mxu0 %v1357
    %1780 = vmatprep.subr.mxu0 %v1356
    %1781 = vmatpush1.msra.mxu0 %v1355
    %1782 = vmatprep.subr.mxu0 %v1354
    %1783 = vmatpush1.msra.mxu0 %v1353
    %1784 = vmatprep.subr.mxu0 %v1352
    %1785 = vmatpush1.msra.mxu0 %v1351
    %1786 = vmatprep.subr.mxu0 %v1350
    %1787 = vmatpush1.msra.mxu0 %v1349
    %1788 = vmatprep.subr.mxu0 0.0
    %1789 = vmatpush2.msra.mxu0 0.0
    %1790 = vmatprep.subr.mxu0 0.0
    %1791 = vmatpush2.msra.mxu0 0.0
    %1792 = vmatprep.subr.mxu0 0.0
    %1793 = vmatpush2.msra.mxu0 0.0
    %1794 = vmatprep.subr.mxu0 0.0
    %1795 = vmatpush2.msra.mxu0 0.0
    %1796 = vmatprep.subr.mxu0 0.0
    %1797 = vmatpush2.msra.mxu0 0.0
    %1798 = vmatprep.subr.mxu0 0.0
    %1799 = vmatpush2.msra.mxu0 0.0
    %1800 = vmatprep.subr.mxu0 0.0
    %1801 = vmatpush2.msra.mxu0 0.0
    %1802 = vmatprep.subr.mxu0 0.0
    %1803 = vmatpush2.msra.mxu0 0.0
    %1804 = vmatprep.subr.mxu0 0.0
    %1805 = vmatpush2.msra.mxu0 0.0
    %1806 = vmatprep.subr.mxu0 0.0
    %1807 = vmatpush2.msra.mxu0 0.0
    %1808 = vmatprep.subr.mxu0 0.0
    %1809 = vmatpush2.msra.mxu0 0.0
    %1810 = vmatprep.subr.mxu0 0.0
    %1811 = vmatpush2.msra.mxu0 0.0
    %1812 = vmatprep.subr.mxu0 0.0
    %1813 = vmatpush2.msra.mxu0 0.0
    %1814 = vmatprep.subr.mxu0 0.0
    %1815 = vmatpush2.msra.mxu0 0.0
    %1816 = vmatprep.subr.mxu0 0.0
    %1817 = vmatpush2.msra.mxu0 0.0
    %1818 = vmatprep.subr.mxu0 0.0
    %1819 = vmatpush2.msra.mxu0 0.0
    %1820 = vmatprep.mubr.f32.mxu0 0.0
    %1821 = vmatmul.mubr.f32.gmra.mxu0 %v1754
    %v1822 = vpop.f32.mrf.mxu0
    %v1823 = vadd.f32 0.0, %v1822
    %v1824 = vpop.f32.mrf.mxu0
    %v1825 = vadd.f32 0.0, %v1824
    %1826 = vdwg.mxu0
    %v1827 = vadd.f32 %v1341, %v1823
    %v1828 = vxor.u32 %v1827, 2147483648
    %v1829 = vmul.f32 %v1828, 1.442695
    %v1830 = vpow.pop %v1829
    %v1831 = vadd.f32 %v1830, 1.0
    %v1832 = vrcp.pop %v1831
    %v1833 = vmul.f32 1.0, %v1832
    %v1834 = vadd.f32 %v1825, %v1448
    %v1835 = vmul.f32 %v1833, %v1834
    %v1836 = vadd.f32 %v1342, %v1835
    %v1837 = vtanh.pop %v1836
    %v1838 = vsub.f32 %v1752, %v1837
    %1840 = vrot.lane.b32.xlu0 %v1838, 64
    %v1841 = vpop.permute.xlu0 %1840
    %v1843 = vmul.f32 %v1833, %v1841
    %1845 = vrot.lane.b32.xlu0 %v1843, 64
    %v1846 = vpop.permute.xlu0 %1845
    %v1848 = vadd.f32 %v1837, %v1846
    %v1850 = vsel %vm285, %v1848, 0
    %1852 = vmatprep.subr.mxu0 0.0
    %1853 = vmatpush1.msra.mxu0 0.0
    %1854 = vmatprep.subr.mxu0 0.0
    %1855 = vmatpush1.msra.mxu0 0.0
    %1856 = vmatprep.subr.mxu0 0.0
    %1857 = vmatpush1.msra.mxu0 0.0
    %1858 = vmatprep.subr.mxu0 0.0
    %1859 = vmatpush1.msra.mxu0 0.0
    %1860 = vmatprep.subr.mxu0 0.0
    %1861 = vmatpush1.msra.mxu0 0.0
    %1862 = vmatprep.subr.mxu0 0.0
    %1863 = vmatpush1.msra.mxu0 0.0
    %1864 = vmatprep.subr.mxu0 0.0
    %1865 = vmatpush1.msra.mxu0 0.0
    %1866 = vmatprep.subr.mxu0 0.0
    %1867 = vmatpush1.msra.mxu0 0.0
    %1868 = vmatprep.subr.mxu0 %v1364
    %1869 = vmatpush1.msra.mxu0 %v1363
    %1870 = vmatprep.subr.mxu0 %v1362
    %1871 = vmatpush1.msra.mxu0 %v1361
    %1872 = vmatprep.subr.mxu0 %v1360
    %1873 = vmatpush1.msra.mxu0 %v1359
    %1874 = vmatprep.subr.mxu0 %v1358
    %1875 = vmatpush1.msra.mxu0 %v1357
    %1876 = vmatprep.subr.mxu0 %v1356
    %1877 = vmatpush1.msra.mxu0 %v1355
    %1878 = vmatprep.subr.mxu0 %v1354
    %1879 = vmatpush1.msra.mxu0 %v1353
    %1880 = vmatprep.subr.mxu0 %v1352
    %1881 = vmatpush1.msra.mxu0 %v1351
    %1882 = vmatprep.subr.mxu0 %v1350
    %1883 = vmatpush1.msra.mxu0 %v1349
    %1884 = vmatprep.subr.mxu0 0.0
    %1885 = vmatpush2.msra.mxu0 0.0
    %1886 = vmatprep.subr.mxu0 0.0
    %1887 = vmatpush2.msra.mxu0 0.0
    %1888 = vmatprep.subr.mxu0 0.0
    %1889 = vmatpush2.msra.mxu0 0.0
    %1890 = vmatprep.subr.mxu0 0.0
    %1891 = vmatpush2.msra.mxu0 0.0
    %1892 = vmatprep.subr.mxu0 0.0
    %1893 = vmatpush2.msra.mxu0 0.0
    %1894 = vmatprep.subr.mxu0 0.0
    %1895 = vmatpush2.msra.mxu0 0.0
    %1896 = vmatprep.subr.mxu0 0.0
    %1897 = vmatpush2.msra.mxu0 0.0
    %1898 = vmatprep.subr.mxu0 0.0
    %1899 = vmatpush2.msra.mxu0 0.0
    %1900 = vmatprep.subr.mxu0 0.0
    %1901 = vmatpush2.msra.mxu0 0.0
    %1902 = vmatprep.subr.mxu0 0.0
    %1903 = vmatpush2.msra.mxu0 0.0
    %1904 = vmatprep.subr.mxu0 0.0
    %1905 = vmatpush2.msra.mxu0 0.0
    %1906 = vmatprep.subr.mxu0 0.0
    %1907 = vmatpush2.msra.mxu0 0.0
    %1908 = vmatprep.subr.mxu0 0.0
    %1909 = vmatpush2.msra.mxu0 0.0
    %1910 = vmatprep.subr.mxu0 0.0
    %1911 = vmatpush2.msra.mxu0 0.0
    %1912 = vmatprep.subr.mxu0 0.0
    %1913 = vmatpush2.msra.mxu0 0.0
    %1914 = vmatprep.subr.mxu0 0.0
    %1915 = vmatpush2.msra.mxu0 0.0
    %1916 = vmatprep.mubr.f32.mxu0 0.0
    %1917 = vmatmul.mubr.f32.gmra.mxu0 %v1850
    %v1918 = vpop.f32.mrf.mxu0
    %v1919 = vadd.f32 0.0, %v1918
    %v1920 = vpop.f32.mrf.mxu0
    %v1921 = vadd.f32 0.0, %v1920
    %1922 = vdwg.mxu0
    %v1923 = vadd.f32 %v1343, %v1919
    %v1924 = vxor.u32 %v1923, 2147483648
    %v1925 = vmul.f32 %v1924, 1.442695
    %v1926 = vpow.pop %v1925
    %v1927 = vadd.f32 %v1926, 1.0
    %v1928 = vrcp.pop %v1927
    %v1929 = vmul.f32 1.0, %v1928
    %v1930 = vadd.f32 %v1921, %v1448
    %v1931 = vmul.f32 %v1929, %v1930
    %v1932 = vadd.f32 %v1344, %v1931
    %v1933 = vtanh.pop %v1932
    %v1934 = vsub.f32 %v1848, %v1933
    %1936 = vrot.lane.b32.xlu0 %v1934, 64
    %v1937 = vpop.permute.xlu0 %1936
    %v1939 = vmul.f32 %v1929, %v1937
    %1941 = vrot.lane.b32.xlu0 %v1939, 64
    %v1942 = vpop.permute.xlu0 %1941
    %v1944 = vadd.f32 %v1933, %v1942
    %v1946 = vsel %vm285, %v1944, 0
    %1948 = vmatprep.subr.mxu0 0.0
    %1949 = vmatpush1.msra.mxu0 0.0
    %1950 = vmatprep.subr.mxu0 0.0
    %1951 = vmatpush1.msra.mxu0 0.0
    %1952 = vmatprep.subr.mxu0 0.0
    %1953 = vmatpush1.msra.mxu0 0.0
    %1954 = vmatprep.subr.mxu0 0.0
    %1955 = vmatpush1.msra.mxu0 0.0
    %1956 = vmatprep.subr.mxu0 0.0
    %1957 = vmatpush1.msra.mxu0 0.0
    %1958 = vmatprep.subr.mxu0 0.0
    %1959 = vmatpush1.msra.mxu0 0.0
    %1960 = vmatprep.subr.mxu0 0.0
    %1961 = vmatpush1.msra.mxu0 0.0
    %1962 = vmatprep.subr.mxu0 0.0
    %1963 = vmatpush1.msra.mxu0 0.0
    %1964 = vmatprep.subr.mxu0 %v1364
    %1965 = vmatpush1.msra.mxu0 %v1363
    %1966 = vmatprep.subr.mxu0 %v1362
    %1967 = vmatpush1.msra.mxu0 %v1361
    %1968 = vmatprep.subr.mxu0 %v1360
    %1969 = vmatpush1.msra.mxu0 %v1359
    %1970 = vmatprep.subr.mxu0 %v1358
    %1971 = vmatpush1.msra.mxu0 %v1357
    %1972 = vmatprep.subr.mxu0 %v1356
    %1973 = vmatpush1.msra.mxu0 %v1355
    %1974 = vmatprep.subr.mxu0 %v1354
    %1975 = vmatpush1.msra.mxu0 %v1353
    %1976 = vmatprep.subr.mxu0 %v1352
    %1977 = vmatpush1.msra.mxu0 %v1351
    %1978 = vmatprep.subr.mxu0 %v1350
    %1979 = vmatpush1.msra.mxu0 %v1349
    %1980 = vmatprep.subr.mxu0 0.0
    %1981 = vmatpush2.msra.mxu0 0.0
    %1982 = vmatprep.subr.mxu0 0.0
    %1983 = vmatpush2.msra.mxu0 0.0
    %1984 = vmatprep.subr.mxu0 0.0
    %1985 = vmatpush2.msra.mxu0 0.0
    %1986 = vmatprep.subr.mxu0 0.0
    %1987 = vmatpush2.msra.mxu0 0.0
    %1988 = vmatprep.subr.mxu0 0.0
    %1989 = vmatpush2.msra.mxu0 0.0
    %1990 = vmatprep.subr.mxu0 0.0
    %1991 = vmatpush2.msra.mxu0 0.0
    %1992 = vmatprep.subr.mxu0 0.0
    %1993 = vmatpush2.msra.mxu0 0.0
    %1994 = vmatprep.subr.mxu0 0.0
    %1995 = vmatpush2.msra.mxu0 0.0
    %1996 = vmatprep.subr.mxu0 0.0
    %1997 = vmatpush2.msra.mxu0 0.0
    %1998 = vmatprep.subr.mxu0 0.0
    %1999 = vmatpush2.msra.mxu0 0.0
    %2000 = vmatprep.subr.mxu0 0.0
    %2001 = vmatpush2.msra.mxu0 0.0
    %2002 = vmatprep.subr.mxu0 0.0
    %2003 = vmatpush2.msra.mxu0 0.0
    %2004 = vmatprep.subr.mxu0 0.0
    %2005 = vmatpush2.msra.mxu0 0.0
    %2006 = vmatprep.subr.mxu0 0.0
    %2007 = vmatpush2.msra.mxu0 0.0
    %2008 = vmatprep.subr.mxu0 0.0
    %2009 = vmatpush2.msra.mxu0 0.0
    %2010 = vmatprep.subr.mxu0 0.0
    %2011 = vmatpush2.msra.mxu0 0.0
    %2012 = vmatprep.mubr.f32.mxu0 0.0
    %2013 = vmatmul.mubr.f32.gmra.mxu0 %v1946
    %v2014 = vpop.f32.mrf.mxu0
    %v2015 = vadd.f32 0.0, %v2014
    %v2016 = vpop.f32.mrf.mxu0
    %v2017 = vadd.f32 0.0, %v2016
    %2018 = vdwg.mxu0
    %v2019 = vadd.f32 %v1345, %v2015
    %v2020 = vxor.u32 %v2019, 2147483648
    %v2021 = vmul.f32 %v2020, 1.442695
    %v2022 = vpow.pop %v2021
    %v2023 = vadd.f32 %v2022, 1.0
    %v2024 = vrcp.pop %v2023
    %v2025 = vmul.f32 1.0, %v2024
    %v2026 = vadd.f32 %v2017, %v1448
    %v2027 = vmul.f32 %v2025, %v2026
    %v2028 = vadd.f32 %v1346, %v2027
    %v2029 = vtanh.pop %v2028
    %v2030 = vsub.f32 %v1944, %v2029
    %2032 = vrot.lane.b32.xlu0 %v2030, 64
    %v2033 = vpop.permute.xlu0 %2032
    %v2035 = vmul.f32 %v2025, %v2033
    %2037 = vrot.lane.b32.xlu0 %v2035, 64
    %v2038 = vpop.permute.xlu0 %2037
    %v2040 = vadd.f32 %v2029, %v2038
    %v2042 = vsel %vm285, %v2040, 0
    %2044 = vmatprep.subr.mxu0 0.0
    %2045 = vmatpush1.msra.mxu0 0.0
    %2046 = vmatprep.subr.mxu0 0.0
    %2047 = vmatpush1.msra.mxu0 0.0
    %2048 = vmatprep.subr.mxu0 0.0
    %2049 = vmatpush1.msra.mxu0 0.0
    %2050 = vmatprep.subr.mxu0 0.0
    %2051 = vmatpush1.msra.mxu0 0.0
    %2052 = vmatprep.subr.mxu0 0.0
    %2053 = vmatpush1.msra.mxu0 0.0
    %2054 = vmatprep.subr.mxu0 0.0
    %2055 = vmatpush1.msra.mxu0 0.0
    %2056 = vmatprep.subr.mxu0 0.0
    %2057 = vmatpush1.msra.mxu0 0.0
    %2058 = vmatprep.subr.mxu0 0.0
    %2059 = vmatpush1.msra.mxu0 0.0
    %2060 = vmatprep.subr.mxu0 %v1364
    %2061 = vmatpush1.msra.mxu0 %v1363
    %2062 = vmatprep.subr.mxu0 %v1362
    %2063 = vmatpush1.msra.mxu0 %v1361
    %2064 = vmatprep.subr.mxu0 %v1360
    %2065 = vmatpush1.msra.mxu0 %v1359
    %2066 = vmatprep.subr.mxu0 %v1358
    %2067 = vmatpush1.msra.mxu0 %v1357
    %2068 = vmatprep.subr.mxu0 %v1356
    %2069 = vmatpush1.msra.mxu0 %v1355
    %2070 = vmatprep.subr.mxu0 %v1354
    %2071 = vmatpush1.msra.mxu0 %v1353
    %2072 = vmatprep.subr.mxu0 %v1352
    %2073 = vmatpush1.msra.mxu0 %v1351
    %2074 = vmatprep.subr.mxu0 %v1350
    %2075 = vmatpush1.msra.mxu0 %v1349
    %2076 = vmatprep.subr.mxu0 0.0
    %2077 = vmatpush2.msra.mxu0 0.0
    %2078 = vmatprep.subr.mxu0 0.0
    %2079 = vmatpush2.msra.mxu0 0.0
    %2080 = vmatprep.subr.mxu0 0.0
    %2081 = vmatpush2.msra.mxu0 0.0
    %2082 = vmatprep.subr.mxu0 0.0
    %2083 = vmatpush2.msra.mxu0 0.0
    %2084 = vmatprep.subr.mxu0 0.0
    %2085 = vmatpush2.msra.mxu0 0.0
    %2086 = vmatprep.subr.mxu0 0.0
    %2087 = vmatpush2.msra.mxu0 0.0
    %2088 = vmatprep.subr.mxu0 0.0
    %2089 = vmatpush2.msra.mxu0 0.0
    %2090 = vmatprep.subr.mxu0 0.0
    %2091 = vmatpush2.msra.mxu0 0.0
    %2092 = vmatprep.subr.mxu0 0.0
    %2093 = vmatpush2.msra.mxu0 0.0
    %2094 = vmatprep.subr.mxu0 0.0
    %2095 = vmatpush2.msra.mxu0 0.0
    %2096 = vmatprep.subr.mxu0 0.0
    %2097 = vmatpush2.msra.mxu0 0.0
    %2098 = vmatprep.subr.mxu0 0.0
    %2099 = vmatpush2.msra.mxu0 0.0
    %2100 = vmatprep.subr.mxu0 0.0
    %2101 = vmatpush2.msra.mxu0 0.0
    %2102 = vmatprep.subr.mxu0 0.0
    %2103 = vmatpush2.msra.mxu0 0.0
    %2104 = vmatprep.subr.mxu0 0.0
    %2105 = vmatpush2.msra.mxu0 0.0
    %2106 = vmatprep.subr.mxu0 0.0
    %2107 = vmatpush2.msra.mxu0 0.0
    %2108 = vmatprep.mubr.f32.mxu0 0.0
    %2109 = vmatmul.mubr.f32.gmra.mxu0 %v2042
    %v2110 = vpop.f32.mrf.mxu0
    %v2111 = vadd.f32 0.0, %v2110
    %v2112 = vpop.f32.mrf.mxu0
    %v2113 = vadd.f32 0.0, %v2112
    %2114 = vdwg.mxu0
    %v2115 = vadd.f32 %v1347, %v2111
    %v2116 = vxor.u32 %v2115, 2147483648
    %v2117 = vmul.f32 %v2116, 1.442695
    %v2118 = vpow.pop %v2117
    %v2119 = vadd.f32 %v2118, 1.0
    %v2120 = vrcp.pop %v2119
    %v2121 = vmul.f32 1.0, %v2120
    %v2122 = vadd.f32 %v2113, %v1448
    %v2123 = vmul.f32 %v2121, %v2122
    %v2124 = vadd.f32 %v1348, %v2123
    %v2125 = vtanh.pop %v2124
    %v2126 = vsub.f32 %v2040, %v2125
    %2128 = vrot.lane.b32.xlu0 %v2126, 64
    %v2129 = vpop.permute.xlu0 %2128
    %v2131 = vmul.f32 %v2121, %v2129
    %2133 = vrot.lane.b32.xlu0 %v2131, 64
    %v2134 = vpop.permute.xlu0 %2133
    %v2136 = vadd.f32 %v2125, %v2134
    %2137 = vrot.lane.b32.xlu0 %v1560, 64
    %v2138 = vpop.permute.xlu0 %2137
    %2140 = vrot.lane.b32.xlu0 %v1752, 64
    %v2141 = vpop.permute.xlu0 %2140
    %2143 = vrot.lane.b32.xlu0 %v1944, 64
    %v2144 = vpop.permute.xlu0 %2143
    %2147 = vrot.lane.b32.xlu0 %v2136, 64
    %v2148 = vpop.permute.xlu0 %2147
    %v2150 = vsel %vm285, %v1464, %v2138
    %v2151 = vsel %vm285, %v1656, %v2141
    %v2152 = vsel %vm285, %v1848, %v2144
    %v2153 = vsel %vm285, %v2040, %v2148
    %v2154 = vld [vmem:[%s10] sm:$0xff]
    %v2155 = vld [vmem:[%s10 + $0x8] sm:$0xff]
    %v2156 = vld [vmem:[%s10 + $0x10] sm:$0xff]
    %v2157 = vld [vmem:[%s10 + $0x18] sm:$0xff]
    %v2158 = vld [vmem:[%s10 + $0x20] sm:$0xff]
    %v2159 = vld [vmem:[%s10 + $0x28] sm:$0xff]
    %v2160 = vld [vmem:[%s10 + $0x30] sm:$0xff]
    %v2161 = vld [vmem:[%s10 + $0x38] sm:$0xff]
    %v2162 = vld [vmem:[%s10 + $0x40] sm:$0xff]
    %v2163 = vld [vmem:[%s10 + $0x48] sm:$0xff]
    %v2164 = vld [vmem:[%s10 + $0x50] sm:$0xff]
    %v2165 = vld [vmem:[%s10 + $0x58] sm:$0xff]
    %v2166 = vld [vmem:[%s10 + $0x60] sm:$0xff]
    %v2167 = vld [vmem:[%s10 + $0x68] sm:$0xff]
    %v2168 = vld [vmem:[%s10 + $0x70] sm:$0xff]
    %v2169 = vld [vmem:[%s10 + $0x78] sm:$0xff]
    %v2170 = vld [vmem:[%s10 + $0x80] sm:$0xff]
    %v2171 = vld [vmem:[%s10 + $0x88] sm:$0xff]
    %v2172 = vld [vmem:[%s10 + $0x90] sm:$0xff]
    %v2173 = vld [vmem:[%s10 + $0x98] sm:$0xff]
    %v2174 = vld [vmem:[%s10 + $0xa0] sm:$0xff]
    %v2175 = vld [vmem:[%s10 + $0xa8] sm:$0xff]
    %v2176 = vld [vmem:[%s10 + $0xb0] sm:$0xff]
    %v2177 = vld [vmem:[%s10 + $0xb8] sm:$0xff]
    %v2178 = vld [vmem:[%s10 + $0xc0] sm:$0xff]
    %v2179 = vld [vmem:[%s10 + $0xc8] sm:$0xff]
    %v2180 = vld [vmem:[%s10 + $0xd0] sm:$0xff]
    %v2181 = vld [vmem:[%s10 + $0xd8] sm:$0xff]
    %v2182 = vld [vmem:[%s10 + $0xe0] sm:$0xff]
    %v2183 = vld [vmem:[%s10 + $0xe8] sm:$0xff]
    %v2184 = vld [vmem:[%s10 + $0xf0] sm:$0xff]
    %v2185 = vld [vmem:[%s10 + $0xf8] sm:$0xff]
    %v2186 = vld [vmem:[%s10 + $0x100] sm:$0xff]
    %v2187 = vld [vmem:[%s10 + $0x108] sm:$0xff]
    %v2188 = vld [vmem:[%s10 + $0x110] sm:$0xff]
    %v2189 = vld [vmem:[%s10 + $0x118] sm:$0xff]
    %v2190 = vld [vmem:[%s10 + $0x120] sm:$0xff]
    %v2191 = vld [vmem:[%s10 + $0x128] sm:$0xff]
    %v2192 = vld [vmem:[%s10 + $0x130] sm:$0xff]
    %v2193 = vld [vmem:[%s10 + $0x138] sm:$0xff]
    %v2194 = vld [vmem:[%s10 + $0x140] sm:$0xff]
    %v2195 = vld [vmem:[%s10 + $0x148] sm:$0xff]
    %v2196 = vld [vmem:[%s10 + $0x150] sm:$0xff]
    %v2197 = vld [vmem:[%s10 + $0x158] sm:$0xff]
    %v2198 = vld [vmem:[%s10 + $0x160] sm:$0xff]
    %v2199 = vld [vmem:[%s10 + $0x168] sm:$0xff]
    %v2200 = vld [vmem:[%s10 + $0x170] sm:$0xff]
    %v2201 = vld [vmem:[%s10 + $0x178] sm:$0xff]
    %v2202 = vld [vmem:[%s10 + $0x180] sm:$0xff]
    %v2203 = vld [vmem:[%s10 + $0x188] sm:$0xff]
    %v2204 = vld [vmem:[%s10 + $0x190] sm:$0xff]
    %v2205 = vld [vmem:[%s10 + $0x198] sm:$0xff]
    %v2206 = vld [vmem:[%s10 + $0x1a0] sm:$0xff]
    %v2207 = vld [vmem:[%s10 + $0x1a8] sm:$0xff]
    %v2208 = vld [vmem:[%s10 + $0x1b0] sm:$0xff]
    %v2209 = vld [vmem:[%s10 + $0x1b8] sm:$0xff]
    %v2210 = vld [vmem:[%s10 + $0x1c0] sm:$0xff]
    %v2211 = vld [vmem:[%s10 + $0x1c8] sm:$0xff]
    %v2212 = vld [vmem:[%s10 + $0x1d0] sm:$0xff]
    %v2213 = vld [vmem:[%s10 + $0x1d8] sm:$0xff]
    %v2214 = vld [vmem:[%s10 + $0x1e0] sm:$0xff]
    %v2215 = vld [vmem:[%s10 + $0x1e8] sm:$0xff]
    %v2216 = vld [vmem:[%s10 + $0x1f0] sm:$0xff]
    %v2217 = vld [vmem:[%s10 + $0x1f8] sm:$0xff]
    %v2218 = vld [vmem:[%s11] sm:$0x1]
    %v2220 = vlaneseq
    %v2221 = vshrl.u32 %v2220, 7
    %v2222 = vsub.s32 0, %v2221
    %v2223 = vrot.slane %v2218, %v2222
    %2225 = vmatprep.subr.mxu0 0.0
    %2226 = vmatpush1.msra.mxu0 %v2169
    %2227 = vmatprep.subr.mxu0 0.0
    %2228 = vmatpush1.msra.mxu0 %v2168
    %2229 = vmatprep.subr.mxu0 0.0
    %2230 = vmatpush1.msra.mxu0 %v2167
    %2231 = vmatprep.subr.mxu0 0.0
    %2232 = vmatpush1.msra.mxu0 %v2166
    %2233 = vmatprep.subr.mxu0 0.0
    %2234 = vmatpush1.msra.mxu0 %v2165
    %2235 = vmatprep.subr.mxu0 0.0
    %2236 = vmatpush1.msra.mxu0 %v2164
    %2237 = vmatprep.subr.mxu0 0.0
    %2238 = vmatpush1.msra.mxu0 %v2163
    %2239 = vmatprep.subr.mxu0 0.0
    %2240 = vmatpush1.msra.mxu0 %v2162
    %2241 = vmatprep.subr.mxu0 0.0
    %2242 = vmatpush1.msra.mxu0 %v2161
    %2243 = vmatprep.subr.mxu0 0.0
    %2244 = vmatpush1.msra.mxu0 %v2160
    %2245 = vmatprep.subr.mxu0 0.0
    %2246 = vmatpush1.msra.mxu0 %v2159
    %2247 = vmatprep.subr.mxu0 0.0
    %2248 = vmatpush1.msra.mxu0 %v2158
    %2249 = vmatprep.subr.mxu0 0.0
    %2250 = vmatpush1.msra.mxu0 %v2157
    %2251 = vmatprep.subr.mxu0 0.0
    %2252 = vmatpush1.msra.mxu0 %v2156
    %2253 = vmatprep.subr.mxu0 0.0
    %2254 = vmatpush1.msra.mxu0 %v2155
    %2255 = vmatprep.subr.mxu0 0.0
    %2256 = vmatpush1.msra.mxu0 %v2154
    %2257 = vmatprep.subr.mxu0 0.0
    %2258 = vmatpush2.msra.mxu0 %v2185
    %2259 = vmatprep.subr.mxu0 0.0
    %2260 = vmatpush2.msra.mxu0 %v2184
    %2261 = vmatprep.subr.mxu0 0.0
    %2262 = vmatpush2.msra.mxu0 %v2183
    %2263 = vmatprep.subr.mxu0 0.0
    %2264 = vmatpush2.msra.mxu0 %v2182
    %2265 = vmatprep.subr.mxu0 0.0
    %2266 = vmatpush2.msra.mxu0 %v2181
    %2267 = vmatprep.subr.mxu0 0.0
    %2268 = vmatpush2.msra.mxu0 %v2180
    %2269 = vmatprep.subr.mxu0 0.0
    %2270 = vmatpush2.msra.mxu0 %v2179
    %2271 = vmatprep.subr.mxu0 0.0
    %2272 = vmatpush2.msra.mxu0 %v2178
    %2273 = vmatprep.subr.mxu0 0.0
    %2274 = vmatpush2.msra.mxu0 %v2177
    %2275 = vmatprep.subr.mxu0 0.0
    %2276 = vmatpush2.msra.mxu0 %v2176
    %2277 = vmatprep.subr.mxu0 0.0
    %2278 = vmatpush2.msra.mxu0 %v2175
    %2279 = vmatprep.subr.mxu0 0.0
    %2280 = vmatpush2.msra.mxu0 %v2174
    %2281 = vmatprep.subr.mxu0 0.0
    %2282 = vmatpush2.msra.mxu0 %v2173
    %2283 = vmatprep.subr.mxu0 0.0
    %2284 = vmatpush2.msra.mxu0 %v2172
    %2285 = vmatprep.subr.mxu0 0.0
    %2286 = vmatpush2.msra.mxu0 %v2171
    %2287 = vmatprep.subr.mxu0 0.0
    %2288 = vmatpush2.msra.mxu0 %v2170
    %2289 = vmatprep.mubr.f32.mxu0 %v2151
    %2290 = vmatmul.mubr.f32.gmra.mxu0 %v2150
    %v2291 = vpop.f32.mrf.mxu0
    %v2292 = vadd.f32 %v2223, %v2291
    %v2293 = vpop.f32.mrf.mxu0
    %2294 = vdwg.mxu0
    %2295 = vmatprep.subr.mxu0 0.0
    %2296 = vmatpush1.msra.mxu0 %v2201
    %2297 = vmatprep.subr.mxu0 0.0
    %2298 = vmatpush1.msra.mxu0 %v2200
    %2299 = vmatprep.subr.mxu0 0.0
    %2300 = vmatpush1.msra.mxu0 %v2199
    %2301 = vmatprep.subr.mxu0 0.0
    %2302 = vmatpush1.msra.mxu0 %v2198
    %2303 = vmatprep.subr.mxu0 0.0
    %2304 = vmatpush1.msra.mxu0 %v2197
    %2305 = vmatprep.subr.mxu0 0.0
    %2306 = vmatpush1.msra.mxu0 %v2196
    %2307 = vmatprep.subr.mxu0 0.0
    %2308 = vmatpush1.msra.mxu0 %v2195
    %2309 = vmatprep.subr.mxu0 0.0
    %2310 = vmatpush1.msra.mxu0 %v2194
    %2311 = vmatprep.subr.mxu0 0.0
    %2312 = vmatpush1.msra.mxu0 %v2193
    %2313 = vmatprep.subr.mxu0 0.0
    %2314 = vmatpush1.msra.mxu0 %v2192
    %2315 = vmatprep.subr.mxu0 0.0
    %2316 = vmatpush1.msra.mxu0 %v2191
    %2317 = vmatprep.subr.mxu0 0.0
    %2318 = vmatpush1.msra.mxu0 %v2190
    %2319 = vmatprep.subr.mxu0 0.0
    %2320 = vmatpush1.msra.mxu0 %v2189
    %2321 = vmatprep.subr.mxu0 0.0
    %2322 = vmatpush1.msra.mxu0 %v2188
    %2323 = vmatprep.subr.mxu0 0.0
    %2324 = vmatpush1.msra.mxu0 %v2187
    %2325 = vmatprep.subr.mxu0 0.0
    %2326 = vmatpush1.msra.mxu0 %v2186
    %2327 = vmatprep.subr.mxu0 0.0
    %2328 = vmatpush2.msra.mxu0 %v2217
    %2329 = vmatprep.subr.mxu0 0.0
    %2330 = vmatpush2.msra.mxu0 %v2216
    %2331 = vmatprep.subr.mxu0 0.0
    %2332 = vmatpush2.msra.mxu0 %v2215
    %2333 = vmatprep.subr.mxu0 0.0
    %2334 = vmatpush2.msra.mxu0 %v2214
    %2335 = vmatprep.subr.mxu0 0.0
    %2336 = vmatpush2.msra.mxu0 %v2213
    %2337 = vmatprep.subr.mxu0 0.0
    %2338 = vmatpush2.msra.mxu0 %v2212
    %2339 = vmatprep.subr.mxu0 0.0
    %2340 = vmatpush2.msra.mxu0 %v2211
    %2341 = vmatprep.subr.mxu0 0.0
    %2342 = vmatpush2.msra.mxu0 %v2210
    %2343 = vmatprep.subr.mxu0 0.0
    %2344 = vmatpush2.msra.mxu0 %v2209
    %2345 = vmatprep.subr.mxu0 0.0
    %2346 = vmatpush2.msra.mxu0 %v2208
    %2347 = vmatprep.subr.mxu0 0.0
    %2348 = vmatpush2.msra.mxu0 %v2207
    %2349 = vmatprep.subr.mxu0 0.0
    %2350 = vmatpush2.msra.mxu0 %v2206
    %2351 = vmatprep.subr.mxu0 0.0
    %2352 = vmatpush2.msra.mxu0 %v2205
    %2353 = vmatprep.subr.mxu0 0.0
    %2354 = vmatpush2.msra.mxu0 %v2204
    %2355 = vmatprep.subr.mxu0 0.0
    %2356 = vmatpush2.msra.mxu0 %v2203
    %2357 = vmatprep.subr.mxu0 0.0
    %2358 = vmatpush2.msra.mxu0 %v2202
    %2359 = vmatprep.mubr.f32.mxu0 %v2153
    %2360 = vmatmul.mubr.f32.gmra.mxu0 %v2152
    %v2361 = vpop.f32.mrf.mxu0
    %v2362 = vadd.f32 %v2292, %v2361
    %v2363 = vpop.f32.mrf.mxu0
    %2364 = vdwg.mxu0
    %v2365 = vmax.f32 %v2362, 0.0
    %v2366 = vld [vmem:[%s12] sm:$0xff]
    %v2367 = vld [vmem:[%s12 + $0x8] sm:$0xff]
    %v2368 = vld [vmem:[%s12 + $0x10] sm:$0xff]
    %v2369 = vld [vmem:[%s12 + $0x18] sm:$0xff]
    %v2370 = vld [vmem:[%s12 + $0x20] sm:$0xff]
    %v2371 = vld [vmem:[%s12 + $0x28] sm:$0xff]
    %v2372 = vld [vmem:[%s12 + $0x30] sm:$0xff]
    %v2373 = vld [vmem:[%s12 + $0x38] sm:$0xff]
    %v2374 = vld [vmem:[%s12 + $0x40] sm:$0xff]
    %v2375 = vld [vmem:[%s12 + $0x48] sm:$0xff]
    %v2376 = vld [vmem:[%s12 + $0x50] sm:$0xff]
    %v2377 = vld [vmem:[%s12 + $0x58] sm:$0xff]
    %v2378 = vld [vmem:[%s12 + $0x60] sm:$0xff]
    %v2379 = vld [vmem:[%s12 + $0x68] sm:$0xff]
    %v2380 = vld [vmem:[%s12 + $0x70] sm:$0xff]
    %v2381 = vld [vmem:[%s12 + $0x78] sm:$0xff]
    %v2382 = vld [vmem:[%s13] sm:$0x1]
    %v2384 = vlaneseq
    %v2385 = vshrl.u32 %v2384, 7
    %v2386 = vsub.s32 0, %v2385
    %v2387 = vrot.slane %v2382, %v2386
    %2389 = vmatprep.subr.mxu0 0.0
    %2390 = vmatpush1.msra.mxu0 %v2381
    %2391 = vmatprep.subr.mxu0 0.0
    %2392 = vmatpush1.msra.mxu0 %v2380
    %2393 = vmatprep.subr.mxu0 0.0
    %2394 = vmatpush1.msra.mxu0 %v2379
    %2395 = vmatprep.subr.mxu0 0.0
    %2396 = vmatpush1.msra.mxu0 %v2378
    %2397 = vmatprep.subr.mxu0 0.0
    %2398 = vmatpush1.msra.mxu0 %v2377
    %2399 = vmatprep.subr.mxu0 0.0
    %2400 = vmatpush1.msra.mxu0 %v2376
    %2401 = vmatprep.subr.mxu0 0.0
    %2402 = vmatpush1.msra.mxu0 %v2375
    %2403 = vmatprep.subr.mxu0 0.0
    %2404 = vmatpush1.msra.mxu0 %v2374
    %2405 = vmatprep.subr.mxu0 0.0
    %2406 = vmatpush1.msra.mxu0 %v2373
    %2407 = vmatprep.subr.mxu0 0.0
    %2408 = vmatpush1.msra.mxu0 %v2372
    %2409 = vmatprep.subr.mxu0 0.0
    %2410 = vmatpush1.msra.mxu0 %v2371
    %2411 = vmatprep.subr.mxu0 0.0
    %2412 = vmatpush1.msra.mxu0 %v2370
    %2413 = vmatprep.subr.mxu0 0.0
    %2414 = vmatpush1.msra.mxu0 %v2369
    %2415 = vmatprep.subr.mxu0 0.0
    %2416 = vmatpush1.msra.mxu0 %v2368
    %2417 = vmatprep.subr.mxu0 0.0
    %2418 = vmatpush1.msra.mxu0 %v2367
    %2419 = vmatprep.subr.mxu0 0.0
    %2420 = vmatpush1.msra.mxu0 %v2366
    %2421 = vmatprep.subr.mxu0 0.0
    %2422 = vmatpush2.msra.mxu0 0.0
    %2423 = vmatprep.subr.mxu0 0.0
    %2424 = vmatpush2.msra.mxu0 0.0
    %2425 = vmatprep.subr.mxu0 0.0
    %2426 = vmatpush2.msra.mxu0 0.0
    %2427 = vmatprep.subr.mxu0 0.0
    %2428 = vmatpush2.msra.mxu0 0.0
    %2429 = vmatprep.subr.mxu0 0.0
    %2430 = vmatpush2.msra.mxu0 0.0
    %2431 = vmatprep.subr.mxu0 0.0
    %2432 = vmatpush2.msra.mxu0 0.0
    %2433 = vmatprep.subr.mxu0 0.0
    %2434 = vmatpush2.msra.mxu0 0.0
    %2435 = vmatprep.subr.mxu0 0.0
    %2436 = vmatpush2.msra.mxu0 0.0
    %2437 = vmatprep.subr.mxu0 0.0
    %2438 = vmatpush2.msra.mxu0 0.0
    %2439 = vmatprep.subr.mxu0 0.0
    %2440 = vmatpush2.msra.mxu0 0.0
    %2441 = vmatprep.subr.mxu0 0.0
    %2442 = vmatpush2.msra.mxu0 0.0
    %2443 = vmatprep.subr.mxu0 0.0
    %2444 = vmatpush2.msra.mxu0 0.0
    %2445 = vmatprep.subr.mxu0 0.0
    %2446 = vmatpush2.msra.mxu0 0.0
    %2447 = vmatprep.subr.mxu0 0.0
    %2448 = vmatpush2.msra.mxu0 0.0
    %2449 = vmatprep.subr.mxu0 0.0
    %2450 = vmatpush2.msra.mxu0 0.0
    %2451 = vmatprep.subr.mxu0 0.0
    %2452 = vmatpush2.msra.mxu0 0.0
    %2453 = vmatprep.mubr.f32.mxu0 0.0
    %2454 = vmatmul.mubr.f32.gmra.mxu0 %v2365
    %v2455 = vpop.f32.mrf.mxu0
    %v2456 = vadd.f32 %v2387, %v2455
    %v2457 = vpop.f32.mrf.mxu0
    %2458 = vdwg.mxu0
    %vm2459 = vcmask 130048
    %2460 = vst.msk [vmem:[%s14] sm:$0xff] %vm2459, %v2456
    // Predicated region
    $region74: #{gru_model_forward.1} parent=1 // pred_check
      _
    $region75: #{gru_model_forward.1} parent=1 // pred_check_branch
      %2462 = sbr.rel (0) target = $region77
    $region76: #{gru_model_forward.1} parent=1 // pred_region
      _
    $region77: #{gru_model_forward.1} parent=1 // pred_fallthru
      _
    // Predicated region
    $region78: #{gru_model_forward.1} parent=1 // pred_check
      _
    $region79: #{gru_model_forward.1} parent=1 // pred_check_branch
      %2464 = sbr.rel (0) target = $region81
    $region80: #{gru_model_forward.1} parent=1 // pred_region
      _
    $region81: #{gru_model_forward.1} parent=1 // pred_fallthru
      _
    %2465 = vsyncpa [#allocation3], 1
    %2466 = vsyncpa [#allocation5], 1
    %2467 = vsyncpa [#allocation8], 1

</llo_original>
